<compile_context>
chip_gen: v5e
topology: v5e:2x2
jax: 0.10.0
libtpu: 0.0.40
codegen_flags: <defaults>
</compile_context>

<pallas_src>
import math

import jax
import jax.numpy as jnp
from jax.experimental import pallas as pl
from jax.experimental.pallas import tpu as pltpu

INPUT_SIZE = 36
HIDDEN_SIZE = 31
NUM_CLASSES = 7
NUM_LAYERS = 2

HP = 128   # per-gate lane stride (hidden padded to one full vreg lane width)
BP = 8     # batch padded to one sublane group
CP = 128   # padded class dim (lane-dense output store)


# ----------------------------------------------------------------------------
# Fused Pallas kernel
# ----------------------------------------------------------------------------
def fused_rnn_kernel(
    x_ref,                                              # (T*BP, D0)
    wih0f_ref, whh0f_ref, bih0f_ref, bhh0f_ref,         # layer 0, forward
    wih0b_ref, whh0b_ref, bih0b_ref, bhh0b_ref,         # layer 0, backward
    wih1f_ref, whh1f_ref, bih1f_ref, bhh1f_ref,         # layer 1, forward
    wih1b_ref, whh1b_ref, bih1b_ref, bhh1b_ref,         # layer 1, backward
    wfc_ref, bfc_ref,                                   # FC head
    out_ref,                                            # (BP, CP)
    seq_ref,                                            # scratch (T*BP, 2*HP)
    gif_ref, gib_ref,                                   # scratch (T*BP, 3*HP)
):
    T = x_ref.shape[0] // BP

    def gru_cell(gi, gh, h):
        # gate order (r, z, n); each gate occupies a 128-lane aligned slot.
        r = jax.nn.sigmoid(gi[:, 0:HP] + gh[:, 0:HP])
        z = jax.nn.sigmoid(gi[:, HP:2 * HP] + gh[:, HP:2 * HP])
        n = jnp.tanh(gi[:, 2 * HP:3 * HP] + r * gh[:, 2 * HP:3 * HP])
        return (1.0 - z) * n + z * h

    def run_layer(in_seq,
                  wih_f, whh_f, bih_f, bhh_f,
                  wih_b, whh_b, bih_b, bhh_b,
                  write_seq):
        # Hoisted input projection: one big matmul per direction, off the
        # recurrence critical path.
        gif_ref[...] = (
            jnp.dot(in_seq, wih_f[...], preferred_element_type=jnp.float32)
            + bih_f[...])
        gib_ref[...] = (
            jnp.dot(in_seq, wih_b[...], preferred_element_type=jnp.float32)
            + bib_ref_placeholder[...]) if False else (
            jnp.dot(in_seq, wih_b[...], preferred_element_type=jnp.float32)
            + bih_b[...])

        w_hh_f = whh_f[...]
        w_hh_b = whh_b[...]
        b_hh_f = bhh_f[...]
        b_hh_b = bhh_b[...]

        h_f = jnp.zeros((BP, HP), jnp.float32)   # h0 initialized in-kernel
        h_b = jnp.zeros((BP, HP), jnp.float32)
        h_b_first = h_b

        # Static unroll over time; fwd and bwd chains interleave.
        for i in range(T):
            tf = i
            tb = T - 1 - i
            gh_f = (jnp.dot(h_f, w_hh_f, preferred_element_type=jnp.float32)
                    + b_hh_f)
            gh_b = (jnp.dot(h_b, w_hh_b, preferred_element_type=jnp.float32)
                    + b_hh_b)
            gi_f = gif_ref[tf * BP:(tf + 1) * BP, :]
            gi_b = gib_ref[tb * BP:(tb + 1) * BP, :]
            h_f = gru_cell(gi_f, gh_f, h_f)
            h_b = gru_cell(gi_b, gh_b, h_b)
            if i == 0:
                h_b_first = h_b        # backward hidden at t = T-1
            if write_seq:
                seq_ref[tf * BP:(tf + 1) * BP, 0:HP] = h_f
                seq_ref[tb * BP:(tb + 1) * BP, HP:2 * HP] = h_b
        return h_f, h_b_first

    # Layer 0: writes its full (aligned, lane-padded) sequence into seq_ref.
    run_layer(x_ref[...],
              wih0f_ref, whh0f_ref, bih0f_ref, bhh0f_ref,
              wih0b_ref, whh0b_ref, bih0b_ref, bhh0b_ref,
              write_seq=True)

    # Layer 1: only the last-timestep fwd/bwd hidden states are needed.
    h_f_last, h_b_last = run_layer(
        seq_ref[...],
        wih1f_ref, whh1f_ref, bih1f_ref, bhh1f_ref,
        wih1b_ref, whh1b_ref, bih1b_ref, bhh1b_ref,
        write_seq=False)

    # FC head fused into the epilogue (no separate kernel launch, no concat:
    # aligned static slices of the packed FC weight).
    out_ref[...] = (
        jnp.dot(h_f_last, wfc_ref[0:HP, :], preferred_element_type=jnp.float32)
        + jnp.dot(h_b_last, wfc_ref[HP:2 * HP, :],
                  preferred_element_type=jnp.float32)
        + bfc_ref[...])


# ----------------------------------------------------------------------------
# Weight packing (PyTorch layout -> lane-aligned kernel layout)
# ----------------------------------------------------------------------------
def _pack_w_ih(w_ih_pt, segments, rows_total):
    """(3H, D_in) -> (rows_total, 3*HP); gate g at lanes [g*HP, g*HP+H)."""
    H = HIDDEN_SIZE
    w_g = w_ih_pt.reshape(3, H, -1)                       # (3, H, D_in)
    out = jnp.zeros((rows_total, 3 * HP), jnp.float32)
    for g in range(3):
        wt = jnp.transpose(w_g[g])                        # (D_in, H)
        for (src, length, dst) in segments:
            out = out.at[dst:dst + length, g * HP:g * HP + H].set(
                wt[src:src + length])
    return out


def _pack_w_hh(w_hh_pt):
    """(3H, H) -> (HP, 3*HP)."""
    H = HIDDEN_SIZE
    w_g = w_hh_pt.reshape(3, H, H)
    out = jnp.zeros((HP, 3 * HP), jnp.float32)
    for g in range(3):
        out = out.at[0:H, g * HP:g * HP + H].set(jnp.transpose(w_g[g]))
    return out


def _pack_bias(b_pt):
    """(3H,) -> (1, 3*HP)."""
    H = HIDDEN_SIZE
    b_g = b_pt.reshape(3, H)
    out = jnp.zeros((1, 3 * HP), jnp.float32)
    for g in range(3):
        out = out.at[0, g * HP:g * HP + H].set(b_g[g])
    return out


def _pack_fc(w_fc_pt, b_fc_pt):
    """(C, 2H)/(C,) -> (2*HP, CP)/(1, CP); fwd features at rows 0.., bwd at HP.."""
    H = HIDDEN_SIZE
    C = NUM_CLASSES
    wt = jnp.transpose(w_fc_pt)                           # (2H, C)
    w = jnp.zeros((2 * HP, CP), jnp.float32)
    w = w.at[0:H, 0:C].set(wt[0:H])
    w = w.at[HP:HP + H, 0:C].set(wt[H:2 * H])
    b = jnp.zeros((1, CP), jnp.float32).at[0, 0:C].set(b_fc_pt)
    return w, b


def pack_params(raw):
    H = HIDDEN_SIZE
    packed = []
    for layer_idx, dirs in enumerate(raw["gru"]):
        if layer_idx == 0:
            segments = [(0, INPUT_SIZE, 0)]
            rows = INPUT_SIZE
        else:
            # previous layer output: fwd h at lanes [0,H), bwd h at lanes [HP,HP+H)
            segments = [(0, H, 0), (H, H, HP)]
            rows = 2 * HP
        for (w_ih, w_hh, b_ih, b_hh) in dirs:
            packed.extend([
                _pack_w_ih(w_ih, segments, rows),
                _pack_w_hh(w_hh),
                _pack_bias(b_ih),
                _pack_bias(b_hh),
            ])
    w_fc, b_fc = raw["fc"]
    wp, bp = _pack_fc(w_fc, b_fc)
    packed.extend([wp, bp])
    return tuple(packed)


def init_params(key):
    """Deterministic uniform(-1/sqrt(fan), 1/sqrt(fan)) init, PyTorch shapes."""
    H = HIDDEN_SIZE
    bound = 1.0 / math.sqrt(H)
    raw = {"gru": [], "fc": None}
    for layer in range(NUM_LAYERS):
        d_in = INPUT_SIZE if layer == 0 else 2 * H
        dirs = []
        for _direction in range(2):  # forward, backward
            key, k1, k2, k3, k4 = jax.random.split(key, 5)
            w_ih = jax.random.uniform(k1, (3 * H, d_in), jnp.float32, -bound, bound)
            w_hh = jax.random.uniform(k2, (3 * H, H), jnp.float32, -bound, bound)
            b_ih = jax.random.uniform(k3, (3 * H,), jnp.float32, -bound, bound)
            b_hh = jax.random.uniform(k4, (3 * H,), jnp.float32, -bound, bound)
            dirs.append((w_ih, w_hh, b_ih, b_hh))
        raw["gru"].append(tuple(dirs))
    key, k1, k2 = jax.random.split(key, 3)
    fc_bound = 1.0 / math.sqrt(2 * H)
    w_fc = jax.random.uniform(k1, (NUM_CLASSES, 2 * H), jnp.float32,
                              -fc_bound, fc_bound)
    b_fc = jax.random.uniform(k2, (NUM_CLASSES,), jnp.float32,
                              -fc_bound, fc_bound)
    raw["fc"] = (w_fc, b_fc)
    return pack_params(raw), raw


# ----------------------------------------------------------------------------
# Wrapper
# ----------------------------------------------------------------------------
_VMEM = pl.BlockSpec(memory_space=pltpu.MemorySpace.VMEM)


def _pack_input(x):
    """(B, T, D) -> time-major, batch-padded, flattened (T*BP, D)."""
    B, T, D = x.shape
    x_t = jnp.transpose(x, (1, 0, 2))                     # (T, B, D)
    x_t = jnp.pad(x_t, ((0, 0), (0, BP - B), (0, 0)))     # (T, BP, D)
    return x_t.reshape(T * BP, D)


@jax.jit
def rnn_forward(x, packed):
    """x: (B, T, INPUT_SIZE) -> logits (B, NUM_CLASSES)."""
    B, T, _ = x.shape
    assert B <= BP
    x_k = _pack_input(x)
    out = pl.pallas_call(
        fused_rnn_kernel,
        out_shape=jax.ShapeDtypeStruct((BP, CP), jnp.float32),
        in_specs=[_VMEM] * (1 + len(packed)),
        out_specs=_VMEM,
        scratch_shapes=[
            pltpu.VMEM((T * BP, 2 * HP), jnp.float32),   # layer-0 output seq
            pltpu.VMEM((T * BP, 3 * HP), jnp.float32),   # fwd input projection
            pltpu.VMEM((T * BP, 3 * HP), jnp.float32),   # bwd input projection
        ],
    )(x_k, *packed)
    return out[:B, :NUM_CLASSES]


# ----------------------------------------------------------------------------
# Pure-JAX reference (PyTorch GRU semantics) for correctness check
# ----------------------------------------------------------------------------
def _gru_cell_ref(x_t, h, w_ih, w_hh, b_ih, b_hh):
    H = HIDDEN_SIZE
    gi = x_t @ w_ih.T + b_ih
    gh = h @ w_hh.T + b_hh
    r = jax.nn.sigmoid(gi[:, :H] + gh[:, :H])
    z = jax.nn.sigmoid(gi[:, H:2 * H] + gh[:, H:2 * H])
    n = jnp.tanh(gi[:, 2 * H:] + r * gh[:, 2 * H:])
    return (1.0 - z) * n + z * h


def reference_forward(x, raw):
    B, T, _ = x.shape
    out = x
    for (fwd, bwd) in raw["gru"]:
        h_f = jnp.zeros((B, HIDDEN_SIZE), jnp.float32)
        h_b = jnp.zeros((B, HIDDEN_SIZE), jnp.float32)
        outs_f, outs_b = [], []
        for t in range(T):
            h_f = _gru_cell_ref(out[:, t], h_f, *fwd)
            outs_f.append(h_f)
        for t in range(T - 1, -1, -1):
            h_b = _gru_cell_ref(out[:, t], h_b, *bwd)
            outs_b.insert(0, h_b)
        out = jnp.concatenate(
            [jnp.stack(outs_f, axis=1), jnp.stack(outs_b, axis=1)], axis=-1)
    w_fc, b_fc = raw["fc"]
    return out[:, -1, :] @ w_fc.T + b_fc


if __name__ == "__main__":
    key = jax.random.PRNGKey(0)
    k_param, k_x = jax.random.split(key)

    B, T = 2, 8
    packed, raw = init_params(k_param)
    x = jax.random.normal(k_x, (B, T, INPUT_SIZE), jnp.float32)

    logits = rnn_forward(x, packed)
    jax.block_until_ready(logits)

    assert logits.shape == (B, NUM_CLASSES), logits.shape
    assert logits.dtype == jnp.float32
    assert bool(jnp.all(jnp.isfinite(logits)))

    ref = jax.jit(reference_forward, static_argnums=())(x, raw)
    jax.block_until_ready(ref)
    assert jnp.allclose(logits, ref, rtol=2e-3, atol=2e-3), (
        jnp.max(jnp.abs(logits - ref)))

    print("KERNEL_OK")
</pallas_src>

<mosaic_0001>
module attributes {stable_mosaic.version = 11 : i64} {
  func.func @fused_rnn_kernel(%arg0: memref<64x36xf32, #tpu.memory_space<vmem>>, %arg1: memref<36x384xf32, #tpu.memory_space<vmem>>, %arg2: memref<128x384xf32, #tpu.memory_space<vmem>>, %arg3: memref<1x384xf32, #tpu.memory_space<vmem>>, %arg4: memref<1x384xf32, #tpu.memory_space<vmem>>, %arg5: memref<36x384xf32, #tpu.memory_space<vmem>>, %arg6: memref<128x384xf32, #tpu.memory_space<vmem>>, %arg7: memref<1x384xf32, #tpu.memory_space<vmem>>, %arg8: memref<1x384xf32, #tpu.memory_space<vmem>>, %arg9: memref<256x384xf32, #tpu.memory_space<vmem>>, %arg10: memref<128x384xf32, #tpu.memory_space<vmem>>, %arg11: memref<1x384xf32, #tpu.memory_space<vmem>>, %arg12: memref<1x384xf32, #tpu.memory_space<vmem>>, %arg13: memref<256x384xf32, #tpu.memory_space<vmem>>, %arg14: memref<128x384xf32, #tpu.memory_space<vmem>>, %arg15: memref<1x384xf32, #tpu.memory_space<vmem>>, %arg16: memref<1x384xf32, #tpu.memory_space<vmem>>, %arg17: memref<256x128xf32, #tpu.memory_space<vmem>>, %arg18: memref<1x128xf32, #tpu.memory_space<vmem>>, %arg19: memref<8x128xf32, #tpu.memory_space<vmem>>, %arg20: memref<64x256xf32, #tpu.memory_space<vmem>>, %arg21: memref<64x384xf32, #tpu.memory_space<vmem>>, %arg22: memref<64x384xf32, #tpu.memory_space<vmem>>) attributes {dimension_semantics = [], scalar_prefetch = 0 : i64, scratch_operands = 3 : i64, tpu.core_type = #tpu.core_type<tc>} {
    %c0 = arith.constant 0 : index
    %c0_0 = arith.constant 0 : index
    %0 = vector.load %arg0[%c0, %c0_0] : memref<64x36xf32, #tpu.memory_space<vmem>>, vector<64x36xf32>
    %c0_1 = arith.constant 0 : index
    %c0_2 = arith.constant 0 : index
    %1 = vector.load %arg1[%c0_1, %c0_2] : memref<36x384xf32, #tpu.memory_space<vmem>>, vector<36x384xf32>
    %cst = arith.constant dense<0.000000e+00> : vector<64x384xf32>
    %2 = tpu.matmul %0, %1, %cst {dimension_numbers = #tpu.dot_dimension_numbers<[1], [0], [0], [1], [0, 0, 1, 1], [], []>} : vector<64x36xf32>, vector<36x384xf32>, vector<64x384xf32> -> vector<64x384xf32>
    %c0_3 = arith.constant 0 : index
    %c0_4 = arith.constant 0 : index
    %3 = vector.load %arg3[%c0_3, %c0_4] : memref<1x384xf32, #tpu.memory_space<vmem>>, vector<1x384xf32>
    %4 = vector.broadcast %3 : vector<1x384xf32> to vector<64x384xf32>
    %5 = arith.addf %2, %4 : vector<64x384xf32>
    %c0_5 = arith.constant 0 : index
    %c0_6 = arith.constant 0 : index
    %6 = vector.load %arg21[%c0_5, %c0_6] : memref<64x384xf32, #tpu.memory_space<vmem>>, vector<64x384xf32>
    tpu.vector_store %arg21[%c0_5, %c0_6], %5 {strides = array<i32>} : memref<64x384xf32, #tpu.memory_space<vmem>>, vector<64x384xf32>,
    %c0_7 = arith.constant 0 : index
    %c0_8 = arith.constant 0 : index
    %7 = vector.load %arg5[%c0_7, %c0_8] : memref<36x384xf32, #tpu.memory_space<vmem>>, vector<36x384xf32>
    %cst_9 = arith.constant dense<0.000000e+00> : vector<64x384xf32>
    %8 = tpu.matmul %0, %7, %cst_9 {dimension_numbers = #tpu.dot_dimension_numbers<[1], [0], [0], [1], [0, 0, 1, 1], [], []>} : vector<64x36xf32>, vector<36x384xf32>, vector<64x384xf32> -> vector<64x384xf32>
    %c0_10 = arith.constant 0 : index
    %c0_11 = arith.constant 0 : index
    %9 = vector.load %arg7[%c0_10, %c0_11] : memref<1x384xf32, #tpu.memory_space<vmem>>, vector<1x384xf32>
    %10 = vector.broadcast %9 : vector<1x384xf32> to vector<64x384xf32>
    %11 = arith.addf %8, %10 : vector<64x384xf32>
    %c0_12 = arith.constant 0 : index
    %c0_13 = arith.constant 0 : index
    %12 = vector.load %arg22[%c0_12, %c0_13] : memref<64x384xf32, #tpu.memory_space<vmem>>, vector<64x384xf32>
    tpu.vector_store %arg22[%c0_12, %c0_13], %11 {strides = array<i32>} : memref<64x384xf32, #tpu.memory_space<vmem>>, vector<64x384xf32>,
    %c0_14 = arith.constant 0 : index
    %c0_15 = arith.constant 0 : index
    %13 = vector.load %arg2[%c0_14, %c0_15] : memref<128x384xf32, #tpu.memory_space<vmem>>, vector<128x384xf32>
    %c0_16 = arith.constant 0 : index
    %c0_17 = arith.constant 0 : index
    %14 = vector.load %arg6[%c0_16, %c0_17] : memref<128x384xf32, #tpu.memory_space<vmem>>, vector<128x384xf32>
    %c0_18 = arith.constant 0 : index
    %c0_19 = arith.constant 0 : index
    %15 = vector.load %arg4[%c0_18, %c0_19] : memref<1x384xf32, #tpu.memory_space<vmem>>, vector<1x384xf32>
    %c0_20 = arith.constant 0 : index
    %c0_21 = arith.constant 0 : index
    %16 = vector.load %arg8[%c0_20, %c0_21] : memref<1x384xf32, #tpu.memory_space<vmem>>, vector<1x384xf32>
    %cst_22 = arith.constant 0.000000e+00 : f32
    %17 = vector.broadcast %cst_22 : f32 to vector<8x128xf32>
    %cst_23 = arith.constant 0.000000e+00 : f32
    %18 = vector.broadcast %cst_23 : f32 to vector<8x128xf32>
    %cst_24 = arith.constant dense<0.000000e+00> : vector<8x384xf32>
    %19 = tpu.matmul %17, %13, %cst_24 {dimension_numbers = #tpu.dot_dimension_numbers<[1], [0], [0], [1], [0, 0, 1, 1], [], []>} : vector<8x128xf32>, vector<128x384xf32>, vector<8x384xf32> -> vector<8x384xf32>
    %20 = vector.broadcast %15 : vector<1x384xf32> to vector<8x384xf32>
    %21 = arith.addf %19, %20 : vector<8x384xf32>
    %cst_25 = arith.constant dense<0.000000e+00> : vector<8x384xf32>
    %22 = tpu.matmul %18, %14, %cst_25 {dimension_numbers = #tpu.dot_dimension_numbers<[1], [0], [0], [1], [0, 0, 1, 1], [], []>} : vector<8x128xf32>, vector<128x384xf32>, vector<8x384xf32> -> vector<8x384xf32>
    %23 = vector.broadcast %16 : vector<1x384xf32> to vector<8x384xf32>
    %24 = arith.addf %22, %23 : vector<8x384xf32>
    %c0_26 = arith.constant 0 : index
    %c0_27 = arith.constant 0 : index
    %25 = vector.load %arg21[%c0_26, %c0_27] : memref<64x384xf32, #tpu.memory_space<vmem>>, vector<8x384xf32>
    %c56 = arith.constant 56 : index
    %c0_28 = arith.constant 0 : index
    %26 = vector.load %arg22[%c56, %c0_28] : memref<64x384xf32, #tpu.memory_space<vmem>>, vector<8x384xf32>
    %27 = vector.extract_strided_slice %25 {offsets = [0, 0], sizes = [8, 128], strides = [1, 1]} : vector<8x384xf32> to vector<8x128xf32>
    %28 = vector.extract_strided_slice %21 {offsets = [0, 0], sizes = [8, 128], strides = [1, 1]} : vector<8x384xf32> to vector<8x128xf32>
    %29 = arith.addf %27, %28 : vector<8x128xf32>
    %30 = arith.negf %29 : vector<8x128xf32>
    %31 = math.exp %30 : vector<8x128xf32>
    %cst_29 = arith.constant 1.000000e+00 : f32
    %32 = vector.broadcast %cst_29 : f32 to vector<8x128xf32>
    %33 = arith.addf %32, %31 : vector<8x128xf32>
    %34 = arith.divf %32, %33 : vector<8x128xf32>
    %35 = vector.extract_strided_slice %25 {offsets = [0, 128], sizes = [8, 128], strides = [1, 1]} : vector<8x384xf32> to vector<8x128xf32>
    %36 = vector.extract_strided_slice %21 {offsets = [0, 128], sizes = [8, 128], strides = [1, 1]} : vector<8x384xf32> to vector<8x128xf32>
    %37 = arith.addf %35, %36 : vector<8x128xf32>
    %38 = arith.negf %37 : vector<8x128xf32>
    %39 = math.exp %38 : vector<8x128xf32>
    %cst_30 = arith.constant 1.000000e+00 : f32
    %40 = vector.broadcast %cst_30 : f32 to vector<8x128xf32>
    %41 = arith.addf %40, %39 : vector<8x128xf32>
    %42 = arith.divf %40, %41 : vector<8x128xf32>
    %43 = vector.extract_strided_slice %25 {offsets = [0, 256], sizes = [8, 128], strides = [1, 1]} : vector<8x384xf32> to vector<8x128xf32>
    %44 = vector.extract_strided_slice %21 {offsets = [0, 256], sizes = [8, 128], strides = [1, 1]} : vector<8x384xf32> to vector<8x128xf32>
    %45 = arith.mulf %34, %44 : vector<8x128xf32>
    %46 = arith.addf %43, %45 : vector<8x128xf32>
    %47 = math.tanh %46 : vector<8x128xf32>
    %cst_31 = arith.constant 1.000000e+00 : f32
    %48 = vector.broadcast %cst_31 : f32 to vector<8x128xf32>
    %49 = arith.subf %48, %42 : vector<8x128xf32>
    %50 = arith.mulf %49, %47 : vector<8x128xf32>
    %51 = arith.mulf %42, %17 : vector<8x128xf32>
    %52 = arith.addf %50, %51 : vector<8x128xf32>
    %53 = vector.extract_strided_slice %26 {offsets = [0, 0], sizes = [8, 128], strides = [1, 1]} : vector<8x384xf32> to vector<8x128xf32>
    %54 = vector.extract_strided_slice %24 {offsets = [0, 0], sizes = [8, 128], strides = [1, 1]} : vector<8x384xf32> to vector<8x128xf32>
    %55 = arith.addf %53, %54 : vector<8x128xf32>
    %56 = arith.negf %55 : vector<8x128xf32>
    %57 = math.exp %56 : vector<8x128xf32>
    %cst_32 = arith.constant 1.000000e+00 : f32
    %58 = vector.broadcast %cst_32 : f32 to vector<8x128xf32>
    %59 = arith.addf %58, %57 : vector<8x128xf32>
    %60 = arith.divf %58, %59 : vector<8x128xf32>
    %61 = vector.extract_strided_slice %26 {offsets = [0, 128], sizes = [8, 128], strides = [1, 1]} : vector<8x384xf32> to vector<8x128xf32>
    %62 = vector.extract_strided_slice %24 {offsets = [0, 128], sizes = [8, 128], strides = [1, 1]} : vector<8x384xf32> to vector<8x128xf32>
    %63 = arith.addf %61, %62 : vector<8x128xf32>
    %64 = arith.negf %63 : vector<8x128xf32>
    %65 = math.exp %64 : vector<8x128xf32>
    %cst_33 = arith.constant 1.000000e+00 : f32
    %66 = vector.broadcast %cst_33 : f32 to vector<8x128xf32>
    %67 = arith.addf %66, %65 : vector<8x128xf32>
    %68 = arith.divf %66, %67 : vector<8x128xf32>
    %69 = vector.extract_strided_slice %26 {offsets = [0, 256], sizes = [8, 128], strides = [1, 1]} : vector<8x384xf32> to vector<8x128xf32>
    %70 = vector.extract_strided_slice %24 {offsets = [0, 256], sizes = [8, 128], strides = [1, 1]} : vector<8x384xf32> to vector<8x128xf32>
    %71 = arith.mulf %60, %70 : vector<8x128xf32>
    %72 = arith.addf %69, %71 : vector<8x128xf32>
    %73 = math.tanh %72 : vector<8x128xf32>
    %cst_34 = arith.constant 1.000000e+00 : f32
    %74 = vector.broadcast %cst_34 : f32 to vector<8x128xf32>
    %75 = arith.subf %74, %68 : vector<8x128xf32>
    %76 = arith.mulf %75, %73 : vector<8x128xf32>
    %77 = arith.mulf %68, %18 : vector<8x128xf32>
    %78 = arith.addf %76, %77 : vector<8x128xf32>
    %c0_35 = arith.constant 0 : index
    %c0_36 = arith.constant 0 : index
    %79 = vector.load %arg20[%c0_35, %c0_36] : memref<64x256xf32, #tpu.memory_space<vmem>>, vector<8x128xf32>
    tpu.vector_store %arg20[%c0_35, %c0_36], %52 {strides = array<i32>} : memref<64x256xf32, #tpu.memory_space<vmem>>, vector<8x128xf32>,
    %c56_37 = arith.constant 56 : index
    %c128 = arith.constant 128 : index
    %80 = vector.load %arg20[%c56_37, %c128] : memref<64x256xf32, #tpu.memory_space<vmem>>, vector<8x128xf32>
    tpu.vector_store %arg20[%c56_37, %c128], %78 {strides = array<i32>} : memref<64x256xf32, #tpu.memory_space<vmem>>, vector<8x128xf32>,
    %cst_38 = arith.constant dense<0.000000e+00> : vector<8x384xf32>
    %81 = tpu.matmul %52, %13, %cst_38 {dimension_numbers = #tpu.dot_dimension_numbers<[1], [0], [0], [1], [0, 0, 1, 1], [], []>} : vector<8x128xf32>, vector<128x384xf32>, vector<8x384xf32> -> vector<8x384xf32>
    %82 = vector.broadcast %15 : vector<1x384xf32> to vector<8x384xf32>
    %83 = arith.addf %81, %82 : vector<8x384xf32>
    %cst_39 = arith.constant dense<0.000000e+00> : vector<8x384xf32>
    %84 = tpu.matmul %78, %14, %cst_39 {dimension_numbers = #tpu.dot_dimension_numbers<[1], [0], [0], [1], [0, 0, 1, 1], [], []>} : vector<8x128xf32>, vector<128x384xf32>, vector<8x384xf32> -> vector<8x384xf32>
    %85 = vector.broadcast %16 : vector<1x384xf32> to vector<8x384xf32>
    %86 = arith.addf %84, %85 : vector<8x384xf32>
    %c8 = arith.constant 8 : index
    %c0_40 = arith.constant 0 : index
    %87 = vector.load %arg21[%c8, %c0_40] : memref<64x384xf32, #tpu.memory_space<vmem>>, vector<8x384xf32>
    %c48 = arith.constant 48 : index
    %c0_41 = arith.constant 0 : index
    %88 = vector.load %arg22[%c48, %c0_41] : memref<64x384xf32, #tpu.memory_space<vmem>>, vector<8x384xf32>
    %89 = vector.extract_strided_slice %87 {offsets = [0, 0], sizes = [8, 128], strides = [1, 1]} : vector<8x384xf32> to vector<8x128xf32>
    %90 = vector.extract_strided_slice %83 {offsets = [0, 0], sizes = [8, 128], strides = [1, 1]} : vector<8x384xf32> to vector<8x128xf32>
    %91 = arith.addf %89, %90 : vector<8x128xf32>
    %92 = arith.negf %91 : vector<8x128xf32>
    %93 = math.exp %92 : vector<8x128xf32>
    %cst_42 = arith.constant 1.000000e+00 : f32
    %94 = vector.broadcast %cst_42 : f32 to vector<8x128xf32>
    %95 = arith.addf %94, %93 : vector<8x128xf32>
    %96 = arith.divf %94, %95 : vector<8x128xf32>
    %97 = vector.extract_strided_slice %87 {offsets = [0, 128], sizes = [8, 128], strides = [1, 1]} : vector<8x384xf32> to vector<8x128xf32>
    %98 = vector.extract_strided_slice %83 {offsets = [0, 128], sizes = [8, 128], strides = [1, 1]} : vector<8x384xf32> to vector<8x128xf32>
    %99 = arith.addf %97, %98 : vector<8x128xf32>
    %100 = arith.negf %99 : vector<8x128xf32>
    %101 = math.exp %100 : vector<8x128xf32>
    %cst_43 = arith.constant 1.000000e+00 : f32
    %102 = vector.broadcast %cst_43 : f32 to vector<8x128xf32>
    %103 = arith.addf %102, %101 : vector<8x128xf32>
    %104 = arith.divf %102, %103 : vector<8x128xf32>
    %105 = vector.extract_strided_slice %87 {offsets = [0, 256], sizes = [8, 128], strides = [1, 1]} : vector<8x384xf32> to vector<8x128xf32>
    %106 = vector.extract_strided_slice %83 {offsets = [0, 256], sizes = [8, 128], strides = [1, 1]} : vector<8x384xf32> to vector<8x128xf32>
    %107 = arith.mulf %96, %106 : vector<8x128xf32>
    %108 = arith.addf %105, %107 : vector<8x128xf32>
    %109 = math.tanh %108 : vector<8x128xf32>
    %cst_44 = arith.constant 1.000000e+00 : f32
    %110 = vector.broadcast %cst_44 : f32 to vector<8x128xf32>
    %111 = arith.subf %110, %104 : vector<8x128xf32>
    %112 = arith.mulf %111, %109 : vector<8x128xf32>
    %113 = arith.mulf %104, %52 : vector<8x128xf32>
    %114 = arith.addf %112, %113 : vector<8x128xf32>
    %115 = vector.extract_strided_slice %88 {offsets = [0, 0], sizes = [8, 128], strides = [1, 1]} : vector<8x384xf32> to vector<8x128xf32>
    %116 = vector.extract_strided_slice %86 {offsets = [0, 0], sizes = [8, 128], strides = [1, 1]} : vector<8x384xf32> to vector<8x128xf32>
    %117 = arith.addf %115, %116 : vector<8x128xf32>
    %118 = arith.negf %117 : vector<8x128xf32>
    %119 = math.exp %118 : vector<8x128xf32>
    %cst_45 = arith.constant 1.000000e+00 : f32
    %120 = vector.broadcast %cst_45 : f32 to vector<8x128xf32>
    %121 = arith.addf %120, %119 : vector<8x128xf32>
    %122 = arith.divf %120, %121 : vector<8x128xf32>
    %123 = vector.extract_strided_slice %88 {offsets = [0, 128], sizes = [8, 128], strides = [1, 1]} : vector<8x384xf32> to vector<8x128xf32>
    %124 = vector.extract_strided_slice %86 {offsets = [0, 128], sizes = [8, 128], strides = [1, 1]} : vector<8x384xf32> to vector<8x128xf32>
    %125 = arith.addf %123, %124 : vector<8x128xf32>
    %126 = arith.negf %125 : vector<8x128xf32>
    %127 = math.exp %126 : vector<8x128xf32>
    %cst_46 = arith.constant 1.000000e+00 : f32
    %128 = vector.broadcast %cst_46 : f32 to vector<8x128xf32>
    %129 = arith.addf %128, %127 : vector<8x128xf32>
    %130 = arith.divf %128, %129 : vector<8x128xf32>
    %131 = vector.extract_strided_slice %88 {offsets = [0, 256], sizes = [8, 128], strides = [1, 1]} : vector<8x384xf32> to vector<8x128xf32>
    %132 = vector.extract_strided_slice %86 {offsets = [0, 256], sizes = [8, 128], strides = [1, 1]} : vector<8x384xf32> to vector<8x128xf32>
    %133 = arith.mulf %122, %132 : vector<8x128xf32>
    %134 = arith.addf %131, %133 : vector<8x128xf32>
    %135 = math.tanh %134 : vector<8x128xf32>
    %cst_47 = arith.constant 1.000000e+00 : f32
    %136 = vector.broadcast %cst_47 : f32 to vector<8x128xf32>
    %137 = arith.subf %136, %130 : vector<8x128xf32>
    %138 = arith.mulf %137, %135 : vector<8x128xf32>
    %139 = arith.mulf %130, %78 : vector<8x128xf32>
    %140 = arith.addf %138, %139 : vector<8x128xf32>
    %c8_48 = arith.constant 8 : index
    %c0_49 = arith.constant 0 : index
    %141 = vector.load %arg20[%c8_48, %c0_49] : memref<64x256xf32, #tpu.memory_space<vmem>>, vector<8x128xf32>
    tpu.vector_store %arg20[%c8_48, %c0_49], %114 {strides = array<i32>} : memref<64x256xf32, #tpu.memory_space<vmem>>, vector<8x128xf32>,
    %c48_50 = arith.constant 48 : index
    %c128_51 = arith.constant 128 : index
    %142 = vector.load %arg20[%c48_50, %c128_51] : memref<64x256xf32, #tpu.memory_space<vmem>>, vector<8x128xf32>
    tpu.vector_store %arg20[%c48_50, %c128_51], %140 {strides = array<i32>} : memref<64x256xf32, #tpu.memory_space<vmem>>, vector<8x128xf32>,
    %cst_52 = arith.constant dense<0.000000e+00> : vector<8x384xf32>
    %143 = tpu.matmul %114, %13, %cst_52 {dimension_numbers = #tpu.dot_dimension_numbers<[1], [0], [0], [1], [0, 0, 1, 1], [], []>} : vector<8x128xf32>, vector<128x384xf32>, vector<8x384xf32> -> vector<8x384xf32>
    %144 = vector.broadcast %15 : vector<1x384xf32> to vector<8x384xf32>
    %145 = arith.addf %143, %144 : vector<8x384xf32>
    %cst_53 = arith.constant dense<0.000000e+00> : vector<8x384xf32>
    %146 = tpu.matmul %140, %14, %cst_53 {dimension_numbers = #tpu.dot_dimension_numbers<[1], [0], [0], [1], [0, 0, 1, 1], [], []>} : vector<8x128xf32>, vector<128x384xf32>, vector<8x384xf32> -> vector<8x384xf32>
    %147 = vector.broadcast %16 : vector<1x384xf32> to vector<8x384xf32>
    %148 = arith.addf %146, %147 : vector<8x384xf32>
    %c16 = arith.constant 16 : index
    %c0_54 = arith.constant 0 : index
    %149 = vector.load %arg21[%c16, %c0_54] : memref<64x384xf32, #tpu.memory_space<vmem>>, vector<8x384xf32>
    %c40 = arith.constant 40 : index
    %c0_55 = arith.constant 0 : index
    %150 = vector.load %arg22[%c40, %c0_55] : memref<64x384xf32, #tpu.memory_space<vmem>>, vector<8x384xf32>
    %151 = vector.extract_strided_slice %149 {offsets = [0, 0], sizes = [8, 128], strides = [1, 1]} : vector<8x384xf32> to vector<8x128xf32>
    %152 = vector.extract_strided_slice %145 {offsets = [0, 0], sizes = [8, 128], strides = [1, 1]} : vector<8x384xf32> to vector<8x128xf32>
    %153 = arith.addf %151, %152 : vector<8x128xf32>
    %154 = arith.negf %153 : vector<8x128xf32>
    %155 = math.exp %154 : vector<8x128xf32>
    %cst_56 = arith.constant 1.000000e+00 : f32
    %156 = vector.broadcast %cst_56 : f32 to vector<8x128xf32>
    %157 = arith.addf %156, %155 : vector<8x128xf32>
    %158 = arith.divf %156, %157 : vector<8x128xf32>
    %159 = vector.extract_strided_slice %149 {offsets = [0, 128], sizes = [8, 128], strides = [1, 1]} : vector<8x384xf32> to vector<8x128xf32>
    %160 = vector.extract_strided_slice %145 {offsets = [0, 128], sizes = [8, 128], strides = [1, 1]} : vector<8x384xf32> to vector<8x128xf32>
    %161 = arith.addf %159, %160 : vector<8x128xf32>
    %162 = arith.negf %161 : vector<8x128xf32>
    %163 = math.exp %162 : vector<8x128xf32>
    %cst_57 = arith.constant 1.000000e+00 : f32
    %164 = vector.broadcast %cst_57 : f32 to vector<8x128xf32>
    %165 = arith.addf %164, %163 : vector<8x128xf32>
    %166 = arith.divf %164, %165 : vector<8x128xf32>
    %167 = vector.extract_strided_slice %149 {offsets = [0, 256], sizes = [8, 128], strides = [1, 1]} : vector<8x384xf32> to vector<8x128xf32>
    %168 = vector.extract_strided_slice %145 {offsets = [0, 256], sizes = [8, 128], strides = [1, 1]} : vector<8x384xf32> to vector<8x128xf32>
    %169 = arith.mulf %158, %168 : vector<8x128xf32>
    %170 = arith.addf %167, %169 : vector<8x128xf32>
    %171 = math.tanh %170 : vector<8x128xf32>
    %cst_58 = arith.constant 1.000000e+00 : f32
    %172 = vector.broadcast %cst_58 : f32 to vector<8x128xf32>
    %173 = arith.subf %172, %166 : vector<8x128xf32>
    %174 = arith.mulf %173, %171 : vector<8x128xf32>
    %175 = arith.mulf %166, %114 : vector<8x128xf32>
    %176 = arith.addf %174, %175 : vector<8x128xf32>
    %177 = vector.extract_strided_slice %150 {offsets = [0, 0], sizes = [8, 128], strides = [1, 1]} : vector<8x384xf32> to vector<8x128xf32>
    %178 = vector.extract_strided_slice %148 {offsets = [0, 0], sizes = [8, 128], strides = [1, 1]} : vector<8x384xf32> to vector<8x128xf32>
    %179 = arith.addf %177, %178 : vector<8x128xf32>
    %180 = arith.negf %179 : vector<8x128xf32>
    %181 = math.exp %180 : vector<8x128xf32>
    %cst_59 = arith.constant 1.000000e+00 : f32
    %182 = vector.broadcast %cst_59 : f32 to vector<8x128xf32>
    %183 = arith.addf %182, %181 : vector<8x128xf32>
    %184 = arith.divf %182, %183 : vector<8x128xf32>
    %185 = vector.extract_strided_slice %150 {offsets = [0, 128], sizes = [8, 128], strides = [1, 1]} : vector<8x384xf32> to vector<8x128xf32>
    %186 = vector.extract_strided_slice %148 {offsets = [0, 128], sizes = [8, 128], strides = [1, 1]} : vector<8x384xf32> to vector<8x128xf32>
    %187 = arith.addf %185, %186 : vector<8x128xf32>
    %188 = arith.negf %187 : vector<8x128xf32>
    %189 = math.exp %188 : vector<8x128xf32>
    %cst_60 = arith.constant 1.000000e+00 : f32
    %190 = vector.broadcast %cst_60 : f32 to vector<8x128xf32>
    %191 = arith.addf %190, %189 : vector<8x128xf32>
    %192 = arith.divf %190, %191 : vector<8x128xf32>
    %193 = vector.extract_strided_slice %150 {offsets = [0, 256], sizes = [8, 128], strides = [1, 1]} : vector<8x384xf32> to vector<8x128xf32>
    %194 = vector.extract_strided_slice %148 {offsets = [0, 256], sizes = [8, 128], strides = [1, 1]} : vector<8x384xf32> to vector<8x128xf32>
    %195 = arith.mulf %184, %194 : vector<8x128xf32>
    %196 = arith.addf %193, %195 : vector<8x128xf32>
    %197 = math.tanh %196 : vector<8x128xf32>
    %cst_61 = arith.constant 1.000000e+00 : f32
    %198 = vector.broadcast %cst_61 : f32 to vector<8x128xf32>
    %199 = arith.subf %198, %192 : vector<8x128xf32>
    %200 = arith.mulf %199, %197 : vector<8x128xf32>
    %201 = arith.mulf %192, %140 : vector<8x128xf32>
    %202 = arith.addf %200, %201 : vector<8x128xf32>
    %c16_62 = arith.constant 16 : index
    %c0_63 = arith.constant 0 : index
    %203 = vector.load %arg20[%c16_62, %c0_63] : memref<64x256xf32, #tpu.memory_space<vmem>>, vector<8x128xf32>
    tpu.vector_store %arg20[%c16_62, %c0_63], %176 {strides = array<i32>} : memref<64x256xf32, #tpu.memory_space<vmem>>, vector<8x128xf32>,
    %c40_64 = arith.constant 40 : index
    %c128_65 = arith.constant 128 : index
    %204 = vector.load %arg20[%c40_64, %c128_65] : memref<64x256xf32, #tpu.memory_space<vmem>>, vector<8x128xf32>
    tpu.vector_store %arg20[%c40_64, %c128_65], %202 {strides = array<i32>} : memref<64x256xf32, #tpu.memory_space<vmem>>, vector<8x128xf32>,
    %cst_66 = arith.constant dense<0.000000e+00> : vector<8x384xf32>
    %205 = tpu.matmul %176, %13, %cst_66 {dimension_numbers = #tpu.dot_dimension_numbers<[1], [0], [0], [1], [0, 0, 1, 1], [], []>} : vector<8x128xf32>, vector<128x384xf32>, vector<8x384xf32> -> vector<8x384xf32>
    %206 = vector.broadcast %15 : vector<1x384xf32> to vector<8x384xf32>
    %207 = arith.addf %205, %206 : vector<8x384xf32>
    %cst_67 = arith.constant dense<0.000000e+00> : vector<8x384xf32>
    %208 = tpu.matmul %202, %14, %cst_67 {dimension_numbers = #tpu.dot_dimension_numbers<[1], [0], [0], [1], [0, 0, 1, 1], [], []>} : vector<8x128xf32>, vector<128x384xf32>, vector<8x384xf32> -> vector<8x384xf32>
    %209 = vector.broadcast %16 : vector<1x384xf32> to vector<8x384xf32>
    %210 = arith.addf %208, %209 : vector<8x384xf32>
    %c24 = arith.constant 24 : index
    %c0_68 = arith.constant 0 : index
    %211 = vector.load %arg21[%c24, %c0_68] : memref<64x384xf32, #tpu.memory_space<vmem>>, vector<8x384xf32>
    %c32 = arith.constant 32 : index
    %c0_69 = arith.constant 0 : index
    %212 = vector.load %arg22[%c32, %c0_69] : memref<64x384xf32, #tpu.memory_space<vmem>>, vector<8x384xf32>
    %213 = vector.extract_strided_slice %211 {offsets = [0, 0], sizes = [8, 128], strides = [1, 1]} : vector<8x384xf32> to vector<8x128xf32>
    %214 = vector.extract_strided_slice %207 {offsets = [0, 0], sizes = [8, 128], strides = [1, 1]} : vector<8x384xf32> to vector<8x128xf32>
    %215 = arith.addf %213, %214 : vector<8x128xf32>
    %216 = arith.negf %215 : vector<8x128xf32>
    %217 = math.exp %216 : vector<8x128xf32>
    %cst_70 = arith.constant 1.000000e+00 : f32
    %218 = vector.broadcast %cst_70 : f32 to vector<8x128xf32>
    %219 = arith.addf %218, %217 : vector<8x128xf32>
    %220 = arith.divf %218, %219 : vector<8x128xf32>
    %221 = vector.extract_strided_slice %211 {offsets = [0, 128], sizes = [8, 128], strides = [1, 1]} : vector<8x384xf32> to vector<8x128xf32>
    %222 = vector.extract_strided_slice %207 {offsets = [0, 128], sizes = [8, 128], strides = [1, 1]} : vector<8x384xf32> to vector<8x128xf32>
    %223 = arith.addf %221, %222 : vector<8x128xf32>
    %224 = arith.negf %223 : vector<8x128xf32>
    %225 = math.exp %224 : vector<8x128xf32>
    %cst_71 = arith.constant 1.000000e+00 : f32
    %226 = vector.broadcast %cst_71 : f32 to vector<8x128xf32>
    %227 = arith.addf %226, %225 : vector<8x128xf32>
    %228 = arith.divf %226, %227 : vector<8x128xf32>
    %229 = vector.extract_strided_slice %211 {offsets = [0, 256], sizes = [8, 128], strides = [1, 1]} : vector<8x384xf32> to vector<8x128xf32>
    %230 = vector.extract_strided_slice %207 {offsets = [0, 256], sizes = [8, 128], strides = [1, 1]} : vector<8x384xf32> to vector<8x128xf32>
    %231 = arith.mulf %220, %230 : vector<8x128xf32>
    %232 = arith.addf %229, %231 : vector<8x128xf32>
    %233 = math.tanh %232 : vector<8x128xf32>
    %cst_72 = arith.constant 1.000000e+00 : f32
    %234 = vector.broadcast %cst_72 : f32 to vector<8x128xf32>
    %235 = arith.subf %234, %228 : vector<8x128xf32>
    %236 = arith.mulf %235, %233 : vector<8x128xf32>
    %237 = arith.mulf %228, %176 : vector<8x128xf32>
    %238 = arith.addf %236, %237 : vector<8x128xf32>
    %239 = vector.extract_strided_slice %212 {offsets = [0, 0], sizes = [8, 128], strides = [1, 1]} : vector<8x384xf32> to vector<8x128xf32>
    %240 = vector.extract_strided_slice %210 {offsets = [0, 0], sizes = [8, 128], strides = [1, 1]} : vector<8x384xf32> to vector<8x128xf32>
    %241 = arith.addf %239, %240 : vector<8x128xf32>
    %242 = arith.negf %241 : vector<8x128xf32>
    %243 = math.exp %242 : vector<8x128xf32>
    %cst_73 = arith.constant 1.000000e+00 : f32
    %244 = vector.broadcast %cst_73 : f32 to vector<8x128xf32>
    %245 = arith.addf %244, %243 : vector<8x128xf32>
    %246 = arith.divf %244, %245 : vector<8x128xf32>
    %247 = vector.extract_strided_slice %212 {offsets = [0, 128], sizes = [8, 128], strides = [1, 1]} : vector<8x384xf32> to vector<8x128xf32>
    %248 = vector.extract_strided_slice %210 {offsets = [0, 128], sizes = [8, 128], strides = [1, 1]} : vector<8x384xf32> to vector<8x128xf32>
    %249 = arith.addf %247, %248 : vector<8x128xf32>
    %250 = arith.negf %249 : vector<8x128xf32>
    %251 = math.exp %250 : vector<8x128xf32>
    %cst_74 = arith.constant 1.000000e+00 : f32
    %252 = vector.broadcast %cst_74 : f32 to vector<8x128xf32>
    %253 = arith.addf %252, %251 : vector<8x128xf32>
    %254 = arith.divf %252, %253 : vector<8x128xf32>
    %255 = vector.extract_strided_slice %212 {offsets = [0, 256], sizes = [8, 128], strides = [1, 1]} : vector<8x384xf32> to vector<8x128xf32>
    %256 = vector.extract_strided_slice %210 {offsets = [0, 256], sizes = [8, 128], strides = [1, 1]} : vector<8x384xf32> to vector<8x128xf32>
    %257 = arith.mulf %246, %256 : vector<8x128xf32>
    %258 = arith.addf %255, %257 : vector<8x128xf32>
    %259 = math.tanh %258 : vector<8x128xf32>
    %cst_75 = arith.constant 1.000000e+00 : f32
    %260 = vector.broadcast %cst_75 : f32 to vector<8x128xf32>
    %261 = arith.subf %260, %254 : vector<8x128xf32>
    %262 = arith.mulf %261, %259 : vector<8x128xf32>
    %263 = arith.mulf %254, %202 : vector<8x128xf32>
    %264 = arith.addf %262, %263 : vector<8x128xf32>
    %c24_76 = arith.constant 24 : index
    %c0_77 = arith.constant 0 : index
    %265 = vector.load %arg20[%c24_76, %c0_77] : memref<64x256xf32, #tpu.memory_space<vmem>>, vector<8x128xf32>
    tpu.vector_store %arg20[%c24_76, %c0_77], %238 {strides = array<i32>} : memref<64x256xf32, #tpu.memory_space<vmem>>, vector<8x128xf32>,
    %c32_78 = arith.constant 32 : index
    %c128_79 = arith.constant 128 : index
    %266 = vector.load %arg20[%c32_78, %c128_79] : memref<64x256xf32, #tpu.memory_space<vmem>>, vector<8x128xf32>
    tpu.vector_store %arg20[%c32_78, %c128_79], %264 {strides = array<i32>} : memref<64x256xf32, #tpu.memory_space<vmem>>, vector<8x128xf32>,
    %cst_80 = arith.constant dense<0.000000e+00> : vector<8x384xf32>
    %267 = tpu.matmul %238, %13, %cst_80 {dimension_numbers = #tpu.dot_dimension_numbers<[1], [0], [0], [1], [0, 0, 1, 1], [], []>} : vector<8x128xf32>, vector<128x384xf32>, vector<8x384xf32> -> vector<8x384xf32>
    %268 = vector.broadcast %15 : vector<1x384xf32> to vector<8x384xf32>
    %269 = arith.addf %267, %268 : vector<8x384xf32>
    %cst_81 = arith.constant dense<0.000000e+00> : vector<8x384xf32>
    %270 = tpu.matmul %264, %14, %cst_81 {dimension_numbers = #tpu.dot_dimension_numbers<[1], [0], [0], [1], [0, 0, 1, 1], [], []>} : vector<8x128xf32>, vector<128x384xf32>, vector<8x384xf32> -> vector<8x384xf32>
    %271 = vector.broadcast %16 : vector<1x384xf32> to vector<8x384xf32>
    %272 = arith.addf %270, %271 : vector<8x384xf32>
    %c32_82 = arith.constant 32 : index
    %c0_83 = arith.constant 0 : index
    %273 = vector.load %arg21[%c32_82, %c0_83] : memref<64x384xf32, #tpu.memory_space<vmem>>, vector<8x384xf32>
    %c24_84 = arith.constant 24 : index
    %c0_85 = arith.constant 0 : index
    %274 = vector.load %arg22[%c24_84, %c0_85] : memref<64x384xf32, #tpu.memory_space<vmem>>, vector<8x384xf32>
    %275 = vector.extract_strided_slice %273 {offsets = [0, 0], sizes = [8, 128], strides = [1, 1]} : vector<8x384xf32> to vector<8x128xf32>
    %276 = vector.extract_strided_slice %269 {offsets = [0, 0], sizes = [8, 128], strides = [1, 1]} : vector<8x384xf32> to vector<8x128xf32>
    %277 = arith.addf %275, %276 : vector<8x128xf32>
    %278 = arith.negf %277 : vector<8x128xf32>
    %279 = math.exp %278 : vector<8x128xf32>
    %cst_86 = arith.constant 1.000000e+00 : f32
    %280 = vector.broadcast %cst_86 : f32 to vector<8x128xf32>
    %281 = arith.addf %280, %279 : vector<8x128xf32>
    %282 = arith.divf %280, %281 : vector<8x128xf32>
    %283 = vector.extract_strided_slice %273 {offsets = [0, 128], sizes = [8, 128], strides = [1, 1]} : vector<8x384xf32> to vector<8x128xf32>
    %284 = vector.extract_strided_slice %269 {offsets = [0, 128], sizes = [8, 128], strides = [1, 1]} : vector<8x384xf32> to vector<8x128xf32>
    %285 = arith.addf %283, %284 : vector<8x128xf32>
    %286 = arith.negf %285 : vector<8x128xf32>
    %287 = math.exp %286 : vector<8x128xf32>
    %cst_87 = arith.constant 1.000000e+00 : f32
    %288 = vector.broadcast %cst_87 : f32 to vector<8x128xf32>
    %289 = arith.addf %288, %287 : vector<8x128xf32>
    %290 = arith.divf %288, %289 : vector<8x128xf32>
    %291 = vector.extract_strided_slice %273 {offsets = [0, 256], sizes = [8, 128], strides = [1, 1]} : vector<8x384xf32> to vector<8x128xf32>
    %292 = vector.extract_strided_slice %269 {offsets = [0, 256], sizes = [8, 128], strides = [1, 1]} : vector<8x384xf32> to vector<8x128xf32>
    %293 = arith.mulf %282, %292 : vector<8x128xf32>
    %294 = arith.addf %291, %293 : vector<8x128xf32>
    %295 = math.tanh %294 : vector<8x128xf32>
    %cst_88 = arith.constant 1.000000e+00 : f32
    %296 = vector.broadcast %cst_88 : f32 to vector<8x128xf32>
    %297 = arith.subf %296, %290 : vector<8x128xf32>
    %298 = arith.mulf %297, %295 : vector<8x128xf32>
    %299 = arith.mulf %290, %238 : vector<8x128xf32>
    %300 = arith.addf %298, %299 : vector<8x128xf32>
    %301 = vector.extract_strided_slice %274 {offsets = [0, 0], sizes = [8, 128], strides = [1, 1]} : vector<8x384xf32> to vector<8x128xf32>
    %302 = vector.extract_strided_slice %272 {offsets = [0, 0], sizes = [8, 128], strides = [1, 1]} : vector<8x384xf32> to vector<8x128xf32>
    %303 = arith.addf %301, %302 : vector<8x128xf32>
    %304 = arith.negf %303 : vector<8x128xf32>
    %305 = math.exp %304 : vector<8x128xf32>
    %cst_89 = arith.constant 1.000000e+00 : f32
    %306 = vector.broadcast %cst_89 : f32 to vector<8x128xf32>
    %307 = arith.addf %306, %305 : vector<8x128xf32>
    %308 = arith.divf %306, %307 : vector<8x128xf32>
    %309 = vector.extract_strided_slice %274 {offsets = [0, 128], sizes = [8, 128], strides = [1, 1]} : vector<8x384xf32> to vector<8x128xf32>
    %310 = vector.extract_strided_slice %272 {offsets = [0, 128], sizes = [8, 128], strides = [1, 1]} : vector<8x384xf32> to vector<8x128xf32>
    %311 = arith.addf %309, %310 : vector<8x128xf32>
    %312 = arith.negf %311 : vector<8x128xf32>
    %313 = math.exp %312 : vector<8x128xf32>
    %cst_90 = arith.constant 1.000000e+00 : f32
    %314 = vector.broadcast %cst_90 : f32 to vector<8x128xf32>
    %315 = arith.addf %314, %313 : vector<8x128xf32>
    %316 = arith.divf %314, %315 : vector<8x128xf32>
    %317 = vector.extract_strided_slice %274 {offsets = [0, 256], sizes = [8, 128], strides = [1, 1]} : vector<8x384xf32> to vector<8x128xf32>
    %318 = vector.extract_strided_slice %272 {offsets = [0, 256], sizes = [8, 128], strides = [1, 1]} : vector<8x384xf32> to vector<8x128xf32>
    %319 = arith.mulf %308, %318 : vector<8x128xf32>
    %320 = arith.addf %317, %319 : vector<8x128xf32>
    %321 = math.tanh %320 : vector<8x128xf32>
    %cst_91 = arith.constant 1.000000e+00 : f32
    %322 = vector.broadcast %cst_91 : f32 to vector<8x128xf32>
    %323 = arith.subf %322, %316 : vector<8x128xf32>
    %324 = arith.mulf %323, %321 : vector<8x128xf32>
    %325 = arith.mulf %316, %264 : vector<8x128xf32>
    %326 = arith.addf %324, %325 : vector<8x128xf32>
    %c32_92 = arith.constant 32 : index
    %c0_93 = arith.constant 0 : index
    %327 = vector.load %arg20[%c32_92, %c0_93] : memref<64x256xf32, #tpu.memory_space<vmem>>, vector<8x128xf32>
    tpu.vector_store %arg20[%c32_92, %c0_93], %300 {strides = array<i32>} : memref<64x256xf32, #tpu.memory_space<vmem>>, vector<8x128xf32>,
    %c24_94 = arith.constant 24 : index
    %c128_95 = arith.constant 128 : index
    %328 = vector.load %arg20[%c24_94, %c128_95] : memref<64x256xf32, #tpu.memory_space<vmem>>, vector<8x128xf32>
    tpu.vector_store %arg20[%c24_94, %c128_95], %326 {strides = array<i32>} : memref<64x256xf32, #tpu.memory_space<vmem>>, vector<8x128xf32>,
    %cst_96 = arith.constant dense<0.000000e+00> : vector<8x384xf32>
    %329 = tpu.matmul %300, %13, %cst_96 {dimension_numbers = #tpu.dot_dimension_numbers<[1], [0], [0], [1], [0, 0, 1, 1], [], []>} : vector<8x128xf32>, vector<128x384xf32>, vector<8x384xf32> -> vector<8x384xf32>
    %330 = vector.broadcast %15 : vector<1x384xf32> to vector<8x384xf32>
    %331 = arith.addf %329, %330 : vector<8x384xf32>
    %cst_97 = arith.constant dense<0.000000e+00> : vector<8x384xf32>
    %332 = tpu.matmul %326, %14, %cst_97 {dimension_numbers = #tpu.dot_dimension_numbers<[1], [0], [0], [1], [0, 0, 1, 1], [], []>} : vector<8x128xf32>, vector<128x384xf32>, vector<8x384xf32> -> vector<8x384xf32>
    %333 = vector.broadcast %16 : vector<1x384xf32> to vector<8x384xf32>
    %334 = arith.addf %332, %333 : vector<8x384xf32>
    %c40_98 = arith.constant 40 : index
    %c0_99 = arith.constant 0 : index
    %335 = vector.load %arg21[%c40_98, %c0_99] : memref<64x384xf32, #tpu.memory_space<vmem>>, vector<8x384xf32>
    %c16_100 = arith.constant 16 : index
    %c0_101 = arith.constant 0 : index
    %336 = vector.load %arg22[%c16_100, %c0_101] : memref<64x384xf32, #tpu.memory_space<vmem>>, vector<8x384xf32>
    %337 = vector.extract_strided_slice %335 {offsets = [0, 0], sizes = [8, 128], strides = [1, 1]} : vector<8x384xf32> to vector<8x128xf32>
    %338 = vector.extract_strided_slice %331 {offsets = [0, 0], sizes = [8, 128], strides = [1, 1]} : vector<8x384xf32> to vector<8x128xf32>
    %339 = arith.addf %337, %338 : vector<8x128xf32>
    %340 = arith.negf %339 : vector<8x128xf32>
    %341 = math.exp %340 : vector<8x128xf32>
    %cst_102 = arith.constant 1.000000e+00 : f32
    %342 = vector.broadcast %cst_102 : f32 to vector<8x128xf32>
    %343 = arith.addf %342, %341 : vector<8x128xf32>
    %344 = arith.divf %342, %343 : vector<8x128xf32>
    %345 = vector.extract_strided_slice %335 {offsets = [0, 128], sizes = [8, 128], strides = [1, 1]} : vector<8x384xf32> to vector<8x128xf32>
    %346 = vector.extract_strided_slice %331 {offsets = [0, 128], sizes = [8, 128], strides = [1, 1]} : vector<8x384xf32> to vector<8x128xf32>
    %347 = arith.addf %345, %346 : vector<8x128xf32>
    %348 = arith.negf %347 : vector<8x128xf32>
    %349 = math.exp %348 : vector<8x128xf32>
    %cst_103 = arith.constant 1.000000e+00 : f32
    %350 = vector.broadcast %cst_103 : f32 to vector<8x128xf32>
    %351 = arith.addf %350, %349 : vector<8x128xf32>
    %352 = arith.divf %350, %351 : vector<8x128xf32>
    %353 = vector.extract_strided_slice %335 {offsets = [0, 256], sizes = [8, 128], strides = [1, 1]} : vector<8x384xf32> to vector<8x128xf32>
    %354 = vector.extract_strided_slice %331 {offsets = [0, 256], sizes = [8, 128], strides = [1, 1]} : vector<8x384xf32> to vector<8x128xf32>
    %355 = arith.mulf %344, %354 : vector<8x128xf32>
    %356 = arith.addf %353, %355 : vector<8x128xf32>
    %357 = math.tanh %356 : vector<8x128xf32>
    %cst_104 = arith.constant 1.000000e+00 : f32
    %358 = vector.broadcast %cst_104 : f32 to vector<8x128xf32>
    %359 = arith.subf %358, %352 : vector<8x128xf32>
    %360 = arith.mulf %359, %357 : vector<8x128xf32>
    %361 = arith.mulf %352, %300 : vector<8x128xf32>
    %362 = arith.addf %360, %361 : vector<8x128xf32>
    %363 = vector.extract_strided_slice %336 {offsets = [0, 0], sizes = [8, 128], strides = [1, 1]} : vector<8x384xf32> to vector<8x128xf32>
    %364 = vector.extract_strided_slice %334 {offsets = [0, 0], sizes = [8, 128], strides = [1, 1]} : vector<8x384xf32> to vector<8x128xf32>
    %365 = arith.addf %363, %364 : vector<8x128xf32>
    %366 = arith.negf %365 : vector<8x128xf32>
    %367 = math.exp %366 : vector<8x128xf32>
    %cst_105 = arith.constant 1.000000e+00 : f32
    %368 = vector.broadcast %cst_105 : f32 to vector<8x128xf32>
    %369 = arith.addf %368, %367 : vector<8x128xf32>
    %370 = arith.divf %368, %369 : vector<8x128xf32>
    %371 = vector.extract_strided_slice %336 {offsets = [0, 128], sizes = [8, 128], strides = [1, 1]} : vector<8x384xf32> to vector<8x128xf32>
    %372 = vector.extract_strided_slice %334 {offsets = [0, 128], sizes = [8, 128], strides = [1, 1]} : vector<8x384xf32> to vector<8x128xf32>
    %373 = arith.addf %371, %372 : vector<8x128xf32>
    %374 = arith.negf %373 : vector<8x128xf32>
    %375 = math.exp %374 : vector<8x128xf32>
    %cst_106 = arith.constant 1.000000e+00 : f32
    %376 = vector.broadcast %cst_106 : f32 to vector<8x128xf32>
    %377 = arith.addf %376, %375 : vector<8x128xf32>
    %378 = arith.divf %376, %377 : vector<8x128xf32>
    %379 = vector.extract_strided_slice %336 {offsets = [0, 256], sizes = [8, 128], strides = [1, 1]} : vector<8x384xf32> to vector<8x128xf32>
    %380 = vector.extract_strided_slice %334 {offsets = [0, 256], sizes = [8, 128], strides = [1, 1]} : vector<8x384xf32> to vector<8x128xf32>
    %381 = arith.mulf %370, %380 : vector<8x128xf32>
    %382 = arith.addf %379, %381 : vector<8x128xf32>
    %383 = math.tanh %382 : vector<8x128xf32>
    %cst_107 = arith.constant 1.000000e+00 : f32
    %384 = vector.broadcast %cst_107 : f32 to vector<8x128xf32>
    %385 = arith.subf %384, %378 : vector<8x128xf32>
    %386 = arith.mulf %385, %383 : vector<8x128xf32>
    %387 = arith.mulf %378, %326 : vector<8x128xf32>
    %388 = arith.addf %386, %387 : vector<8x128xf32>
    %c40_108 = arith.constant 40 : index
    %c0_109 = arith.constant 0 : index
    %389 = vector.load %arg20[%c40_108, %c0_109] : memref<64x256xf32, #tpu.memory_space<vmem>>, vector<8x128xf32>
    tpu.vector_store %arg20[%c40_108, %c0_109], %362 {strides = array<i32>} : memref<64x256xf32, #tpu.memory_space<vmem>>, vector<8x128xf32>,
    %c16_110 = arith.constant 16 : index
    %c128_111 = arith.constant 128 : index
    %390 = vector.load %arg20[%c16_110, %c128_111] : memref<64x256xf32, #tpu.memory_space<vmem>>, vector<8x128xf32>
    tpu.vector_store %arg20[%c16_110, %c128_111], %388 {strides = array<i32>} : memref<64x256xf32, #tpu.memory_space<vmem>>, vector<8x128xf32>,
    %cst_112 = arith.constant dense<0.000000e+00> : vector<8x384xf32>
    %391 = tpu.matmul %362, %13, %cst_112 {dimension_numbers = #tpu.dot_dimension_numbers<[1], [0], [0], [1], [0, 0, 1, 1], [], []>} : vector<8x128xf32>, vector<128x384xf32>, vector<8x384xf32> -> vector<8x384xf32>
    %392 = vector.broadcast %15 : vector<1x384xf32> to vector<8x384xf32>
    %393 = arith.addf %391, %392 : vector<8x384xf32>
    %cst_113 = arith.constant dense<0.000000e+00> : vector<8x384xf32>
    %394 = tpu.matmul %388, %14, %cst_113 {dimension_numbers = #tpu.dot_dimension_numbers<[1], [0], [0], [1], [0, 0, 1, 1], [], []>} : vector<8x128xf32>, vector<128x384xf32>, vector<8x384xf32> -> vector<8x384xf32>
    %395 = vector.broadcast %16 : vector<1x384xf32> to vector<8x384xf32>
    %396 = arith.addf %394, %395 : vector<8x384xf32>
    %c48_114 = arith.constant 48 : index
    %c0_115 = arith.constant 0 : index
    %397 = vector.load %arg21[%c48_114, %c0_115] : memref<64x384xf32, #tpu.memory_space<vmem>>, vector<8x384xf32>
    %c8_116 = arith.constant 8 : index
    %c0_117 = arith.constant 0 : index
    %398 = vector.load %arg22[%c8_116, %c0_117] : memref<64x384xf32, #tpu.memory_space<vmem>>, vector<8x384xf32>
    %399 = vector.extract_strided_slice %397 {offsets = [0, 0], sizes = [8, 128], strides = [1, 1]} : vector<8x384xf32> to vector<8x128xf32>
    %400 = vector.extract_strided_slice %393 {offsets = [0, 0], sizes = [8, 128], strides = [1, 1]} : vector<8x384xf32> to vector<8x128xf32>
    %401 = arith.addf %399, %400 : vector<8x128xf32>
    %402 = arith.negf %401 : vector<8x128xf32>
    %403 = math.exp %402 : vector<8x128xf32>
    %cst_118 = arith.constant 1.000000e+00 : f32
    %404 = vector.broadcast %cst_118 : f32 to vector<8x128xf32>
    %405 = arith.addf %404, %403 : vector<8x128xf32>
    %406 = arith.divf %404, %405 : vector<8x128xf32>
    %407 = vector.extract_strided_slice %397 {offsets = [0, 128], sizes = [8, 128], strides = [1, 1]} : vector<8x384xf32> to vector<8x128xf32>
    %408 = vector.extract_strided_slice %393 {offsets = [0, 128], sizes = [8, 128], strides = [1, 1]} : vector<8x384xf32> to vector<8x128xf32>
    %409 = arith.addf %407, %408 : vector<8x128xf32>
    %410 = arith.negf %409 : vector<8x128xf32>
    %411 = math.exp %410 : vector<8x128xf32>
    %cst_119 = arith.constant 1.000000e+00 : f32
    %412 = vector.broadcast %cst_119 : f32 to vector<8x128xf32>
    %413 = arith.addf %412, %411 : vector<8x128xf32>
    %414 = arith.divf %412, %413 : vector<8x128xf32>
    %415 = vector.extract_strided_slice %397 {offsets = [0, 256], sizes = [8, 128], strides = [1, 1]} : vector<8x384xf32> to vector<8x128xf32>
    %416 = vector.extract_strided_slice %393 {offsets = [0, 256], sizes = [8, 128], strides = [1, 1]} : vector<8x384xf32> to vector<8x128xf32>
    %417 = arith.mulf %406, %416 : vector<8x128xf32>
    %418 = arith.addf %415, %417 : vector<8x128xf32>
    %419 = math.tanh %418 : vector<8x128xf32>
    %cst_120 = arith.constant 1.000000e+00 : f32
    %420 = vector.broadcast %cst_120 : f32 to vector<8x128xf32>
    %421 = arith.subf %420, %414 : vector<8x128xf32>
    %422 = arith.mulf %421, %419 : vector<8x128xf32>
    %423 = arith.mulf %414, %362 : vector<8x128xf32>
    %424 = arith.addf %422, %423 : vector<8x128xf32>
    %425 = vector.extract_strided_slice %398 {offsets = [0, 0], sizes = [8, 128], strides = [1, 1]} : vector<8x384xf32> to vector<8x128xf32>
    %426 = vector.extract_strided_slice %396 {offsets = [0, 0], sizes = [8, 128], strides = [1, 1]} : vector<8x384xf32> to vector<8x128xf32>
    %427 = arith.addf %425, %426 : vector<8x128xf32>
    %428 = arith.negf %427 : vector<8x128xf32>
    %429 = math.exp %428 : vector<8x128xf32>
    %cst_121 = arith.constant 1.000000e+00 : f32
    %430 = vector.broadcast %cst_121 : f32 to vector<8x128xf32>
    %431 = arith.addf %430, %429 : vector<8x128xf32>
    %432 = arith.divf %430, %431 : vector<8x128xf32>
    %433 = vector.extract_strided_slice %398 {offsets = [0, 128], sizes = [8, 128], strides = [1, 1]} : vector<8x384xf32> to vector<8x128xf32>
    %434 = vector.extract_strided_slice %396 {offsets = [0, 128], sizes = [8, 128], strides = [1, 1]} : vector<8x384xf32> to vector<8x128xf32>
    %435 = arith.addf %433, %434 : vector<8x128xf32>
    %436 = arith.negf %435 : vector<8x128xf32>
    %437 = math.exp %436 : vector<8x128xf32>
    %cst_122 = arith.constant 1.000000e+00 : f32
    %438 = vector.broadcast %cst_122 : f32 to vector<8x128xf32>
    %439 = arith.addf %438, %437 : vector<8x128xf32>
    %440 = arith.divf %438, %439 : vector<8x128xf32>
    %441 = vector.extract_strided_slice %398 {offsets = [0, 256], sizes = [8, 128], strides = [1, 1]} : vector<8x384xf32> to vector<8x128xf32>
    %442 = vector.extract_strided_slice %396 {offsets = [0, 256], sizes = [8, 128], strides = [1, 1]} : vector<8x384xf32> to vector<8x128xf32>
    %443 = arith.mulf %432, %442 : vector<8x128xf32>
    %444 = arith.addf %441, %443 : vector<8x128xf32>
    %445 = math.tanh %444 : vector<8x128xf32>
    %cst_123 = arith.constant 1.000000e+00 : f32
    %446 = vector.broadcast %cst_123 : f32 to vector<8x128xf32>
    %447 = arith.subf %446, %440 : vector<8x128xf32>
    %448 = arith.mulf %447, %445 : vector<8x128xf32>
    %449 = arith.mulf %440, %388 : vector<8x128xf32>
    %450 = arith.addf %448, %449 : vector<8x128xf32>
    %c48_124 = arith.constant 48 : index
    %c0_125 = arith.constant 0 : index
    %451 = vector.load %arg20[%c48_124, %c0_125] : memref<64x256xf32, #tpu.memory_space<vmem>>, vector<8x128xf32>
    tpu.vector_store %arg20[%c48_124, %c0_125], %424 {strides = array<i32>} : memref<64x256xf32, #tpu.memory_space<vmem>>, vector<8x128xf32>,
    %c8_126 = arith.constant 8 : index
    %c128_127 = arith.constant 128 : index
    %452 = vector.load %arg20[%c8_126, %c128_127] : memref<64x256xf32, #tpu.memory_space<vmem>>, vector<8x128xf32>
    tpu.vector_store %arg20[%c8_126, %c128_127], %450 {strides = array<i32>} : memref<64x256xf32, #tpu.memory_space<vmem>>, vector<8x128xf32>,
    %cst_128 = arith.constant dense<0.000000e+00> : vector<8x384xf32>
    %453 = tpu.matmul %424, %13, %cst_128 {dimension_numbers = #tpu.dot_dimension_numbers<[1], [0], [0], [1], [0, 0, 1, 1], [], []>} : vector<8x128xf32>, vector<128x384xf32>, vector<8x384xf32> -> vector<8x384xf32>
    %454 = vector.broadcast %15 : vector<1x384xf32> to vector<8x384xf32>
    %455 = arith.addf %453, %454 : vector<8x384xf32>
    %cst_129 = arith.constant dense<0.000000e+00> : vector<8x384xf32>
    %456 = tpu.matmul %450, %14, %cst_129 {dimension_numbers = #tpu.dot_dimension_numbers<[1], [0], [0], [1], [0, 0, 1, 1], [], []>} : vector<8x128xf32>, vector<128x384xf32>, vector<8x384xf32> -> vector<8x384xf32>
    %457 = vector.broadcast %16 : vector<1x384xf32> to vector<8x384xf32>
    %458 = arith.addf %456, %457 : vector<8x384xf32>
    %c56_130 = arith.constant 56 : index
    %c0_131 = arith.constant 0 : index
    %459 = vector.load %arg21[%c56_130, %c0_131] : memref<64x384xf32, #tpu.memory_space<vmem>>, vector<8x384xf32>
    %c0_132 = arith.constant 0 : index
    %c0_133 = arith.constant 0 : index
    %460 = vector.load %arg22[%c0_132, %c0_133] : memref<64x384xf32, #tpu.memory_space<vmem>>, vector<8x384xf32>
    %461 = vector.extract_strided_slice %459 {offsets = [0, 0], sizes = [8, 128], strides = [1, 1]} : vector<8x384xf32> to vector<8x128xf32>
    %462 = vector.extract_strided_slice %455 {offsets = [0, 0], sizes = [8, 128], strides = [1, 1]} : vector<8x384xf32> to vector<8x128xf32>
    %463 = arith.addf %461, %462 : vector<8x128xf32>
    %464 = arith.negf %463 : vector<8x128xf32>
    %465 = math.exp %464 : vector<8x128xf32>
    %cst_134 = arith.constant 1.000000e+00 : f32
    %466 = vector.broadcast %cst_134 : f32 to vector<8x128xf32>
    %467 = arith.addf %466, %465 : vector<8x128xf32>
    %468 = arith.divf %466, %467 : vector<8x128xf32>
    %469 = vector.extract_strided_slice %459 {offsets = [0, 128], sizes = [8, 128], strides = [1, 1]} : vector<8x384xf32> to vector<8x128xf32>
    %470 = vector.extract_strided_slice %455 {offsets = [0, 128], sizes = [8, 128], strides = [1, 1]} : vector<8x384xf32> to vector<8x128xf32>
    %471 = arith.addf %469, %470 : vector<8x128xf32>
    %472 = arith.negf %471 : vector<8x128xf32>
    %473 = math.exp %472 : vector<8x128xf32>
    %cst_135 = arith.constant 1.000000e+00 : f32
    %474 = vector.broadcast %cst_135 : f32 to vector<8x128xf32>
    %475 = arith.addf %474, %473 : vector<8x128xf32>
    %476 = arith.divf %474, %475 : vector<8x128xf32>
    %477 = vector.extract_strided_slice %459 {offsets = [0, 256], sizes = [8, 128], strides = [1, 1]} : vector<8x384xf32> to vector<8x128xf32>
    %478 = vector.extract_strided_slice %455 {offsets = [0, 256], sizes = [8, 128], strides = [1, 1]} : vector<8x384xf32> to vector<8x128xf32>
    %479 = arith.mulf %468, %478 : vector<8x128xf32>
    %480 = arith.addf %477, %479 : vector<8x128xf32>
    %481 = math.tanh %480 : vector<8x128xf32>
    %cst_136 = arith.constant 1.000000e+00 : f32
    %482 = vector.broadcast %cst_136 : f32 to vector<8x128xf32>
    %483 = arith.subf %482, %476 : vector<8x128xf32>
    %484 = arith.mulf %483, %481 : vector<8x128xf32>
    %485 = arith.mulf %476, %424 : vector<8x128xf32>
    %486 = arith.addf %484, %485 : vector<8x128xf32>
    %487 = vector.extract_strided_slice %460 {offsets = [0, 0], sizes = [8, 128], strides = [1, 1]} : vector<8x384xf32> to vector<8x128xf32>
    %488 = vector.extract_strided_slice %458 {offsets = [0, 0], sizes = [8, 128], strides = [1, 1]} : vector<8x384xf32> to vector<8x128xf32>
    %489 = arith.addf %487, %488 : vector<8x128xf32>
    %490 = arith.negf %489 : vector<8x128xf32>
    %491 = math.exp %490 : vector<8x128xf32>
    %cst_137 = arith.constant 1.000000e+00 : f32
    %492 = vector.broadcast %cst_137 : f32 to vector<8x128xf32>
    %493 = arith.addf %492, %491 : vector<8x128xf32>
    %494 = arith.divf %492, %493 : vector<8x128xf32>
    %495 = vector.extract_strided_slice %460 {offsets = [0, 128], sizes = [8, 128], strides = [1, 1]} : vector<8x384xf32> to vector<8x128xf32>
    %496 = vector.extract_strided_slice %458 {offsets = [0, 128], sizes = [8, 128], strides = [1, 1]} : vector<8x384xf32> to vector<8x128xf32>
    %497 = arith.addf %495, %496 : vector<8x128xf32>
    %498 = arith.negf %497 : vector<8x128xf32>
    %499 = math.exp %498 : vector<8x128xf32>
    %cst_138 = arith.constant 1.000000e+00 : f32
    %500 = vector.broadcast %cst_138 : f32 to vector<8x128xf32>
    %501 = arith.addf %500, %499 : vector<8x128xf32>
    %502 = arith.divf %500, %501 : vector<8x128xf32>
    %503 = vector.extract_strided_slice %460 {offsets = [0, 256], sizes = [8, 128], strides = [1, 1]} : vector<8x384xf32> to vector<8x128xf32>
    %504 = vector.extract_strided_slice %458 {offsets = [0, 256], sizes = [8, 128], strides = [1, 1]} : vector<8x384xf32> to vector<8x128xf32>
    %505 = arith.mulf %494, %504 : vector<8x128xf32>
    %506 = arith.addf %503, %505 : vector<8x128xf32>
    %507 = math.tanh %506 : vector<8x128xf32>
    %cst_139 = arith.constant 1.000000e+00 : f32
    %508 = vector.broadcast %cst_139 : f32 to vector<8x128xf32>
    %509 = arith.subf %508, %502 : vector<8x128xf32>
    %510 = arith.mulf %509, %507 : vector<8x128xf32>
    %511 = arith.mulf %502, %450 : vector<8x128xf32>
    %512 = arith.addf %510, %511 : vector<8x128xf32>
    %c56_140 = arith.constant 56 : index
    %c0_141 = arith.constant 0 : index
    %513 = vector.load %arg20[%c56_140, %c0_141] : memref<64x256xf32, #tpu.memory_space<vmem>>, vector<8x128xf32>
    tpu.vector_store %arg20[%c56_140, %c0_141], %486 {strides = array<i32>} : memref<64x256xf32, #tpu.memory_space<vmem>>, vector<8x128xf32>,
    %c0_142 = arith.constant 0 : index
    %c128_143 = arith.constant 128 : index
    %514 = vector.load %arg20[%c0_142, %c128_143] : memref<64x256xf32, #tpu.memory_space<vmem>>, vector<8x128xf32>
    tpu.vector_store %arg20[%c0_142, %c128_143], %512 {strides = array<i32>} : memref<64x256xf32, #tpu.memory_space<vmem>>, vector<8x128xf32>,
    %c0_144 = arith.constant 0 : index
    %c0_145 = arith.constant 0 : index
    %515 = vector.load %arg20[%c0_144, %c0_145] : memref<64x256xf32, #tpu.memory_space<vmem>>, vector<64x256xf32>
    %c0_146 = arith.constant 0 : index
    %c0_147 = arith.constant 0 : index
    %516 = vector.load %arg9[%c0_146, %c0_147] : memref<256x384xf32, #tpu.memory_space<vmem>>, vector<256x384xf32>
    %cst_148 = arith.constant dense<0.000000e+00> : vector<64x384xf32>
    %517 = tpu.matmul %515, %516, %cst_148 {dimension_numbers = #tpu.dot_dimension_numbers<[1], [0], [0], [1], [0, 0, 1, 1], [], []>} : vector<64x256xf32>, vector<256x384xf32>, vector<64x384xf32> -> vector<64x384xf32>
    %c0_149 = arith.constant 0 : index
    %c0_150 = arith.constant 0 : index
    %518 = vector.load %arg11[%c0_149, %c0_150] : memref<1x384xf32, #tpu.memory_space<vmem>>, vector<1x384xf32>
    %519 = vector.broadcast %518 : vector<1x384xf32> to vector<64x384xf32>
    %520 = arith.addf %517, %519 : vector<64x384xf32>
    %c0_151 = arith.constant 0 : index
    %c0_152 = arith.constant 0 : index
    %521 = vector.load %arg21[%c0_151, %c0_152] : memref<64x384xf32, #tpu.memory_space<vmem>>, vector<64x384xf32>
    tpu.vector_store %arg21[%c0_151, %c0_152], %520 {strides = array<i32>} : memref<64x384xf32, #tpu.memory_space<vmem>>, vector<64x384xf32>,
    %c0_153 = arith.constant 0 : index
    %c0_154 = arith.constant 0 : index
    %522 = vector.load %arg13[%c0_153, %c0_154] : memref<256x384xf32, #tpu.memory_space<vmem>>, vector<256x384xf32>
    %cst_155 = arith.constant dense<0.000000e+00> : vector<64x384xf32>
    %523 = tpu.matmul %515, %522, %cst_155 {dimension_numbers = #tpu.dot_dimension_numbers<[1], [0], [0], [1], [0, 0, 1, 1], [], []>} : vector<64x256xf32>, vector<256x384xf32>, vector<64x384xf32> -> vector<64x384xf32>
    %c0_156 = arith.constant 0 : index
    %c0_157 = arith.constant 0 : index
    %524 = vector.load %arg15[%c0_156, %c0_157] : memref<1x384xf32, #tpu.memory_space<vmem>>, vector<1x384xf32>
    %525 = vector.broadcast %524 : vector<1x384xf32> to vector<64x384xf32>
    %526 = arith.addf %523, %525 : vector<64x384xf32>
    %c0_158 = arith.constant 0 : index
    %c0_159 = arith.constant 0 : index
    %527 = vector.load %arg22[%c0_158, %c0_159] : memref<64x384xf32, #tpu.memory_space<vmem>>, vector<64x384xf32>
    tpu.vector_store %arg22[%c0_158, %c0_159], %526 {strides = array<i32>} : memref<64x384xf32, #tpu.memory_space<vmem>>, vector<64x384xf32>,
    %c0_160 = arith.constant 0 : index
    %c0_161 = arith.constant 0 : index
    %528 = vector.load %arg10[%c0_160, %c0_161] : memref<128x384xf32, #tpu.memory_space<vmem>>, vector<128x384xf32>
    %c0_162 = arith.constant 0 : index
    %c0_163 = arith.constant 0 : index
    %529 = vector.load %arg14[%c0_162, %c0_163] : memref<128x384xf32, #tpu.memory_space<vmem>>, vector<128x384xf32>
    %c0_164 = arith.constant 0 : index
    %c0_165 = arith.constant 0 : index
    %530 = vector.load %arg12[%c0_164, %c0_165] : memref<1x384xf32, #tpu.memory_space<vmem>>, vector<1x384xf32>
    %c0_166 = arith.constant 0 : index
    %c0_167 = arith.constant 0 : index
    %531 = vector.load %arg16[%c0_166, %c0_167] : memref<1x384xf32, #tpu.memory_space<vmem>>, vector<1x384xf32>
    %cst_168 = arith.constant 0.000000e+00 : f32
    %532 = vector.broadcast %cst_168 : f32 to vector<8x128xf32>
    %cst_169 = arith.constant 0.000000e+00 : f32
    %533 = vector.broadcast %cst_169 : f32 to vector<8x128xf32>
    %cst_170 = arith.constant dense<0.000000e+00> : vector<8x384xf32>
    %534 = tpu.matmul %532, %528, %cst_170 {dimension_numbers = #tpu.dot_dimension_numbers<[1], [0], [0], [1], [0, 0, 1, 1], [], []>} : vector<8x128xf32>, vector<128x384xf32>, vector<8x384xf32> -> vector<8x384xf32>
    %535 = vector.broadcast %530 : vector<1x384xf32> to vector<8x384xf32>
    %536 = arith.addf %534, %535 : vector<8x384xf32>
    %cst_171 = arith.constant dense<0.000000e+00> : vector<8x384xf32>
    %537 = tpu.matmul %533, %529, %cst_171 {dimension_numbers = #tpu.dot_dimension_numbers<[1], [0], [0], [1], [0, 0, 1, 1], [], []>} : vector<8x128xf32>, vector<128x384xf32>, vector<8x384xf32> -> vector<8x384xf32>
    %538 = vector.broadcast %531 : vector<1x384xf32> to vector<8x384xf32>
    %539 = arith.addf %537, %538 : vector<8x384xf32>
    %c0_172 = arith.constant 0 : index
    %c0_173 = arith.constant 0 : index
    %540 = vector.load %arg21[%c0_172, %c0_173] : memref<64x384xf32, #tpu.memory_space<vmem>>, vector<8x384xf32>
    %c56_174 = arith.constant 56 : index
    %c0_175 = arith.constant 0 : index
    %541 = vector.load %arg22[%c56_174, %c0_175] : memref<64x384xf32, #tpu.memory_space<vmem>>, vector<8x384xf32>
    %542 = vector.extract_strided_slice %540 {offsets = [0, 0], sizes = [8, 128], strides = [1, 1]} : vector<8x384xf32> to vector<8x128xf32>
    %543 = vector.extract_strided_slice %536 {offsets = [0, 0], sizes = [8, 128], strides = [1, 1]} : vector<8x384xf32> to vector<8x128xf32>
    %544 = arith.addf %542, %543 : vector<8x128xf32>
    %545 = arith.negf %544 : vector<8x128xf32>
    %546 = math.exp %545 : vector<8x128xf32>
    %cst_176 = arith.constant 1.000000e+00 : f32
    %547 = vector.broadcast %cst_176 : f32 to vector<8x128xf32>
    %548 = arith.addf %547, %546 : vector<8x128xf32>
    %549 = arith.divf %547, %548 : vector<8x128xf32>
    %550 = vector.extract_strided_slice %540 {offsets = [0, 128], sizes = [8, 128], strides = [1, 1]} : vector<8x384xf32> to vector<8x128xf32>
    %551 = vector.extract_strided_slice %536 {offsets = [0, 128], sizes = [8, 128], strides = [1, 1]} : vector<8x384xf32> to vector<8x128xf32>
    %552 = arith.addf %550, %551 : vector<8x128xf32>
    %553 = arith.negf %552 : vector<8x128xf32>
    %554 = math.exp %553 : vector<8x128xf32>
    %cst_177 = arith.constant 1.000000e+00 : f32
    %555 = vector.broadcast %cst_177 : f32 to vector<8x128xf32>
    %556 = arith.addf %555, %554 : vector<8x128xf32>
    %557 = arith.divf %555, %556 : vector<8x128xf32>
    %558 = vector.extract_strided_slice %540 {offsets = [0, 256], sizes = [8, 128], strides = [1, 1]} : vector<8x384xf32> to vector<8x128xf32>
    %559 = vector.extract_strided_slice %536 {offsets = [0, 256], sizes = [8, 128], strides = [1, 1]} : vector<8x384xf32> to vector<8x128xf32>
    %560 = arith.mulf %549, %559 : vector<8x128xf32>
    %561 = arith.addf %558, %560 : vector<8x128xf32>
    %562 = math.tanh %561 : vector<8x128xf32>
    %cst_178 = arith.constant 1.000000e+00 : f32
    %563 = vector.broadcast %cst_178 : f32 to vector<8x128xf32>
    %564 = arith.subf %563, %557 : vector<8x128xf32>
    %565 = arith.mulf %564, %562 : vector<8x128xf32>
    %566 = arith.mulf %557, %532 : vector<8x128xf32>
    %567 = arith.addf %565, %566 : vector<8x128xf32>
    %568 = vector.extract_strided_slice %541 {offsets = [0, 0], sizes = [8, 128], strides = [1, 1]} : vector<8x384xf32> to vector<8x128xf32>
    %569 = vector.extract_strided_slice %539 {offsets = [0, 0], sizes = [8, 128], strides = [1, 1]} : vector<8x384xf32> to vector<8x128xf32>
    %570 = arith.addf %568, %569 : vector<8x128xf32>
    %571 = arith.negf %570 : vector<8x128xf32>
    %572 = math.exp %571 : vector<8x128xf32>
    %cst_179 = arith.constant 1.000000e+00 : f32
    %573 = vector.broadcast %cst_179 : f32 to vector<8x128xf32>
    %574 = arith.addf %573, %572 : vector<8x128xf32>
    %575 = arith.divf %573, %574 : vector<8x128xf32>
    %576 = vector.extract_strided_slice %541 {offsets = [0, 128], sizes = [8, 128], strides = [1, 1]} : vector<8x384xf32> to vector<8x128xf32>
    %577 = vector.extract_strided_slice %539 {offsets = [0, 128], sizes = [8, 128], strides = [1, 1]} : vector<8x384xf32> to vector<8x128xf32>
    %578 = arith.addf %576, %577 : vector<8x128xf32>
    %579 = arith.negf %578 : vector<8x128xf32>
    %580 = math.exp %579 : vector<8x128xf32>
    %cst_180 = arith.constant 1.000000e+00 : f32
    %581 = vector.broadcast %cst_180 : f32 to vector<8x128xf32>
    %582 = arith.addf %581, %580 : vector<8x128xf32>
    %583 = arith.divf %581, %582 : vector<8x128xf32>
    %584 = vector.extract_strided_slice %541 {offsets = [0, 256], sizes = [8, 128], strides = [1, 1]} : vector<8x384xf32> to vector<8x128xf32>
    %585 = vector.extract_strided_slice %539 {offsets = [0, 256], sizes = [8, 128], strides = [1, 1]} : vector<8x384xf32> to vector<8x128xf32>
    %586 = arith.mulf %575, %585 : vector<8x128xf32>
    %587 = arith.addf %584, %586 : vector<8x128xf32>
    %588 = math.tanh %587 : vector<8x128xf32>
    %cst_181 = arith.constant 1.000000e+00 : f32
    %589 = vector.broadcast %cst_181 : f32 to vector<8x128xf32>
    %590 = arith.subf %589, %583 : vector<8x128xf32>
    %591 = arith.mulf %590, %588 : vector<8x128xf32>
    %592 = arith.mulf %583, %533 : vector<8x128xf32>
    %593 = arith.addf %591, %592 : vector<8x128xf32>
    %cst_182 = arith.constant dense<0.000000e+00> : vector<8x384xf32>
    %594 = tpu.matmul %567, %528, %cst_182 {dimension_numbers = #tpu.dot_dimension_numbers<[1], [0], [0], [1], [0, 0, 1, 1], [], []>} : vector<8x128xf32>, vector<128x384xf32>, vector<8x384xf32> -> vector<8x384xf32>
    %595 = vector.broadcast %530 : vector<1x384xf32> to vector<8x384xf32>
    %596 = arith.addf %594, %595 : vector<8x384xf32>
    %c8_183 = arith.constant 8 : index
    %c0_184 = arith.constant 0 : index
    %597 = vector.load %arg21[%c8_183, %c0_184] : memref<64x384xf32, #tpu.memory_space<vmem>>, vector<8x384xf32>
    %598 = vector.extract_strided_slice %597 {offsets = [0, 0], sizes = [8, 128], strides = [1, 1]} : vector<8x384xf32> to vector<8x128xf32>
    %599 = vector.extract_strided_slice %596 {offsets = [0, 0], sizes = [8, 128], strides = [1, 1]} : vector<8x384xf32> to vector<8x128xf32>
    %600 = arith.addf %598, %599 : vector<8x128xf32>
    %601 = arith.negf %600 : vector<8x128xf32>
    %602 = math.exp %601 : vector<8x128xf32>
    %cst_185 = arith.constant 1.000000e+00 : f32
    %603 = vector.broadcast %cst_185 : f32 to vector<8x128xf32>
    %604 = arith.addf %603, %602 : vector<8x128xf32>
    %605 = arith.divf %603, %604 : vector<8x128xf32>
    %606 = vector.extract_strided_slice %597 {offsets = [0, 128], sizes = [8, 128], strides = [1, 1]} : vector<8x384xf32> to vector<8x128xf32>
    %607 = vector.extract_strided_slice %596 {offsets = [0, 128], sizes = [8, 128], strides = [1, 1]} : vector<8x384xf32> to vector<8x128xf32>
    %608 = arith.addf %606, %607 : vector<8x128xf32>
    %609 = arith.negf %608 : vector<8x128xf32>
    %610 = math.exp %609 : vector<8x128xf32>
    %cst_186 = arith.constant 1.000000e+00 : f32
    %611 = vector.broadcast %cst_186 : f32 to vector<8x128xf32>
    %612 = arith.addf %611, %610 : vector<8x128xf32>
    %613 = arith.divf %611, %612 : vector<8x128xf32>
    %614 = vector.extract_strided_slice %597 {offsets = [0, 256], sizes = [8, 128], strides = [1, 1]} : vector<8x384xf32> to vector<8x128xf32>
    %615 = vector.extract_strided_slice %596 {offsets = [0, 256], sizes = [8, 128], strides = [1, 1]} : vector<8x384xf32> to vector<8x128xf32>
    %616 = arith.mulf %605, %615 : vector<8x128xf32>
    %617 = arith.addf %614, %616 : vector<8x128xf32>
    %618 = math.tanh %617 : vector<8x128xf32>
    %cst_187 = arith.constant 1.000000e+00 : f32
    %619 = vector.broadcast %cst_187 : f32 to vector<8x128xf32>
    %620 = arith.subf %619, %613 : vector<8x128xf32>
    %621 = arith.mulf %620, %618 : vector<8x128xf32>
    %622 = arith.mulf %613, %567 : vector<8x128xf32>
    %623 = arith.addf %621, %622 : vector<8x128xf32>
    %cst_188 = arith.constant dense<0.000000e+00> : vector<8x384xf32>
    %624 = tpu.matmul %623, %528, %cst_188 {dimension_numbers = #tpu.dot_dimension_numbers<[1], [0], [0], [1], [0, 0, 1, 1], [], []>} : vector<8x128xf32>, vector<128x384xf32>, vector<8x384xf32> -> vector<8x384xf32>
    %625 = vector.broadcast %530 : vector<1x384xf32> to vector<8x384xf32>
    %626 = arith.addf %624, %625 : vector<8x384xf32>
    %c16_189 = arith.constant 16 : index
    %c0_190 = arith.constant 0 : index
    %627 = vector.load %arg21[%c16_189, %c0_190] : memref<64x384xf32, #tpu.memory_space<vmem>>, vector<8x384xf32>
    %628 = vector.extract_strided_slice %627 {offsets = [0, 0], sizes = [8, 128], strides = [1, 1]} : vector<8x384xf32> to vector<8x128xf32>
    %629 = vector.extract_strided_slice %626 {offsets = [0, 0], sizes = [8, 128], strides = [1, 1]} : vector<8x384xf32> to vector<8x128xf32>
    %630 = arith.addf %628, %629 : vector<8x128xf32>
    %631 = arith.negf %630 : vector<8x128xf32>
    %632 = math.exp %631 : vector<8x128xf32>
    %cst_191 = arith.constant 1.000000e+00 : f32
    %633 = vector.broadcast %cst_191 : f32 to vector<8x128xf32>
    %634 = arith.addf %633, %632 : vector<8x128xf32>
    %635 = arith.divf %633, %634 : vector<8x128xf32>
    %636 = vector.extract_strided_slice %627 {offsets = [0, 128], sizes = [8, 128], strides = [1, 1]} : vector<8x384xf32> to vector<8x128xf32>
    %637 = vector.extract_strided_slice %626 {offsets = [0, 128], sizes = [8, 128], strides = [1, 1]} : vector<8x384xf32> to vector<8x128xf32>
    %638 = arith.addf %636, %637 : vector<8x128xf32>
    %639 = arith.negf %638 : vector<8x128xf32>
    %640 = math.exp %639 : vector<8x128xf32>
    %cst_192 = arith.constant 1.000000e+00 : f32
    %641 = vector.broadcast %cst_192 : f32 to vector<8x128xf32>
    %642 = arith.addf %641, %640 : vector<8x128xf32>
    %643 = arith.divf %641, %642 : vector<8x128xf32>
    %644 = vector.extract_strided_slice %627 {offsets = [0, 256], sizes = [8, 128], strides = [1, 1]} : vector<8x384xf32> to vector<8x128xf32>
    %645 = vector.extract_strided_slice %626 {offsets = [0, 256], sizes = [8, 128], strides = [1, 1]} : vector<8x384xf32> to vector<8x128xf32>
    %646 = arith.mulf %635, %645 : vector<8x128xf32>
    %647 = arith.addf %644, %646 : vector<8x128xf32>
    %648 = math.tanh %647 : vector<8x128xf32>
    %cst_193 = arith.constant 1.000000e+00 : f32
    %649 = vector.broadcast %cst_193 : f32 to vector<8x128xf32>
    %650 = arith.subf %649, %643 : vector<8x128xf32>
    %651 = arith.mulf %650, %648 : vector<8x128xf32>
    %652 = arith.mulf %643, %623 : vector<8x128xf32>
    %653 = arith.addf %651, %652 : vector<8x128xf32>
    %cst_194 = arith.constant dense<0.000000e+00> : vector<8x384xf32>
    %654 = tpu.matmul %653, %528, %cst_194 {dimension_numbers = #tpu.dot_dimension_numbers<[1], [0], [0], [1], [0, 0, 1, 1], [], []>} : vector<8x128xf32>, vector<128x384xf32>, vector<8x384xf32> -> vector<8x384xf32>
    %655 = vector.broadcast %530 : vector<1x384xf32> to vector<8x384xf32>
    %656 = arith.addf %654, %655 : vector<8x384xf32>
    %c24_195 = arith.constant 24 : index
    %c0_196 = arith.constant 0 : index
    %657 = vector.load %arg21[%c24_195, %c0_196] : memref<64x384xf32, #tpu.memory_space<vmem>>, vector<8x384xf32>
    %658 = vector.extract_strided_slice %657 {offsets = [0, 0], sizes = [8, 128], strides = [1, 1]} : vector<8x384xf32> to vector<8x128xf32>
    %659 = vector.extract_strided_slice %656 {offsets = [0, 0], sizes = [8, 128], strides = [1, 1]} : vector<8x384xf32> to vector<8x128xf32>
    %660 = arith.addf %658, %659 : vector<8x128xf32>
    %661 = arith.negf %660 : vector<8x128xf32>
    %662 = math.exp %661 : vector<8x128xf32>
    %cst_197 = arith.constant 1.000000e+00 : f32
    %663 = vector.broadcast %cst_197 : f32 to vector<8x128xf32>
    %664 = arith.addf %663, %662 : vector<8x128xf32>
    %665 = arith.divf %663, %664 : vector<8x128xf32>
    %666 = vector.extract_strided_slice %657 {offsets = [0, 128], sizes = [8, 128], strides = [1, 1]} : vector<8x384xf32> to vector<8x128xf32>
    %667 = vector.extract_strided_slice %656 {offsets = [0, 128], sizes = [8, 128], strides = [1, 1]} : vector<8x384xf32> to vector<8x128xf32>
    %668 = arith.addf %666, %667 : vector<8x128xf32>
    %669 = arith.negf %668 : vector<8x128xf32>
    %670 = math.exp %669 : vector<8x128xf32>
    %cst_198 = arith.constant 1.000000e+00 : f32
    %671 = vector.broadcast %cst_198 : f32 to vector<8x128xf32>
    %672 = arith.addf %671, %670 : vector<8x128xf32>
    %673 = arith.divf %671, %672 : vector<8x128xf32>
    %674 = vector.extract_strided_slice %657 {offsets = [0, 256], sizes = [8, 128], strides = [1, 1]} : vector<8x384xf32> to vector<8x128xf32>
    %675 = vector.extract_strided_slice %656 {offsets = [0, 256], sizes = [8, 128], strides = [1, 1]} : vector<8x384xf32> to vector<8x128xf32>
    %676 = arith.mulf %665, %675 : vector<8x128xf32>
    %677 = arith.addf %674, %676 : vector<8x128xf32>
    %678 = math.tanh %677 : vector<8x128xf32>
    %cst_199 = arith.constant 1.000000e+00 : f32
    %679 = vector.broadcast %cst_199 : f32 to vector<8x128xf32>
    %680 = arith.subf %679, %673 : vector<8x128xf32>
    %681 = arith.mulf %680, %678 : vector<8x128xf32>
    %682 = arith.mulf %673, %653 : vector<8x128xf32>
    %683 = arith.addf %681, %682 : vector<8x128xf32>
    %cst_200 = arith.constant dense<0.000000e+00> : vector<8x384xf32>
    %684 = tpu.matmul %683, %528, %cst_200 {dimension_numbers = #tpu.dot_dimension_numbers<[1], [0], [0], [1], [0, 0, 1, 1], [], []>} : vector<8x128xf32>, vector<128x384xf32>, vector<8x384xf32> -> vector<8x384xf32>
    %685 = vector.broadcast %530 : vector<1x384xf32> to vector<8x384xf32>
    %686 = arith.addf %684, %685 : vector<8x384xf32>
    %c32_201 = arith.constant 32 : index
    %c0_202 = arith.constant 0 : index
    %687 = vector.load %arg21[%c32_201, %c0_202] : memref<64x384xf32, #tpu.memory_space<vmem>>, vector<8x384xf32>
    %688 = vector.extract_strided_slice %687 {offsets = [0, 0], sizes = [8, 128], strides = [1, 1]} : vector<8x384xf32> to vector<8x128xf32>
    %689 = vector.extract_strided_slice %686 {offsets = [0, 0], sizes = [8, 128], strides = [1, 1]} : vector<8x384xf32> to vector<8x128xf32>
    %690 = arith.addf %688, %689 : vector<8x128xf32>
    %691 = arith.negf %690 : vector<8x128xf32>
    %692 = math.exp %691 : vector<8x128xf32>
    %cst_203 = arith.constant 1.000000e+00 : f32
    %693 = vector.broadcast %cst_203 : f32 to vector<8x128xf32>
    %694 = arith.addf %693, %692 : vector<8x128xf32>
    %695 = arith.divf %693, %694 : vector<8x128xf32>
    %696 = vector.extract_strided_slice %687 {offsets = [0, 128], sizes = [8, 128], strides = [1, 1]} : vector<8x384xf32> to vector<8x128xf32>
    %697 = vector.extract_strided_slice %686 {offsets = [0, 128], sizes = [8, 128], strides = [1, 1]} : vector<8x384xf32> to vector<8x128xf32>
    %698 = arith.addf %696, %697 : vector<8x128xf32>
    %699 = arith.negf %698 : vector<8x128xf32>
    %700 = math.exp %699 : vector<8x128xf32>
    %cst_204 = arith.constant 1.000000e+00 : f32
    %701 = vector.broadcast %cst_204 : f32 to vector<8x128xf32>
    %702 = arith.addf %701, %700 : vector<8x128xf32>
    %703 = arith.divf %701, %702 : vector<8x128xf32>
    %704 = vector.extract_strided_slice %687 {offsets = [0, 256], sizes = [8, 128], strides = [1, 1]} : vector<8x384xf32> to vector<8x128xf32>
    %705 = vector.extract_strided_slice %686 {offsets = [0, 256], sizes = [8, 128], strides = [1, 1]} : vector<8x384xf32> to vector<8x128xf32>
    %706 = arith.mulf %695, %705 : vector<8x128xf32>
    %707 = arith.addf %704, %706 : vector<8x128xf32>
    %708 = math.tanh %707 : vector<8x128xf32>
    %cst_205 = arith.constant 1.000000e+00 : f32
    %709 = vector.broadcast %cst_205 : f32 to vector<8x128xf32>
    %710 = arith.subf %709, %703 : vector<8x128xf32>
    %711 = arith.mulf %710, %708 : vector<8x128xf32>
    %712 = arith.mulf %703, %683 : vector<8x128xf32>
    %713 = arith.addf %711, %712 : vector<8x128xf32>
    %cst_206 = arith.constant dense<0.000000e+00> : vector<8x384xf32>
    %714 = tpu.matmul %713, %528, %cst_206 {dimension_numbers = #tpu.dot_dimension_numbers<[1], [0], [0], [1], [0, 0, 1, 1], [], []>} : vector<8x128xf32>, vector<128x384xf32>, vector<8x384xf32> -> vector<8x384xf32>
    %715 = vector.broadcast %530 : vector<1x384xf32> to vector<8x384xf32>
    %716 = arith.addf %714, %715 : vector<8x384xf32>
    %c40_207 = arith.constant 40 : index
    %c0_208 = arith.constant 0 : index
    %717 = vector.load %arg21[%c40_207, %c0_208] : memref<64x384xf32, #tpu.memory_space<vmem>>, vector<8x384xf32>
    %718 = vector.extract_strided_slice %717 {offsets = [0, 0], sizes = [8, 128], strides = [1, 1]} : vector<8x384xf32> to vector<8x128xf32>
    %719 = vector.extract_strided_slice %716 {offsets = [0, 0], sizes = [8, 128], strides = [1, 1]} : vector<8x384xf32> to vector<8x128xf32>
    %720 = arith.addf %718, %719 : vector<8x128xf32>
    %721 = arith.negf %720 : vector<8x128xf32>
    %722 = math.exp %721 : vector<8x128xf32>
    %cst_209 = arith.constant 1.000000e+00 : f32
    %723 = vector.broadcast %cst_209 : f32 to vector<8x128xf32>
    %724 = arith.addf %723, %722 : vector<8x128xf32>
    %725 = arith.divf %723, %724 : vector<8x128xf32>
    %726 = vector.extract_strided_slice %717 {offsets = [0, 128], sizes = [8, 128], strides = [1, 1]} : vector<8x384xf32> to vector<8x128xf32>
    %727 = vector.extract_strided_slice %716 {offsets = [0, 128], sizes = [8, 128], strides = [1, 1]} : vector<8x384xf32> to vector<8x128xf32>
    %728 = arith.addf %726, %727 : vector<8x128xf32>
    %729 = arith.negf %728 : vector<8x128xf32>
    %730 = math.exp %729 : vector<8x128xf32>
    %cst_210 = arith.constant 1.000000e+00 : f32
    %731 = vector.broadcast %cst_210 : f32 to vector<8x128xf32>
    %732 = arith.addf %731, %730 : vector<8x128xf32>
    %733 = arith.divf %731, %732 : vector<8x128xf32>
    %734 = vector.extract_strided_slice %717 {offsets = [0, 256], sizes = [8, 128], strides = [1, 1]} : vector<8x384xf32> to vector<8x128xf32>
    %735 = vector.extract_strided_slice %716 {offsets = [0, 256], sizes = [8, 128], strides = [1, 1]} : vector<8x384xf32> to vector<8x128xf32>
    %736 = arith.mulf %725, %735 : vector<8x128xf32>
    %737 = arith.addf %734, %736 : vector<8x128xf32>
    %738 = math.tanh %737 : vector<8x128xf32>
    %cst_211 = arith.constant 1.000000e+00 : f32
    %739 = vector.broadcast %cst_211 : f32 to vector<8x128xf32>
    %740 = arith.subf %739, %733 : vector<8x128xf32>
    %741 = arith.mulf %740, %738 : vector<8x128xf32>
    %742 = arith.mulf %733, %713 : vector<8x128xf32>
    %743 = arith.addf %741, %742 : vector<8x128xf32>
    %cst_212 = arith.constant dense<0.000000e+00> : vector<8x384xf32>
    %744 = tpu.matmul %743, %528, %cst_212 {dimension_numbers = #tpu.dot_dimension_numbers<[1], [0], [0], [1], [0, 0, 1, 1], [], []>} : vector<8x128xf32>, vector<128x384xf32>, vector<8x384xf32> -> vector<8x384xf32>
    %745 = vector.broadcast %530 : vector<1x384xf32> to vector<8x384xf32>
    %746 = arith.addf %744, %745 : vector<8x384xf32>
    %c48_213 = arith.constant 48 : index
    %c0_214 = arith.constant 0 : index
    %747 = vector.load %arg21[%c48_213, %c0_214] : memref<64x384xf32, #tpu.memory_space<vmem>>, vector<8x384xf32>
    %748 = vector.extract_strided_slice %747 {offsets = [0, 0], sizes = [8, 128], strides = [1, 1]} : vector<8x384xf32> to vector<8x128xf32>
    %749 = vector.extract_strided_slice %746 {offsets = [0, 0], sizes = [8, 128], strides = [1, 1]} : vector<8x384xf32> to vector<8x128xf32>
    %750 = arith.addf %748, %749 : vector<8x128xf32>
    %751 = arith.negf %750 : vector<8x128xf32>
    %752 = math.exp %751 : vector<8x128xf32>
    %cst_215 = arith.constant 1.000000e+00 : f32
    %753 = vector.broadcast %cst_215 : f32 to vector<8x128xf32>
    %754 = arith.addf %753, %752 : vector<8x128xf32>
    %755 = arith.divf %753, %754 : vector<8x128xf32>
    %756 = vector.extract_strided_slice %747 {offsets = [0, 128], sizes = [8, 128], strides = [1, 1]} : vector<8x384xf32> to vector<8x128xf32>
    %757 = vector.extract_strided_slice %746 {offsets = [0, 128], sizes = [8, 128], strides = [1, 1]} : vector<8x384xf32> to vector<8x128xf32>
    %758 = arith.addf %756, %757 : vector<8x128xf32>
    %759 = arith.negf %758 : vector<8x128xf32>
    %760 = math.exp %759 : vector<8x128xf32>
    %cst_216 = arith.constant 1.000000e+00 : f32
    %761 = vector.broadcast %cst_216 : f32 to vector<8x128xf32>
    %762 = arith.addf %761, %760 : vector<8x128xf32>
    %763 = arith.divf %761, %762 : vector<8x128xf32>
    %764 = vector.extract_strided_slice %747 {offsets = [0, 256], sizes = [8, 128], strides = [1, 1]} : vector<8x384xf32> to vector<8x128xf32>
    %765 = vector.extract_strided_slice %746 {offsets = [0, 256], sizes = [8, 128], strides = [1, 1]} : vector<8x384xf32> to vector<8x128xf32>
    %766 = arith.mulf %755, %765 : vector<8x128xf32>
    %767 = arith.addf %764, %766 : vector<8x128xf32>
    %768 = math.tanh %767 : vector<8x128xf32>
    %cst_217 = arith.constant 1.000000e+00 : f32
    %769 = vector.broadcast %cst_217 : f32 to vector<8x128xf32>
    %770 = arith.subf %769, %763 : vector<8x128xf32>
    %771 = arith.mulf %770, %768 : vector<8x128xf32>
    %772 = arith.mulf %763, %743 : vector<8x128xf32>
    %773 = arith.addf %771, %772 : vector<8x128xf32>
    %cst_218 = arith.constant dense<0.000000e+00> : vector<8x384xf32>
    %774 = tpu.matmul %773, %528, %cst_218 {dimension_numbers = #tpu.dot_dimension_numbers<[1], [0], [0], [1], [0, 0, 1, 1], [], []>} : vector<8x128xf32>, vector<128x384xf32>, vector<8x384xf32> -> vector<8x384xf32>
    %775 = vector.broadcast %530 : vector<1x384xf32> to vector<8x384xf32>
    %776 = arith.addf %774, %775 : vector<8x384xf32>
    %c56_219 = arith.constant 56 : index
    %c0_220 = arith.constant 0 : index
    %777 = vector.load %arg21[%c56_219, %c0_220] : memref<64x384xf32, #tpu.memory_space<vmem>>, vector<8x384xf32>
    %778 = vector.extract_strided_slice %777 {offsets = [0, 0], sizes = [8, 128], strides = [1, 1]} : vector<8x384xf32> to vector<8x128xf32>
    %779 = vector.extract_strided_slice %776 {offsets = [0, 0], sizes = [8, 128], strides = [1, 1]} : vector<8x384xf32> to vector<8x128xf32>
    %780 = arith.addf %778, %779 : vector<8x128xf32>
    %781 = arith.negf %780 : vector<8x128xf32>
    %782 = math.exp %781 : vector<8x128xf32>
    %cst_221 = arith.constant 1.000000e+00 : f32
    %783 = vector.broadcast %cst_221 : f32 to vector<8x128xf32>
    %784 = arith.addf %783, %782 : vector<8x128xf32>
    %785 = arith.divf %783, %784 : vector<8x128xf32>
    %786 = vector.extract_strided_slice %777 {offsets = [0, 128], sizes = [8, 128], strides = [1, 1]} : vector<8x384xf32> to vector<8x128xf32>
    %787 = vector.extract_strided_slice %776 {offsets = [0, 128], sizes = [8, 128], strides = [1, 1]} : vector<8x384xf32> to vector<8x128xf32>
    %788 = arith.addf %786, %787 : vector<8x128xf32>
    %789 = arith.negf %788 : vector<8x128xf32>
    %790 = math.exp %789 : vector<8x128xf32>
    %cst_222 = arith.constant 1.000000e+00 : f32
    %791 = vector.broadcast %cst_222 : f32 to vector<8x128xf32>
    %792 = arith.addf %791, %790 : vector<8x128xf32>
    %793 = arith.divf %791, %792 : vector<8x128xf32>
    %794 = vector.extract_strided_slice %777 {offsets = [0, 256], sizes = [8, 128], strides = [1, 1]} : vector<8x384xf32> to vector<8x128xf32>
    %795 = vector.extract_strided_slice %776 {offsets = [0, 256], sizes = [8, 128], strides = [1, 1]} : vector<8x384xf32> to vector<8x128xf32>
    %796 = arith.mulf %785, %795 : vector<8x128xf32>
    %797 = arith.addf %794, %796 : vector<8x128xf32>
    %798 = math.tanh %797 : vector<8x128xf32>
    %cst_223 = arith.constant 1.000000e+00 : f32
    %799 = vector.broadcast %cst_223 : f32 to vector<8x128xf32>
    %800 = arith.subf %799, %793 : vector<8x128xf32>
    %801 = arith.mulf %800, %798 : vector<8x128xf32>
    %802 = arith.mulf %793, %773 : vector<8x128xf32>
    %803 = arith.addf %801, %802 : vector<8x128xf32>
    %c0_224 = arith.constant 0 : index
    %c0_225 = arith.constant 0 : index
    %804 = vector.load %arg17[%c0_224, %c0_225] : memref<256x128xf32, #tpu.memory_space<vmem>>, vector<128x128xf32>
    %cst_226 = arith.constant dense<0.000000e+00> : vector<8x128xf32>
    %805 = tpu.matmul %803, %804, %cst_226 {dimension_numbers = #tpu.dot_dimension_numbers<[1], [0], [0], [1], [0, 0, 1, 1], [], []>} : vector<8x128xf32>, vector<128x128xf32>, vector<8x128xf32> -> vector<8x128xf32>
    %c128_227 = arith.constant 128 : index
    %c0_228 = arith.constant 0 : index
    %806 = vector.load %arg17[%c128_227, %c0_228] : memref<256x128xf32, #tpu.memory_space<vmem>>, vector<128x128xf32>
    %cst_229 = arith.constant dense<0.000000e+00> : vector<8x128xf32>
    %807 = tpu.matmul %593, %806, %cst_229 {dimension_numbers = #tpu.dot_dimension_numbers<[1], [0], [0], [1], [0, 0, 1, 1], [], []>} : vector<8x128xf32>, vector<128x128xf32>, vector<8x128xf32> -> vector<8x128xf32>
    %808 = arith.addf %805, %807 : vector<8x128xf32>
    %c0_230 = arith.constant 0 : index
    %c0_231 = arith.constant 0 : index
    %809 = vector.load %arg18[%c0_230, %c0_231] : memref<1x128xf32, #tpu.memory_space<vmem>>, vector<1x128xf32>
    %810 = vector.broadcast %809 : vector<1x128xf32> to vector<8x128xf32>
    %811 = arith.addf %808, %810 : vector<8x128xf32>
    %c0_232 = arith.constant 0 : index
    %c0_233 = arith.constant 0 : index
    %812 = vector.load %arg19[%c0_232, %c0_233] : memref<8x128xf32, #tpu.memory_space<vmem>>, vector<8x128xf32>
    tpu.vector_store %arg19[%c0_232, %c0_233], %811 {strides = array<i32>} : memref<8x128xf32, #tpu.memory_space<vmem>>, vector<8x128xf32>,
    return
  }
}

</mosaic_0001>

<llo_original>
// kernel: rnn_forward.1
$region0: #{rnn_forward.1}
  #allocation0 [shape = 'u32[]', space=smem, size = 0x4, offset = 0x4, fixed_abs, tag = 'smem constant byte address 0x4 - core index']
  #allocation1 [shape = 'u32[72,128]{1,0:T(1,128)}', space=vmem, size = 0x9000, scoped, tag = 'internal scratch']
  #allocation2 [shape = 'f32[64,256]{1,0:T(8,128)}', space=vmem, size = 0x10000, scoped, tag = 'scratch operand']
  #allocation3 [shape = 'f32[64,384]{1,0:T(8,128)}', space=vmem, size = 0x18000, scoped, tag = 'scratch operand']
  #allocation4 [shape = 'f32[64,384]{1,0:T(8,128)}', space=vmem, size = 0x18000, scoped, tag = 'scratch operand']
  %s0 = inlined_call_operand.vmem [shape: f32[64,36], index: 0, kind: input, shape index: {}]
  %s1 = inlined_call_operand.hbm [shape: f32[36,384], index: 1, kind: input, shape index: {}]
  %s2 = inlined_call_operand.hbm [shape: f32[128,384], index: 2, kind: input, shape index: {}]
  %s3 = inlined_call_operand.vmem [shape: f32[1,384], index: 3, kind: input, shape index: {}]
  %s4 = inlined_call_operand.vmem [shape: f32[1,384], index: 4, kind: input, shape index: {}]
  %s5 = inlined_call_operand.hbm [shape: f32[36,384], index: 5, kind: input, shape index: {}]
  %s6 = inlined_call_operand.hbm [shape: f32[128,384], index: 6, kind: input, shape index: {}]
  %s7 = inlined_call_operand.vmem [shape: f32[1,384], index: 7, kind: input, shape index: {}]
  %s8 = inlined_call_operand.vmem [shape: f32[1,384], index: 8, kind: input, shape index: {}]
  %s9 = inlined_call_operand.hbm [shape: f32[256,384], index: 9, kind: input, shape index: {}]
  %s10 = inlined_call_operand.hbm [shape: f32[128,384], index: 10, kind: input, shape index: {}]
  %s11 = inlined_call_operand.vmem [shape: f32[1,384], index: 11, kind: input, shape index: {}]
  %s12 = inlined_call_operand.vmem [shape: f32[1,384], index: 12, kind: input, shape index: {}]
  %s13 = inlined_call_operand.hbm [shape: f32[256,384], index: 13, kind: input, shape index: {}]
  %s14 = inlined_call_operand.hbm [shape: f32[128,384], index: 14, kind: input, shape index: {}]
  %s15 = inlined_call_operand.vmem [shape: f32[1,384], index: 15, kind: input, shape index: {}]
  %s16 = inlined_call_operand.vmem [shape: f32[1,384], index: 16, kind: input, shape index: {}]
  %s17 = inlined_call_operand.hbm [shape: f32[256,128], index: 17, kind: input, shape index: {}]
  %s18 = inlined_call_operand.vmem [shape: f32[1,128], index: 18, kind: input, shape index: {}]
  %s19 = inlined_call_operand.vmem [shape: f32[8,128], index: 19, kind: output, shape index: {}]
  %s20 = sld [smem:[#allocation0]]
  $region122: #{rnn_forward.1} parent=0
    _
  %s22 = ssub.s32 1, %s20
  %s23 = scalar_select 0, %s22, %s20
  $region1: #{rnn_forward.1} parent=0
    #allocation5 [shape = 'u8[61440]{0}', space=vmem, size = 0xf000, scoped, tag = 'input window, operand 1, single buffered']
    #allocation6 [shape = 's32[1]{0}', space=sflag, size = 0x4, scoped, tag = 'scoped memory for rnn_forward.1']
    #allocation7 [shape = 'u8[196608]{0}', space=vmem, size = 0x30000, scoped, tag = 'input window, operand 2, single buffered']
    #allocation8 [shape = 's32[1]{0}', space=sflag, size = 0x4, scoped, tag = 'scoped memory for rnn_forward.1']
    #allocation9 [shape = 'u8[61440]{0}', space=vmem, size = 0xf000, scoped, tag = 'input window, operand 5, single buffered']
    #allocation10 [shape = 'u8[196608]{0}', space=vmem, size = 0x30000, scoped, tag = 'input window, operand 6, single buffered']
    #allocation11 [shape = 's32[1]{0}', space=sflag, size = 0x4, scoped, tag = 'scoped memory for rnn_forward.1']
    #allocation12 [shape = 'u8[393216]{0}', space=vmem, size = 0x60000, scoped, tag = 'input window, operand 9, single buffered']
    #allocation13 [shape = 'u8[196608]{0}', space=vmem, size = 0x30000, scoped, tag = 'input window, operand 10, single buffered']
    #allocation14 [shape = 's32[1]{0}', space=sflag, size = 0x4, scoped, tag = 'scoped memory for rnn_forward.1']
    #allocation15 [shape = 'u8[393216]{0}', space=vmem, size = 0x60000, scoped, tag = 'input window, operand 13, single buffered']
    #allocation16 [shape = 'u8[196608]{0}', space=vmem, size = 0x30000, scoped, tag = 'input window, operand 14, single buffered']
    #allocation17 [shape = 's32[1]{0}', space=sflag, size = 0x4, scoped, tag = 'scoped memory for rnn_forward.1']
    #allocation18 [shape = 'u8[131072]{0}', space=vmem, size = 0x20000, scoped, tag = 'input window, operand 17, single buffered']
    %24 = vsyncpa [#allocation6], 0
    %25 = vsyncpa [#allocation8], 0
    %26 = vsyncpa [#allocation11], 0
    %27 = vsyncpa [#allocation14], 0
    %28 = vsyncpa [#allocation17], 0
    // Predicated region
    $region2: #{rnn_forward.1} parent=1 // pred_check
      _
    $region3: #{rnn_forward.1} parent=1 // pred_check_branch
      %30 = sbr.rel (0) target = $region5
    $region4: #{rnn_forward.1} parent=1 // pred_region
      _
    $region5: #{rnn_forward.1} parent=1 // pred_fallthru
      _
    // Predicated region
    $region6: #{rnn_forward.1} parent=1 // pred_check
      _
    $region7: #{rnn_forward.1} parent=1 // pred_check_branch
      %32 = sbr.rel (0) target = $region9
    $region8: #{rnn_forward.1} parent=1 // pred_region
      %34 = vsyncadd [#allocation6], 0
      %s35 = sshll.u32 %s1, 4
      %s36 = int_to_ptr.hbm [resolvable:$true] %s35
      %s37 = sshll.u32 [#allocation5], 4
      %s38 = int_to_ptr.vmem [resolvable:$true] %s37
      %43 = dma.hbm_to_vmem [thread:$0]  %s36, 1920, %s38, [#allocation6], 384, 384, 24
    $region9: #{rnn_forward.1} parent=1 // pred_fallthru
      _
    // Predicated region
    $region10: #{rnn_forward.1} parent=1 // pred_check
      _
    $region11: #{rnn_forward.1} parent=1 // pred_check_branch
      %45 = sbr.rel (0) target = $region13
    $region12: #{rnn_forward.1} parent=1 // pred_region
      %47 = vsyncadd [#allocation8], 0
      %s48 = sshll.u32 %s2, 4
      %s49 = int_to_ptr.hbm [resolvable:$true] %s48
      %s50 = sshll.u32 [#allocation7], 4
      %s51 = int_to_ptr.vmem [resolvable:$true] %s50
      %56 = dma.hbm_to_vmem [thread:$0]  %s49, 6144, %s51, [#allocation8], 384, 384, 24
    $region13: #{rnn_forward.1} parent=1 // pred_fallthru
      _
    // Predicated region
    $region14: #{rnn_forward.1} parent=1 // pred_check
      _
    $region15: #{rnn_forward.1} parent=1 // pred_check_branch
      %58 = sbr.rel (0) target = $region17
    $region16: #{rnn_forward.1} parent=1 // pred_region
      _
    $region17: #{rnn_forward.1} parent=1 // pred_fallthru
      _
    // Predicated region
    $region18: #{rnn_forward.1} parent=1 // pred_check
      _
    $region19: #{rnn_forward.1} parent=1 // pred_check_branch
      %60 = sbr.rel (0) target = $region21
    $region20: #{rnn_forward.1} parent=1 // pred_region
      _
    $region21: #{rnn_forward.1} parent=1 // pred_fallthru
      _
    // Predicated region
    $region22: #{rnn_forward.1} parent=1 // pred_check
      _
    $region23: #{rnn_forward.1} parent=1 // pred_check_branch
      %62 = sbr.rel (0) target = $region25
    $region24: #{rnn_forward.1} parent=1 // pred_region
      %64 = vsyncadd [#allocation8], 0
      %s65 = sshll.u32 %s5, 4
      %s66 = int_to_ptr.hbm [resolvable:$true] %s65
      %s67 = sshll.u32 [#allocation9], 4
      %s68 = int_to_ptr.vmem [resolvable:$true] %s67
      %73 = dma.hbm_to_vmem [thread:$0]  %s66, 1920, %s68, [#allocation8], 384, 384, 24
    $region25: #{rnn_forward.1} parent=1 // pred_fallthru
      _
    // Predicated region
    $region26: #{rnn_forward.1} parent=1 // pred_check
      _
    $region27: #{rnn_forward.1} parent=1 // pred_check_branch
      %75 = sbr.rel (0) target = $region29
    $region28: #{rnn_forward.1} parent=1 // pred_region
      %77 = vsyncadd [#allocation11], 0
      %s78 = sshll.u32 %s6, 4
      %s79 = int_to_ptr.hbm [resolvable:$true] %s78
      %s80 = sshll.u32 [#allocation10], 4
      %s81 = int_to_ptr.vmem [resolvable:$true] %s80
      %86 = dma.hbm_to_vmem [thread:$0]  %s79, 6144, %s81, [#allocation11], 384, 384, 24
    $region29: #{rnn_forward.1} parent=1 // pred_fallthru
      _
    // Predicated region
    $region30: #{rnn_forward.1} parent=1 // pred_check
      _
    $region31: #{rnn_forward.1} parent=1 // pred_check_branch
      %88 = sbr.rel (0) target = $region33
    $region32: #{rnn_forward.1} parent=1 // pred_region
      _
    $region33: #{rnn_forward.1} parent=1 // pred_fallthru
      _
    // Predicated region
    $region34: #{rnn_forward.1} parent=1 // pred_check
      _
    $region35: #{rnn_forward.1} parent=1 // pred_check_branch
      %90 = sbr.rel (0) target = $region37
    $region36: #{rnn_forward.1} parent=1 // pred_region
      _
    $region37: #{rnn_forward.1} parent=1 // pred_fallthru
      _
    // Predicated region
    $region38: #{rnn_forward.1} parent=1 // pred_check
      _
    $region39: #{rnn_forward.1} parent=1 // pred_check_branch
      %92 = sbr.rel (0) target = $region41
    $region40: #{rnn_forward.1} parent=1 // pred_region
      %94 = vsyncadd [#allocation11], 0
      %s95 = sshll.u32 %s9, 4
      %s96 = int_to_ptr.hbm [resolvable:$true] %s95
      %s97 = sshll.u32 [#allocation12], 4
      %s98 = int_to_ptr.vmem [resolvable:$true] %s97
      %103 = dma.hbm_to_vmem [thread:$0]  %s96, 12288, %s98, [#allocation11], 384, 384, 24
    $region41: #{rnn_forward.1} parent=1 // pred_fallthru
      _
    // Predicated region
    $region42: #{rnn_forward.1} parent=1 // pred_check
      _
    $region43: #{rnn_forward.1} parent=1 // pred_check_branch
      %105 = sbr.rel (0) target = $region45
    $region44: #{rnn_forward.1} parent=1 // pred_region
      %107 = vsyncadd [#allocation14], 0
      %s108 = sshll.u32 %s10, 4
      %s109 = int_to_ptr.hbm [resolvable:$true] %s108
      %s110 = sshll.u32 [#allocation13], 4
      %s111 = int_to_ptr.vmem [resolvable:$true] %s110
      %116 = dma.hbm_to_vmem [thread:$0]  %s109, 6144, %s111, [#allocation14], 384, 384, 24
    $region45: #{rnn_forward.1} parent=1 // pred_fallthru
      _
    // Predicated region
    $region46: #{rnn_forward.1} parent=1 // pred_check
      _
    $region47: #{rnn_forward.1} parent=1 // pred_check_branch
      %118 = sbr.rel (0) target = $region49
    $region48: #{rnn_forward.1} parent=1 // pred_region
      _
    $region49: #{rnn_forward.1} parent=1 // pred_fallthru
      _
    // Predicated region
    $region50: #{rnn_forward.1} parent=1 // pred_check
      _
    $region51: #{rnn_forward.1} parent=1 // pred_check_branch
      %120 = sbr.rel (0) target = $region53
    $region52: #{rnn_forward.1} parent=1 // pred_region
      _
    $region53: #{rnn_forward.1} parent=1 // pred_fallthru
      _
    // Predicated region
    $region54: #{rnn_forward.1} parent=1 // pred_check
      _
    $region55: #{rnn_forward.1} parent=1 // pred_check_branch
      %122 = sbr.rel (0) target = $region57
    $region56: #{rnn_forward.1} parent=1 // pred_region
      %124 = vsyncadd [#allocation14], 0
      %s125 = sshll.u32 %s13, 4
      %s126 = int_to_ptr.hbm [resolvable:$true] %s125
      %s127 = sshll.u32 [#allocation15], 4
      %s128 = int_to_ptr.vmem [resolvable:$true] %s127
      %133 = dma.hbm_to_vmem [thread:$0]  %s126, 12288, %s128, [#allocation14], 384, 384, 24
    $region57: #{rnn_forward.1} parent=1 // pred_fallthru
      _
    // Predicated region
    $region58: #{rnn_forward.1} parent=1 // pred_check
      _
    $region59: #{rnn_forward.1} parent=1 // pred_check_branch
      %135 = sbr.rel (0) target = $region61
    $region60: #{rnn_forward.1} parent=1 // pred_region
      %137 = vsyncadd [#allocation17], 0
      %s138 = sshll.u32 %s14, 4
      %s139 = int_to_ptr.hbm [resolvable:$true] %s138
      %s140 = sshll.u32 [#allocation16], 4
      %s141 = int_to_ptr.vmem [resolvable:$true] %s140
      %146 = dma.hbm_to_vmem [thread:$0]  %s139, 6144, %s141, [#allocation17], 384, 384, 24
    $region61: #{rnn_forward.1} parent=1 // pred_fallthru
      _
    // Predicated region
    $region62: #{rnn_forward.1} parent=1 // pred_check
      _
    $region63: #{rnn_forward.1} parent=1 // pred_check_branch
      %148 = sbr.rel (0) target = $region65
    $region64: #{rnn_forward.1} parent=1 // pred_region
      _
    $region65: #{rnn_forward.1} parent=1 // pred_fallthru
      _
    // Predicated region
    $region66: #{rnn_forward.1} parent=1 // pred_check
      _
    $region67: #{rnn_forward.1} parent=1 // pred_check_branch
      %150 = sbr.rel (0) target = $region69
    $region68: #{rnn_forward.1} parent=1 // pred_region
      _
    $region69: #{rnn_forward.1} parent=1 // pred_fallthru
      _
    // Predicated region
    $region70: #{rnn_forward.1} parent=1 // pred_check
      _
    $region71: #{rnn_forward.1} parent=1 // pred_check_branch
      %152 = sbr.rel (0) target = $region73
    $region72: #{rnn_forward.1} parent=1 // pred_region
      %154 = vsyncadd [#allocation17], 0
      %s155 = sshll.u32 %s17, 4
      %s156 = int_to_ptr.hbm [resolvable:$true] %s155
      %s157 = sshll.u32 [#allocation18], 4
      %s158 = int_to_ptr.vmem [resolvable:$true] %s157
      %163 = dma.hbm_to_vmem [thread:$0]  %s156, 4096, %s158, [#allocation17], 128, 128, 8
    $region73: #{rnn_forward.1} parent=1 // pred_fallthru
      _
    // Predicated region
    $region74: #{rnn_forward.1} parent=1 // pred_check
      _
    $region75: #{rnn_forward.1} parent=1 // pred_check_branch
      %165 = sbr.rel (0) target = $region77
    $region76: #{rnn_forward.1} parent=1 // pred_region
      _
    $region77: #{rnn_forward.1} parent=1 // pred_fallthru
      _
    // Predicated region
    $region78: #{rnn_forward.1} parent=1 // pred_check
      _
    $region79: #{rnn_forward.1} parent=1 // pred_check_branch
      %167 = sbr.rel (0) target = $region81
    $region80: #{rnn_forward.1} parent=1 // pred_region
      %169 = dma.done [#allocation6], 1920
    $region81: #{rnn_forward.1} parent=1 // pred_fallthru
      _
    // Predicated region
    $region82: #{rnn_forward.1} parent=1 // pred_check
      _
    $region83: #{rnn_forward.1} parent=1 // pred_check_branch
      %171 = sbr.rel (0) target = $region85
    $region84: #{rnn_forward.1} parent=1 // pred_region
      %173 = dma.done [#allocation8], 6144
    $region85: #{rnn_forward.1} parent=1 // pred_fallthru
      _
    // Predicated region
    $region86: #{rnn_forward.1} parent=1 // pred_check
      _
    $region87: #{rnn_forward.1} parent=1 // pred_check_branch
      %175 = sbr.rel (0) target = $region89
    $region88: #{rnn_forward.1} parent=1 // pred_region
      %177 = dma.done [#allocation8], 1920
    $region89: #{rnn_forward.1} parent=1 // pred_fallthru
      _
    // Predicated region
    $region90: #{rnn_forward.1} parent=1 // pred_check
      _
    $region91: #{rnn_forward.1} parent=1 // pred_check_branch
      %179 = sbr.rel (0) target = $region93
    $region92: #{rnn_forward.1} parent=1 // pred_region
      %181 = dma.done [#allocation11], 6144
    $region93: #{rnn_forward.1} parent=1 // pred_fallthru
      _
    // Predicated region
    $region94: #{rnn_forward.1} parent=1 // pred_check
      _
    $region95: #{rnn_forward.1} parent=1 // pred_check_branch
      %183 = sbr.rel (0) target = $region97
    $region96: #{rnn_forward.1} parent=1 // pred_region
      %185 = dma.done [#allocation11], 12288
    $region97: #{rnn_forward.1} parent=1 // pred_fallthru
      _
    // Predicated region
    $region98: #{rnn_forward.1} parent=1 // pred_check
      _
    $region99: #{rnn_forward.1} parent=1 // pred_check_branch
      %187 = sbr.rel (0) target = $region101
    $region100: #{rnn_forward.1} parent=1 // pred_region
      %189 = dma.done [#allocation14], 6144
    $region101: #{rnn_forward.1} parent=1 // pred_fallthru
      _
    // Predicated region
    $region102: #{rnn_forward.1} parent=1 // pred_check
      _
    $region103: #{rnn_forward.1} parent=1 // pred_check_branch
      %191 = sbr.rel (0) target = $region105
    $region104: #{rnn_forward.1} parent=1 // pred_region
      %193 = dma.done [#allocation14], 12288
    $region105: #{rnn_forward.1} parent=1 // pred_fallthru
      _
    // Predicated region
    $region106: #{rnn_forward.1} parent=1 // pred_check
      _
    $region107: #{rnn_forward.1} parent=1 // pred_check_branch
      %195 = sbr.rel (0) target = $region109
    $region108: #{rnn_forward.1} parent=1 // pred_region
      %197 = dma.done [#allocation17], 6144
    $region109: #{rnn_forward.1} parent=1 // pred_fallthru
      _
    // Predicated region
    $region110: #{rnn_forward.1} parent=1 // pred_check
      _
    $region111: #{rnn_forward.1} parent=1 // pred_check_branch
      %199 = sbr.rel (0) target = $region113
    $region112: #{rnn_forward.1} parent=1 // pred_region
      %201 = dma.done [#allocation17], 4096
    $region113: #{rnn_forward.1} parent=1 // pred_fallthru
      _
    %v202 = vld [vmem:[%s0] sm:$0xff]
    %v203 = vld [vmem:[%s0 + $0x8] sm:$0xff]
    %v204 = vld [vmem:[%s0 + $0x10] sm:$0xff]
    %v205 = vld [vmem:[%s0 + $0x18] sm:$0xff]
    %v206 = vld [vmem:[%s0 + $0x20] sm:$0xff]
    %v207 = vld [vmem:[%s0 + $0x28] sm:$0xff]
    %v208 = vld [vmem:[%s0 + $0x30] sm:$0xff]
    %v209 = vld [vmem:[%s0 + $0x38] sm:$0xff]
    %v210 = vld [vmem:[#allocation5] sm:$0xff]
    %v211 = vld [vmem:[#allocation5 + $0x8] sm:$0xff]
    %v212 = vld [vmem:[#allocation5 + $0x10] sm:$0xff]
    %v213 = vld [vmem:[#allocation5 + $0x18] sm:$0xff]
    %v214 = vld [vmem:[#allocation5 + $0x20] sm:$0xff]
    %v215 = vld [vmem:[#allocation5 + $0x28] sm:$0xff]
    %v216 = vld [vmem:[#allocation5 + $0x30] sm:$0xff]
    %v217 = vld [vmem:[#allocation5 + $0x38] sm:$0xff]
    %v218 = vld [vmem:[#allocation5 + $0x40] sm:$0xff]
    %v219 = vld [vmem:[#allocation5 + $0x48] sm:$0xff]
    %v220 = vld [vmem:[#allocation5 + $0x50] sm:$0xff]
    %v221 = vld [vmem:[#allocation5 + $0x58] sm:$0xff]
    %v222 = vld [vmem:[#allocation5 + $0x60] sm:$0xf]
    %v223 = vld [vmem:[#allocation5 + $0x68] sm:$0xf]
    %v224 = vld [vmem:[#allocation5 + $0x70] sm:$0xf]
    %v225 = vld [vmem:[%s3] sm:$0x7]
    %v227 = vperm.slane %v225, 0
    %v228 = vperm.slane %v225, 1
    %v229 = vperm.slane %v225, 2
    %vm233 = vcmask 293888
    %v235 = vsel %vm233, %v202, 0
    %v238 = vsel %vm233, %v203, 0
    %v241 = vsel %vm233, %v204, 0
    %v244 = vsel %vm233, %v205, 0
    %v247 = vsel %vm233, %v206, 0
    %v250 = vsel %vm233, %v207, 0
    %v253 = vsel %vm233, %v208, 0
    %v256 = vsel %vm233, %v209, 0
    %vm258 = vcmask 1043456
    %v260 = vsel %vm258, %v222, 0
    %v263 = vsel %vm258, %v223, 0
    %v266 = vsel %vm258, %v224, 0
    %268 = vmatpush.msra.mxu0 0.0
    %269 = vmatpush.msra.mxu0 0.0
    %270 = vmatpush.msra.mxu0 0.0
    %271 = vmatpush.msra.mxu0 0.0
    %272 = vmatpush.msra.mxu0 0.0
    %273 = vmatpush.msra.mxu0 0.0
    %274 = vmatpush.msra.mxu0 0.0
    %275 = vmatpush.msra.mxu0 0.0
    %276 = vmatpush.msra.mxu0 0.0
    %277 = vmatpush.msra.mxu0 0.0
    %278 = vmatpush.msra.mxu0 0.0
    %279 = vmatpush.msra.mxu0 %v260
    %280 = vmatpush.msra.mxu0 %v219
    %281 = vmatpush.msra.mxu0 %v216
    %282 = vmatpush.msra.mxu0 %v213
    %283 = vmatpush.msra.mxu0 %v210
    %284 = vmatmul.f32.gmra.mxu0 %v235
    %v285 = vpop.f32.mrf.mxu0
    %v286 = vadd.f32 %v227, %v285
    %287 = vmatmul.f32.gmra.mxu0 %v238
    %v288 = vpop.f32.mrf.mxu0
    %v289 = vadd.f32 %v227, %v288
    %290 = vmatmul.f32.gmra.mxu0 %v241
    %v291 = vpop.f32.mrf.mxu0
    %v292 = vadd.f32 %v227, %v291
    %293 = vmatmul.f32.gmra.mxu0 %v244
    %v294 = vpop.f32.mrf.mxu0
    %v295 = vadd.f32 %v227, %v294
    %296 = vmatmul.f32.gmra.mxu0 %v247
    %v297 = vpop.f32.mrf.mxu0
    %v298 = vadd.f32 %v227, %v297
    %299 = vmatmul.f32.gmra.mxu0 %v250
    %v300 = vpop.f32.mrf.mxu0
    %v301 = vadd.f32 %v227, %v300
    %302 = vmatmul.f32.gmra.mxu0 %v253
    %v303 = vpop.f32.mrf.mxu0
    %v304 = vadd.f32 %v227, %v303
    %305 = vmatmul.f32.gmra.mxu0 %v256
    %v306 = vpop.f32.mrf.mxu0
    %v307 = vadd.f32 %v227, %v306
    %308 = vdwg.mxu0
    %309 = vmatpush.msra.mxu0 0.0
    %310 = vmatpush.msra.mxu0 0.0
    %311 = vmatpush.msra.mxu0 0.0
    %312 = vmatpush.msra.mxu0 0.0
    %313 = vmatpush.msra.mxu0 0.0
    %314 = vmatpush.msra.mxu0 0.0
    %315 = vmatpush.msra.mxu0 0.0
    %316 = vmatpush.msra.mxu0 0.0
    %317 = vmatpush.msra.mxu0 0.0
    %318 = vmatpush.msra.mxu0 0.0
    %319 = vmatpush.msra.mxu0 0.0
    %320 = vmatpush.msra.mxu0 %v263
    %321 = vmatpush.msra.mxu0 %v220
    %322 = vmatpush.msra.mxu0 %v217
    %323 = vmatpush.msra.mxu0 %v214
    %324 = vmatpush.msra.mxu0 %v211
    %325 = vmatmul.f32.gmra.mxu0 %v235
    %v326 = vpop.f32.mrf.mxu0
    %v327 = vadd.f32 %v228, %v326
    %328 = vmatmul.f32.gmra.mxu0 %v238
    %v329 = vpop.f32.mrf.mxu0
    %v330 = vadd.f32 %v228, %v329
    %331 = vmatmul.f32.gmra.mxu0 %v241
    %v332 = vpop.f32.mrf.mxu0
    %v333 = vadd.f32 %v228, %v332
    %334 = vmatmul.f32.gmra.mxu0 %v244
    %v335 = vpop.f32.mrf.mxu0
    %v336 = vadd.f32 %v228, %v335
    %337 = vmatmul.f32.gmra.mxu0 %v247
    %v338 = vpop.f32.mrf.mxu0
    %v339 = vadd.f32 %v228, %v338
    %340 = vmatmul.f32.gmra.mxu0 %v250
    %v341 = vpop.f32.mrf.mxu0
    %v342 = vadd.f32 %v228, %v341
    %343 = vmatmul.f32.gmra.mxu0 %v253
    %v344 = vpop.f32.mrf.mxu0
    %v345 = vadd.f32 %v228, %v344
    %346 = vmatmul.f32.gmra.mxu0 %v256
    %v347 = vpop.f32.mrf.mxu0
    %v348 = vadd.f32 %v228, %v347
    %349 = vdwg.mxu0
    %350 = vmatpush.msra.mxu0 0.0
    %351 = vmatpush.msra.mxu0 0.0
    %352 = vmatpush.msra.mxu0 0.0
    %353 = vmatpush.msra.mxu0 0.0
    %354 = vmatpush.msra.mxu0 0.0
    %355 = vmatpush.msra.mxu0 0.0
    %356 = vmatpush.msra.mxu0 0.0
    %357 = vmatpush.msra.mxu0 0.0
    %358 = vmatpush.msra.mxu0 0.0
    %359 = vmatpush.msra.mxu0 0.0
    %360 = vmatpush.msra.mxu0 0.0
    %361 = vmatpush.msra.mxu0 %v266
    %362 = vmatpush.msra.mxu0 %v221
    %363 = vmatpush.msra.mxu0 %v218
    %364 = vmatpush.msra.mxu0 %v215
    %365 = vmatpush.msra.mxu0 %v212
    %366 = vmatmul.f32.gmra.mxu0 %v235
    %v367 = vpop.f32.mrf.mxu0
    %v368 = vadd.f32 %v229, %v367
    %369 = vmatmul.f32.gmra.mxu0 %v238
    %v370 = vpop.f32.mrf.mxu0
    %v371 = vadd.f32 %v229, %v370
    %372 = vmatmul.f32.gmra.mxu0 %v241
    %v373 = vpop.f32.mrf.mxu0
    %v374 = vadd.f32 %v229, %v373
    %375 = vmatmul.f32.gmra.mxu0 %v244
    %v376 = vpop.f32.mrf.mxu0
    %v377 = vadd.f32 %v229, %v376
    %378 = vmatmul.f32.gmra.mxu0 %v247
    %v379 = vpop.f32.mrf.mxu0
    %v380 = vadd.f32 %v229, %v379
    %381 = vmatmul.f32.gmra.mxu0 %v250
    %v382 = vpop.f32.mrf.mxu0
    %v383 = vadd.f32 %v229, %v382
    %384 = vmatmul.f32.gmra.mxu0 %v253
    %v385 = vpop.f32.mrf.mxu0
    %v386 = vadd.f32 %v229, %v385
    %387 = vmatmul.f32.gmra.mxu0 %v256
    %v388 = vpop.f32.mrf.mxu0
    %v389 = vadd.f32 %v229, %v388
    %390 = vdwg.mxu0
    %391 = vst [vmem:[#allocation3] sm:$0xff] %v286
    %392 = vst [vmem:[#allocation3 + $0x8] sm:$0xff] %v327
    %393 = vst [vmem:[#allocation3 + $0x10] sm:$0xff] %v368
    %394 = vst [vmem:[#allocation3 + $0x18] sm:$0xff] %v289
    %395 = vst [vmem:[#allocation3 + $0x20] sm:$0xff] %v330
    %396 = vst [vmem:[#allocation3 + $0x28] sm:$0xff] %v371
    %397 = vst [vmem:[#allocation3 + $0x30] sm:$0xff] %v292
    %398 = vst [vmem:[#allocation3 + $0x38] sm:$0xff] %v333
    %399 = vst [vmem:[#allocation3 + $0x40] sm:$0xff] %v374
    %400 = vst [vmem:[#allocation3 + $0x48] sm:$0xff] %v295
    %401 = vst [vmem:[#allocation3 + $0x50] sm:$0xff] %v336
    %402 = vst [vmem:[#allocation3 + $0x58] sm:$0xff] %v377
    %403 = vst [vmem:[#allocation3 + $0x60] sm:$0xff] %v298
    %404 = vst [vmem:[#allocation3 + $0x68] sm:$0xff] %v339
    %405 = vst [vmem:[#allocation3 + $0x70] sm:$0xff] %v380
    %406 = vst [vmem:[#allocation3 + $0x78] sm:$0xff] %v301
    %407 = vst [vmem:[#allocation3 + $0x80] sm:$0xff] %v342
    %408 = vst [vmem:[#allocation3 + $0x88] sm:$0xff] %v383
    %409 = vst [vmem:[#allocation3 + $0x90] sm:$0xff] %v304
    %410 = vst [vmem:[#allocation3 + $0x98] sm:$0xff] %v345
    %411 = vst [vmem:[#allocation3 + $0xa0] sm:$0xff] %v386
    %412 = vst [vmem:[#allocation3 + $0xa8] sm:$0xff] %v307
    %413 = vst [vmem:[#allocation3 + $0xb0] sm:$0xff] %v348
    %414 = vst [vmem:[#allocation3 + $0xb8] sm:$0xff] %v389
    %v415 = vld [vmem:[#allocation9] sm:$0xff]
    %v416 = vld [vmem:[#allocation9 + $0x8] sm:$0xff]
    %v417 = vld [vmem:[#allocation9 + $0x10] sm:$0xff]
    %v418 = vld [vmem:[#allocation9 + $0x18] sm:$0xff]
    %v419 = vld [vmem:[#allocation9 + $0x20] sm:$0xff]
    %v420 = vld [vmem:[#allocation9 + $0x28] sm:$0xff]
    %v421 = vld [vmem:[#allocation9 + $0x30] sm:$0xff]
    %v422 = vld [vmem:[#allocation9 + $0x38] sm:$0xff]
    %v423 = vld [vmem:[#allocation9 + $0x40] sm:$0xff]
    %v424 = vld [vmem:[#allocation9 + $0x48] sm:$0xff]
    %v425 = vld [vmem:[#allocation9 + $0x50] sm:$0xff]
    %v426 = vld [vmem:[#allocation9 + $0x58] sm:$0xff]
    %v427 = vld [vmem:[#allocation9 + $0x60] sm:$0xf]
    %v428 = vld [vmem:[#allocation9 + $0x68] sm:$0xf]
    %v429 = vld [vmem:[#allocation9 + $0x70] sm:$0xf]
    %v430 = vld [vmem:[%s7] sm:$0x7]
    %v432 = vperm.slane %v430, 0
    %v433 = vperm.slane %v430, 1
    %v434 = vperm.slane %v430, 2
    %v439 = vsel %vm258, %v427, 0
    %v442 = vsel %vm258, %v428, 0
    %v445 = vsel %vm258, %v429, 0
    %447 = vmatpush.msra.mxu0 0.0
    %448 = vmatpush.msra.mxu0 0.0
    %449 = vmatpush.msra.mxu0 0.0
    %450 = vmatpush.msra.mxu0 0.0
    %451 = vmatpush.msra.mxu0 0.0
    %452 = vmatpush.msra.mxu0 0.0
    %453 = vmatpush.msra.mxu0 0.0
    %454 = vmatpush.msra.mxu0 0.0
    %455 = vmatpush.msra.mxu0 0.0
    %456 = vmatpush.msra.mxu0 0.0
    %457 = vmatpush.msra.mxu0 0.0
    %458 = vmatpush.msra.mxu0 %v439
    %459 = vmatpush.msra.mxu0 %v424
    %460 = vmatpush.msra.mxu0 %v421
    %461 = vmatpush.msra.mxu0 %v418
    %462 = vmatpush.msra.mxu0 %v415
    %463 = vmatmul.f32.gmra.mxu0 %v235
    %v464 = vpop.f32.mrf.mxu0
    %v465 = vadd.f32 %v432, %v464
    %466 = vmatmul.f32.gmra.mxu0 %v238
    %v467 = vpop.f32.mrf.mxu0
    %v468 = vadd.f32 %v432, %v467
    %469 = vmatmul.f32.gmra.mxu0 %v241
    %v470 = vpop.f32.mrf.mxu0
    %v471 = vadd.f32 %v432, %v470
    %472 = vmatmul.f32.gmra.mxu0 %v244
    %v473 = vpop.f32.mrf.mxu0
    %v474 = vadd.f32 %v432, %v473
    %475 = vmatmul.f32.gmra.mxu0 %v247
    %v476 = vpop.f32.mrf.mxu0
    %v477 = vadd.f32 %v432, %v476
    %478 = vmatmul.f32.gmra.mxu0 %v250
    %v479 = vpop.f32.mrf.mxu0
    %v480 = vadd.f32 %v432, %v479
    %481 = vmatmul.f32.gmra.mxu0 %v253
    %v482 = vpop.f32.mrf.mxu0
    %v483 = vadd.f32 %v432, %v482
    %484 = vmatmul.f32.gmra.mxu0 %v256
    %v485 = vpop.f32.mrf.mxu0
    %v486 = vadd.f32 %v432, %v485
    %487 = vdwg.mxu0
    %488 = vmatpush.msra.mxu0 0.0
    %489 = vmatpush.msra.mxu0 0.0
    %490 = vmatpush.msra.mxu0 0.0
    %491 = vmatpush.msra.mxu0 0.0
    %492 = vmatpush.msra.mxu0 0.0
    %493 = vmatpush.msra.mxu0 0.0
    %494 = vmatpush.msra.mxu0 0.0
    %495 = vmatpush.msra.mxu0 0.0
    %496 = vmatpush.msra.mxu0 0.0
    %497 = vmatpush.msra.mxu0 0.0
    %498 = vmatpush.msra.mxu0 0.0
    %499 = vmatpush.msra.mxu0 %v442
    %500 = vmatpush.msra.mxu0 %v425
    %501 = vmatpush.msra.mxu0 %v422
    %502 = vmatpush.msra.mxu0 %v419
    %503 = vmatpush.msra.mxu0 %v416
    %504 = vmatmul.f32.gmra.mxu0 %v235
    %v505 = vpop.f32.mrf.mxu0
    %v506 = vadd.f32 %v433, %v505
    %507 = vmatmul.f32.gmra.mxu0 %v238
    %v508 = vpop.f32.mrf.mxu0
    %v509 = vadd.f32 %v433, %v508
    %510 = vmatmul.f32.gmra.mxu0 %v241
    %v511 = vpop.f32.mrf.mxu0
    %v512 = vadd.f32 %v433, %v511
    %513 = vmatmul.f32.gmra.mxu0 %v244
    %v514 = vpop.f32.mrf.mxu0
    %v515 = vadd.f32 %v433, %v514
    %516 = vmatmul.f32.gmra.mxu0 %v247
    %v517 = vpop.f32.mrf.mxu0
    %v518 = vadd.f32 %v433, %v517
    %519 = vmatmul.f32.gmra.mxu0 %v250
    %v520 = vpop.f32.mrf.mxu0
    %v521 = vadd.f32 %v433, %v520
    %522 = vmatmul.f32.gmra.mxu0 %v253
    %v523 = vpop.f32.mrf.mxu0
    %v524 = vadd.f32 %v433, %v523
    %525 = vmatmul.f32.gmra.mxu0 %v256
    %v526 = vpop.f32.mrf.mxu0
    %v527 = vadd.f32 %v433, %v526
    %528 = vdwg.mxu0
    %529 = vmatpush.msra.mxu0 0.0
    %530 = vmatpush.msra.mxu0 0.0
    %531 = vmatpush.msra.mxu0 0.0
    %532 = vmatpush.msra.mxu0 0.0
    %533 = vmatpush.msra.mxu0 0.0
    %534 = vmatpush.msra.mxu0 0.0
    %535 = vmatpush.msra.mxu0 0.0
    %536 = vmatpush.msra.mxu0 0.0
    %537 = vmatpush.msra.mxu0 0.0
    %538 = vmatpush.msra.mxu0 0.0
    %539 = vmatpush.msra.mxu0 0.0
    %540 = vmatpush.msra.mxu0 %v445
    %541 = vmatpush.msra.mxu0 %v426
    %542 = vmatpush.msra.mxu0 %v423
    %543 = vmatpush.msra.mxu0 %v420
    %544 = vmatpush.msra.mxu0 %v417
    %545 = vmatmul.f32.gmra.mxu0 %v235
    %v546 = vpop.f32.mrf.mxu0
    %v547 = vadd.f32 %v434, %v546
    %548 = vmatmul.f32.gmra.mxu0 %v238
    %v549 = vpop.f32.mrf.mxu0
    %v550 = vadd.f32 %v434, %v549
    %551 = vmatmul.f32.gmra.mxu0 %v241
    %v552 = vpop.f32.mrf.mxu0
    %v553 = vadd.f32 %v434, %v552
    %554 = vmatmul.f32.gmra.mxu0 %v244
    %v555 = vpop.f32.mrf.mxu0
    %v556 = vadd.f32 %v434, %v555
    %557 = vmatmul.f32.gmra.mxu0 %v247
    %v558 = vpop.f32.mrf.mxu0
    %v559 = vadd.f32 %v434, %v558
    %560 = vmatmul.f32.gmra.mxu0 %v250
    %v561 = vpop.f32.mrf.mxu0
    %v562 = vadd.f32 %v434, %v561
    %563 = vmatmul.f32.gmra.mxu0 %v253
    %v564 = vpop.f32.mrf.mxu0
    %v565 = vadd.f32 %v434, %v564
    %566 = vmatmul.f32.gmra.mxu0 %v256
    %v567 = vpop.f32.mrf.mxu0
    %v568 = vadd.f32 %v434, %v567
    %569 = vdwg.mxu0
    %570 = vst [vmem:[#allocation4] sm:$0xff] %v465
    %571 = vst [vmem:[#allocation4 + $0x8] sm:$0xff] %v506
    %572 = vst [vmem:[#allocation4 + $0x10] sm:$0xff] %v547
    %573 = vst [vmem:[#allocation4 + $0x18] sm:$0xff] %v468
    %574 = vst [vmem:[#allocation4 + $0x20] sm:$0xff] %v509
    %575 = vst [vmem:[#allocation4 + $0x28] sm:$0xff] %v550
    %576 = vst [vmem:[#allocation4 + $0x30] sm:$0xff] %v471
    %577 = vst [vmem:[#allocation4 + $0x38] sm:$0xff] %v512
    %578 = vst [vmem:[#allocation4 + $0x40] sm:$0xff] %v553
    %579 = vst [vmem:[#allocation4 + $0x48] sm:$0xff] %v474
    %580 = vst [vmem:[#allocation4 + $0x50] sm:$0xff] %v515
    %581 = vst [vmem:[#allocation4 + $0x58] sm:$0xff] %v556
    %582 = vst [vmem:[#allocation4 + $0x60] sm:$0xff] %v477
    %583 = vst [vmem:[#allocation4 + $0x68] sm:$0xff] %v518
    %584 = vst [vmem:[#allocation4 + $0x70] sm:$0xff] %v559
    %585 = vst [vmem:[#allocation4 + $0x78] sm:$0xff] %v480
    %586 = vst [vmem:[#allocation4 + $0x80] sm:$0xff] %v521
    %587 = vst [vmem:[#allocation4 + $0x88] sm:$0xff] %v562
    %588 = vst [vmem:[#allocation4 + $0x90] sm:$0xff] %v483
    %589 = vst [vmem:[#allocation4 + $0x98] sm:$0xff] %v524
    %590 = vst [vmem:[#allocation4 + $0xa0] sm:$0xff] %v565
    %591 = vst [vmem:[#allocation4 + $0xa8] sm:$0xff] %v486
    %592 = vst [vmem:[#allocation4 + $0xb0] sm:$0xff] %v527
    %593 = vst [vmem:[#allocation4 + $0xb8] sm:$0xff] %v568
    %v594 = vld [vmem:[#allocation7] sm:$0xff]
    %v595 = vld [vmem:[#allocation7 + $0x8] sm:$0xff]
    %v596 = vld [vmem:[#allocation7 + $0x10] sm:$0xff]
    %v597 = vld [vmem:[#allocation7 + $0x18] sm:$0xff]
    %v598 = vld [vmem:[#allocation7 + $0x20] sm:$0xff]
    %v599 = vld [vmem:[#allocation7 + $0x28] sm:$0xff]
    %v600 = vld [vmem:[#allocation7 + $0x30] sm:$0xff]
    %v601 = vld [vmem:[#allocation7 + $0x38] sm:$0xff]
    %v602 = vld [vmem:[#allocation7 + $0x40] sm:$0xff]
    %v603 = vld [vmem:[#allocation7 + $0x48] sm:$0xff]
    %v604 = vld [vmem:[#allocation7 + $0x50] sm:$0xff]
    %v605 = vld [vmem:[#allocation7 + $0x58] sm:$0xff]
    %v606 = vld [vmem:[#allocation7 + $0x60] sm:$0xff]
    %v607 = vld [vmem:[#allocation7 + $0x68] sm:$0xff]
    %v608 = vld [vmem:[#allocation7 + $0x70] sm:$0xff]
    %v609 = vld [vmem:[#allocation7 + $0x78] sm:$0xff]
    %v610 = vld [vmem:[#allocation7 + $0x80] sm:$0xff]
    %v611 = vld [vmem:[#allocation7 + $0x88] sm:$0xff]
    %v612 = vld [vmem:[#allocation7 + $0x90] sm:$0xff]
    %v613 = vld [vmem:[#allocation7 + $0x98] sm:$0xff]
    %v614 = vld [vmem:[#allocation7 + $0xa0] sm:$0xff]
    %v615 = vld [vmem:[#allocation7 + $0xa8] sm:$0xff]
    %v616 = vld [vmem:[#allocation7 + $0xb0] sm:$0xff]
    %v617 = vld [vmem:[#allocation7 + $0xb8] sm:$0xff]
    %v618 = vld [vmem:[#allocation7 + $0xc0] sm:$0xff]
    %v619 = vld [vmem:[#allocation7 + $0xc8] sm:$0xff]
    %v620 = vld [vmem:[#allocation7 + $0xd0] sm:$0xff]
    %v621 = vld [vmem:[#allocation7 + $0xd8] sm:$0xff]
    %v622 = vld [vmem:[#allocation7 + $0xe0] sm:$0xff]
    %v623 = vld [vmem:[#allocation7 + $0xe8] sm:$0xff]
    %v624 = vld [vmem:[#allocation7 + $0xf0] sm:$0xff]
    %v625 = vld [vmem:[#allocation7 + $0xf8] sm:$0xff]
    %v626 = vld [vmem:[#allocation7 + $0x100] sm:$0xff]
    %v627 = vld [vmem:[#allocation7 + $0x108] sm:$0xff]
    %v628 = vld [vmem:[#allocation7 + $0x110] sm:$0xff]
    %v629 = vld [vmem:[#allocation7 + $0x118] sm:$0xff]
    %v630 = vld [vmem:[#allocation7 + $0x120] sm:$0xff]
    %v631 = vld [vmem:[#allocation7 + $0x128] sm:$0xff]
    %v632 = vld [vmem:[#allocation7 + $0x130] sm:$0xff]
    %v633 = vld [vmem:[#allocation7 + $0x138] sm:$0xff]
    %v634 = vld [vmem:[#allocation7 + $0x140] sm:$0xff]
    %v635 = vld [vmem:[#allocation7 + $0x148] sm:$0xff]
    %v636 = vld [vmem:[#allocation7 + $0x150] sm:$0xff]
    %v637 = vld [vmem:[#allocation7 + $0x158] sm:$0xff]
    %v638 = vld [vmem:[#allocation7 + $0x160] sm:$0xff]
    %v639 = vld [vmem:[#allocation7 + $0x168] sm:$0xff]
    %v640 = vld [vmem:[#allocation7 + $0x170] sm:$0xff]
    %v641 = vld [vmem:[#allocation7 + $0x178] sm:$0xff]
    %v642 = vld [vmem:[#allocation10] sm:$0xff]
    %v643 = vld [vmem:[#allocation10 + $0x8] sm:$0xff]
    %v644 = vld [vmem:[#allocation10 + $0x10] sm:$0xff]
    %v645 = vld [vmem:[#allocation10 + $0x18] sm:$0xff]
    %v646 = vld [vmem:[#allocation10 + $0x20] sm:$0xff]
    %v647 = vld [vmem:[#allocation10 + $0x28] sm:$0xff]
    %v648 = vld [vmem:[#allocation10 + $0x30] sm:$0xff]
    %v649 = vld [vmem:[#allocation10 + $0x38] sm:$0xff]
    %v650 = vld [vmem:[#allocation10 + $0x40] sm:$0xff]
    %v651 = vld [vmem:[#allocation10 + $0x48] sm:$0xff]
    %v652 = vld [vmem:[#allocation10 + $0x50] sm:$0xff]
    %v653 = vld [vmem:[#allocation10 + $0x58] sm:$0xff]
    %v654 = vld [vmem:[#allocation10 + $0x60] sm:$0xff]
    %v655 = vld [vmem:[#allocation10 + $0x68] sm:$0xff]
    %v656 = vld [vmem:[#allocation10 + $0x70] sm:$0xff]
    %v657 = vld [vmem:[#allocation10 + $0x78] sm:$0xff]
    %v658 = vld [vmem:[#allocation10 + $0x80] sm:$0xff]
    %v659 = vld [vmem:[#allocation10 + $0x88] sm:$0xff]
    %v660 = vld [vmem:[#allocation10 + $0x90] sm:$0xff]
    %v661 = vld [vmem:[#allocation10 + $0x98] sm:$0xff]
    %v662 = vld [vmem:[#allocation10 + $0xa0] sm:$0xff]
    %v663 = vld [vmem:[#allocation10 + $0xa8] sm:$0xff]
    %v664 = vld [vmem:[#allocation10 + $0xb0] sm:$0xff]
    %v665 = vld [vmem:[#allocation10 + $0xb8] sm:$0xff]
    %v666 = vld [vmem:[#allocation10 + $0xc0] sm:$0xff]
    %v667 = vld [vmem:[#allocation10 + $0xc8] sm:$0xff]
    %v668 = vld [vmem:[#allocation10 + $0xd0] sm:$0xff]
    %v669 = vld [vmem:[#allocation10 + $0xd8] sm:$0xff]
    %v670 = vld [vmem:[#allocation10 + $0xe0] sm:$0xff]
    %v671 = vld [vmem:[#allocation10 + $0xe8] sm:$0xff]
    %v672 = vld [vmem:[#allocation10 + $0xf0] sm:$0xff]
    %v673 = vld [vmem:[#allocation10 + $0xf8] sm:$0xff]
    %v674 = vld [vmem:[#allocation10 + $0x100] sm:$0xff]
    %v675 = vld [vmem:[#allocation10 + $0x108] sm:$0xff]
    %v676 = vld [vmem:[#allocation10 + $0x110] sm:$0xff]
    %v677 = vld [vmem:[#allocation10 + $0x118] sm:$0xff]
    %v678 = vld [vmem:[#allocation10 + $0x120] sm:$0xff]
    %v679 = vld [vmem:[#allocation10 + $0x128] sm:$0xff]
    %v680 = vld [vmem:[#allocation10 + $0x130] sm:$0xff]
    %v681 = vld [vmem:[#allocation10 + $0x138] sm:$0xff]
    %v682 = vld [vmem:[#allocation10 + $0x140] sm:$0xff]
    %v683 = vld [vmem:[#allocation10 + $0x148] sm:$0xff]
    %v684 = vld [vmem:[#allocation10 + $0x150] sm:$0xff]
    %v685 = vld [vmem:[#allocation10 + $0x158] sm:$0xff]
    %v686 = vld [vmem:[#allocation10 + $0x160] sm:$0xff]
    %v687 = vld [vmem:[#allocation10 + $0x168] sm:$0xff]
    %v688 = vld [vmem:[#allocation10 + $0x170] sm:$0xff]
    %v689 = vld [vmem:[#allocation10 + $0x178] sm:$0xff]
    %v690 = vld [vmem:[%s4] sm:$0x7]
    %v691 = vld [vmem:[%s8] sm:$0x7]
    %v693 = vperm.slane %v690, 0
    %v694 = vperm.slane %v690, 1
    %v695 = vperm.slane %v690, 2
    %699 = vmatpush.msra.mxu0 %v639
    %700 = vmatpush.msra.mxu0 %v636
    %701 = vmatpush.msra.mxu0 %v633
    %702 = vmatpush.msra.mxu0 %v630
    %703 = vmatpush.msra.mxu0 %v627
    %704 = vmatpush.msra.mxu0 %v624
    %705 = vmatpush.msra.mxu0 %v621
    %706 = vmatpush.msra.mxu0 %v618
    %707 = vmatpush.msra.mxu0 %v615
    %708 = vmatpush.msra.mxu0 %v612
    %709 = vmatpush.msra.mxu0 %v609
    %710 = vmatpush.msra.mxu0 %v606
    %711 = vmatpush.msra.mxu0 %v603
    %712 = vmatpush.msra.mxu0 %v600
    %713 = vmatpush.msra.mxu0 %v597
    %714 = vmatpush.msra.mxu0 %v594
    %715 = vmatmul.f32.gmra.mxu0 0.0
    %v716 = vpop.f32.mrf.mxu0
    %v717 = vadd.f32 %v693, %v716
    %718 = vdwg.mxu0
    %719 = vmatpush.msra.mxu0 %v640
    %720 = vmatpush.msra.mxu0 %v637
    %721 = vmatpush.msra.mxu0 %v634
    %722 = vmatpush.msra.mxu0 %v631
    %723 = vmatpush.msra.mxu0 %v628
    %724 = vmatpush.msra.mxu0 %v625
    %725 = vmatpush.msra.mxu0 %v622
    %726 = vmatpush.msra.mxu0 %v619
    %727 = vmatpush.msra.mxu0 %v616
    %728 = vmatpush.msra.mxu0 %v613
    %729 = vmatpush.msra.mxu0 %v610
    %730 = vmatpush.msra.mxu0 %v607
    %731 = vmatpush.msra.mxu0 %v604
    %732 = vmatpush.msra.mxu0 %v601
    %733 = vmatpush.msra.mxu0 %v598
    %734 = vmatpush.msra.mxu0 %v595
    %735 = vmatmul.f32.gmra.mxu0 0.0
    %v736 = vpop.f32.mrf.mxu0
    %v737 = vadd.f32 %v694, %v736
    %738 = vdwg.mxu0
    %739 = vmatpush.msra.mxu0 %v641
    %740 = vmatpush.msra.mxu0 %v638
    %741 = vmatpush.msra.mxu0 %v635
    %742 = vmatpush.msra.mxu0 %v632
    %743 = vmatpush.msra.mxu0 %v629
    %744 = vmatpush.msra.mxu0 %v626
    %745 = vmatpush.msra.mxu0 %v623
    %746 = vmatpush.msra.mxu0 %v620
    %747 = vmatpush.msra.mxu0 %v617
    %748 = vmatpush.msra.mxu0 %v614
    %749 = vmatpush.msra.mxu0 %v611
    %750 = vmatpush.msra.mxu0 %v608
    %751 = vmatpush.msra.mxu0 %v605
    %752 = vmatpush.msra.mxu0 %v602
    %753 = vmatpush.msra.mxu0 %v599
    %754 = vmatpush.msra.mxu0 %v596
    %755 = vmatmul.f32.gmra.mxu0 0.0
    %v756 = vpop.f32.mrf.mxu0
    %v757 = vadd.f32 %v695, %v756
    %758 = vdwg.mxu0
    %v760 = vperm.slane %v691, 0
    %v761 = vperm.slane %v691, 1
    %v762 = vperm.slane %v691, 2
    %766 = vmatpush.msra.mxu0 %v687
    %767 = vmatpush.msra.mxu0 %v684
    %768 = vmatpush.msra.mxu0 %v681
    %769 = vmatpush.msra.mxu0 %v678
    %770 = vmatpush.msra.mxu0 %v675
    %771 = vmatpush.msra.mxu0 %v672
    %772 = vmatpush.msra.mxu0 %v669
    %773 = vmatpush.msra.mxu0 %v666
    %774 = vmatpush.msra.mxu0 %v663
    %775 = vmatpush.msra.mxu0 %v660
    %776 = vmatpush.msra.mxu0 %v657
    %777 = vmatpush.msra.mxu0 %v654
    %778 = vmatpush.msra.mxu0 %v651
    %779 = vmatpush.msra.mxu0 %v648
    %780 = vmatpush.msra.mxu0 %v645
    %781 = vmatpush.msra.mxu0 %v642
    %782 = vmatmul.f32.gmra.mxu0 0.0
    %v783 = vpop.f32.mrf.mxu0
    %v784 = vadd.f32 %v760, %v783
    %785 = vdwg.mxu0
    %786 = vmatpush.msra.mxu0 %v688
    %787 = vmatpush.msra.mxu0 %v685
    %788 = vmatpush.msra.mxu0 %v682
    %789 = vmatpush.msra.mxu0 %v679
    %790 = vmatpush.msra.mxu0 %v676
    %791 = vmatpush.msra.mxu0 %v673
    %792 = vmatpush.msra.mxu0 %v670
    %793 = vmatpush.msra.mxu0 %v667
    %794 = vmatpush.msra.mxu0 %v664
    %795 = vmatpush.msra.mxu0 %v661
    %796 = vmatpush.msra.mxu0 %v658
    %797 = vmatpush.msra.mxu0 %v655
    %798 = vmatpush.msra.mxu0 %v652
    %799 = vmatpush.msra.mxu0 %v649
    %800 = vmatpush.msra.mxu0 %v646
    %801 = vmatpush.msra.mxu0 %v643
    %802 = vmatmul.f32.gmra.mxu0 0.0
    %v803 = vpop.f32.mrf.mxu0
    %v804 = vadd.f32 %v761, %v803
    %805 = vdwg.mxu0
    %806 = vmatpush.msra.mxu0 %v689
    %807 = vmatpush.msra.mxu0 %v686
    %808 = vmatpush.msra.mxu0 %v683
    %809 = vmatpush.msra.mxu0 %v680
    %810 = vmatpush.msra.mxu0 %v677
    %811 = vmatpush.msra.mxu0 %v674
    %812 = vmatpush.msra.mxu0 %v671
    %813 = vmatpush.msra.mxu0 %v668
    %814 = vmatpush.msra.mxu0 %v665
    %815 = vmatpush.msra.mxu0 %v662
    %816 = vmatpush.msra.mxu0 %v659
    %817 = vmatpush.msra.mxu0 %v656
    %818 = vmatpush.msra.mxu0 %v653
    %819 = vmatpush.msra.mxu0 %v650
    %820 = vmatpush.msra.mxu0 %v647
    %821 = vmatpush.msra.mxu0 %v644
    %822 = vmatmul.f32.gmra.mxu0 0.0
    %v823 = vpop.f32.mrf.mxu0
    %v824 = vadd.f32 %v762, %v823
    %825 = vdwg.mxu0
    %v826 = vld [vmem:[#allocation3] sm:$0xff]
    %v827 = vld [vmem:[#allocation3 + $0x8] sm:$0xff]
    %v828 = vld [vmem:[#allocation3 + $0x10] sm:$0xff]
    %v829 = vld [vmem:[#allocation4 + $0xa8] sm:$0xff]
    %v830 = vld [vmem:[#allocation4 + $0xb0] sm:$0xff]
    %v831 = vld [vmem:[#allocation4 + $0xb8] sm:$0xff]
    %v832 = vadd.f32 %v826, %v717
    %v833 = vxor.u32 %v832, 2147483648
    %v834 = vmul.f32 %v833, 1.442695
    %v835 = vpow.pop %v834
    %v836 = vadd.f32 %v835, 1.0
    %v837 = vrcp.pop %v836
    %v838 = vmul.f32 %v836, %v837
    %v839 = vsub.f32 1.0, %v838
    %v840 = vmul.f32 %v837, %v839
    %v841 = vadd.f32 %v837, %v840
    %vm842 = vweird.f32 %v836
    %vm843 = vweird.f32 %v837
    %vm844 = vmor %vm842, %vm843
    %v845 = vsel %vm844, %v837, %v841
    %v846 = vand.u32 2147483647, %v836
    %vm847 = vcmp.eq.f32.partialorder %v846, 8.507059e+37
    %v848 = vand.u32 %v836, 2147483648
    %v849 = vor.u32 1.1754944e-38, %v848
    %v850 = vsel %vm847, %v849, %v845
    %v851 = vmul.f32 1.0, %v850
    %v852 = vadd.f32 %v827, %v737
    %v853 = vxor.u32 %v852, 2147483648
    %v854 = vmul.f32 %v853, 1.442695
    %v855 = vpow.pop %v854
    %v856 = vadd.f32 %v855, 1.0
    %v857 = vrcp.pop %v856
    %v858 = vmul.f32 %v856, %v857
    %v859 = vsub.f32 1.0, %v858
    %v860 = vmul.f32 %v857, %v859
    %v861 = vadd.f32 %v857, %v860
    %vm862 = vweird.f32 %v856
    %vm863 = vweird.f32 %v857
    %vm864 = vmor %vm862, %vm863
    %v865 = vsel %vm864, %v857, %v861
    %v866 = vand.u32 2147483647, %v856
    %vm867 = vcmp.eq.f32.partialorder %v866, 8.507059e+37
    %v868 = vand.u32 %v856, 2147483648
    %v869 = vor.u32 1.1754944e-38, %v868
    %v870 = vsel %vm867, %v869, %v865
    %v871 = vmul.f32 1.0, %v870
    %v872 = vmul.f32 %v851, %v757
    %v873 = vadd.f32 %v828, %v872
    %v874 = vtanh.pop %v873
    %v875 = vsub.f32 1.0, %v871
    %v876 = vmul.f32 %v875, %v874
    %v877 = vmul.f32 %v871, 0.0
    %v878 = vadd.f32 %v876, %v877
    %v879 = vadd.f32 %v829, %v784
    %v880 = vxor.u32 %v879, 2147483648
    %v881 = vmul.f32 %v880, 1.442695
    %v882 = vpow.pop %v881
    %v883 = vadd.f32 %v882, 1.0
    %v884 = vrcp.pop %v883
    %v885 = vmul.f32 %v883, %v884
    %v886 = vsub.f32 1.0, %v885
    %v887 = vmul.f32 %v884, %v886
    %v888 = vadd.f32 %v884, %v887
    %vm889 = vweird.f32 %v883
    %vm890 = vweird.f32 %v884
    %vm891 = vmor %vm889, %vm890
    %v892 = vsel %vm891, %v884, %v888
    %v893 = vand.u32 2147483647, %v883
    %vm894 = vcmp.eq.f32.partialorder %v893, 8.507059e+37
    %v895 = vand.u32 %v883, 2147483648
    %v896 = vor.u32 1.1754944e-38, %v895
    %v897 = vsel %vm894, %v896, %v892
    %v898 = vmul.f32 1.0, %v897
    %v899 = vadd.f32 %v830, %v804
    %v900 = vxor.u32 %v899, 2147483648
    %v901 = vmul.f32 %v900, 1.442695
    %v902 = vpow.pop %v901
    %v903 = vadd.f32 %v902, 1.0
    %v904 = vrcp.pop %v903
    %v905 = vmul.f32 %v903, %v904
    %v906 = vsub.f32 1.0, %v905
    %v907 = vmul.f32 %v904, %v906
    %v908 = vadd.f32 %v904, %v907
    %vm909 = vweird.f32 %v903
    %vm910 = vweird.f32 %v904
    %vm911 = vmor %vm909, %vm910
    %v912 = vsel %vm911, %v904, %v908
    %v913 = vand.u32 2147483647, %v903
    %vm914 = vcmp.eq.f32.partialorder %v913, 8.507059e+37
    %v915 = vand.u32 %v903, 2147483648
    %v916 = vor.u32 1.1754944e-38, %v915
    %v917 = vsel %vm914, %v916, %v912
    %v918 = vmul.f32 1.0, %v917
    %v919 = vmul.f32 %v898, %v824
    %v920 = vadd.f32 %v831, %v919
    %v921 = vtanh.pop %v920
    %v922 = vsub.f32 1.0, %v918
    %v923 = vmul.f32 %v922, %v921
    %v924 = vmul.f32 %v918, 0.0
    %v925 = vadd.f32 %v923, %v924
    %926 = vst [vmem:[#allocation2] sm:$0xff] %v878
    %927 = vst [vmem:[#allocation2 + $0x78] sm:$0xff] %v925
    %928 = vmatpush.msra.mxu0 %v639
    %929 = vmatpush.msra.mxu0 %v636
    %930 = vmatpush.msra.mxu0 %v633
    %931 = vmatpush.msra.mxu0 %v630
    %932 = vmatpush.msra.mxu0 %v627
    %933 = vmatpush.msra.mxu0 %v624
    %934 = vmatpush.msra.mxu0 %v621
    %935 = vmatpush.msra.mxu0 %v618
    %936 = vmatpush.msra.mxu0 %v615
    %937 = vmatpush.msra.mxu0 %v612
    %938 = vmatpush.msra.mxu0 %v609
    %939 = vmatpush.msra.mxu0 %v606
    %940 = vmatpush.msra.mxu0 %v603
    %941 = vmatpush.msra.mxu0 %v600
    %942 = vmatpush.msra.mxu0 %v597
    %943 = vmatpush.msra.mxu0 %v594
    %944 = vmatmul.f32.gmra.mxu0 %v878
    %v945 = vpop.f32.mrf.mxu0
    %v946 = vadd.f32 %v693, %v945
    %947 = vdwg.mxu0
    %948 = vmatpush.msra.mxu0 %v640
    %949 = vmatpush.msra.mxu0 %v637
    %950 = vmatpush.msra.mxu0 %v634
    %951 = vmatpush.msra.mxu0 %v631
    %952 = vmatpush.msra.mxu0 %v628
    %953 = vmatpush.msra.mxu0 %v625
    %954 = vmatpush.msra.mxu0 %v622
    %955 = vmatpush.msra.mxu0 %v619
    %956 = vmatpush.msra.mxu0 %v616
    %957 = vmatpush.msra.mxu0 %v613
    %958 = vmatpush.msra.mxu0 %v610
    %959 = vmatpush.msra.mxu0 %v607
    %960 = vmatpush.msra.mxu0 %v604
    %961 = vmatpush.msra.mxu0 %v601
    %962 = vmatpush.msra.mxu0 %v598
    %963 = vmatpush.msra.mxu0 %v595
    %964 = vmatmul.f32.gmra.mxu0 %v878
    %v965 = vpop.f32.mrf.mxu0
    %v966 = vadd.f32 %v694, %v965
    %967 = vdwg.mxu0
    %968 = vmatpush.msra.mxu0 %v641
    %969 = vmatpush.msra.mxu0 %v638
    %970 = vmatpush.msra.mxu0 %v635
    %971 = vmatpush.msra.mxu0 %v632
    %972 = vmatpush.msra.mxu0 %v629
    %973 = vmatpush.msra.mxu0 %v626
    %974 = vmatpush.msra.mxu0 %v623
    %975 = vmatpush.msra.mxu0 %v620
    %976 = vmatpush.msra.mxu0 %v617
    %977 = vmatpush.msra.mxu0 %v614
    %978 = vmatpush.msra.mxu0 %v611
    %979 = vmatpush.msra.mxu0 %v608
    %980 = vmatpush.msra.mxu0 %v605
    %981 = vmatpush.msra.mxu0 %v602
    %982 = vmatpush.msra.mxu0 %v599
    %983 = vmatpush.msra.mxu0 %v596
    %984 = vmatmul.f32.gmra.mxu0 %v878
    %v985 = vpop.f32.mrf.mxu0
    %v986 = vadd.f32 %v695, %v985
    %987 = vdwg.mxu0
    %988 = vmatpush.msra.mxu0 %v687
    %989 = vmatpush.msra.mxu0 %v684
    %990 = vmatpush.msra.mxu0 %v681
    %991 = vmatpush.msra.mxu0 %v678
    %992 = vmatpush.msra.mxu0 %v675
    %993 = vmatpush.msra.mxu0 %v672
    %994 = vmatpush.msra.mxu0 %v669
    %995 = vmatpush.msra.mxu0 %v666
    %996 = vmatpush.msra.mxu0 %v663
    %997 = vmatpush.msra.mxu0 %v660
    %998 = vmatpush.msra.mxu0 %v657
    %999 = vmatpush.msra.mxu0 %v654
    %1000 = vmatpush.msra.mxu0 %v651
    %1001 = vmatpush.msra.mxu0 %v648
    %1002 = vmatpush.msra.mxu0 %v645
    %1003 = vmatpush.msra.mxu0 %v642
    %1004 = vmatmul.f32.gmra.mxu0 %v925
    %v1005 = vpop.f32.mrf.mxu0
    %v1006 = vadd.f32 %v760, %v1005
    %1007 = vdwg.mxu0
    %1008 = vmatpush.msra.mxu0 %v688
    %1009 = vmatpush.msra.mxu0 %v685
    %1010 = vmatpush.msra.mxu0 %v682
    %1011 = vmatpush.msra.mxu0 %v679
    %1012 = vmatpush.msra.mxu0 %v676
    %1013 = vmatpush.msra.mxu0 %v673
    %1014 = vmatpush.msra.mxu0 %v670
    %1015 = vmatpush.msra.mxu0 %v667
    %1016 = vmatpush.msra.mxu0 %v664
    %1017 = vmatpush.msra.mxu0 %v661
    %1018 = vmatpush.msra.mxu0 %v658
    %1019 = vmatpush.msra.mxu0 %v655
    %1020 = vmatpush.msra.mxu0 %v652
    %1021 = vmatpush.msra.mxu0 %v649
    %1022 = vmatpush.msra.mxu0 %v646
    %1023 = vmatpush.msra.mxu0 %v643
    %1024 = vmatmul.f32.gmra.mxu0 %v925
    %v1025 = vpop.f32.mrf.mxu0
    %v1026 = vadd.f32 %v761, %v1025
    %1027 = vdwg.mxu0
    %1028 = vmatpush.msra.mxu0 %v689
    %1029 = vmatpush.msra.mxu0 %v686
    %1030 = vmatpush.msra.mxu0 %v683
    %1031 = vmatpush.msra.mxu0 %v680
    %1032 = vmatpush.msra.mxu0 %v677
    %1033 = vmatpush.msra.mxu0 %v674
    %1034 = vmatpush.msra.mxu0 %v671
    %1035 = vmatpush.msra.mxu0 %v668
    %1036 = vmatpush.msra.mxu0 %v665
    %1037 = vmatpush.msra.mxu0 %v662
    %1038 = vmatpush.msra.mxu0 %v659
    %1039 = vmatpush.msra.mxu0 %v656
    %1040 = vmatpush.msra.mxu0 %v653
    %1041 = vmatpush.msra.mxu0 %v650
    %1042 = vmatpush.msra.mxu0 %v647
    %1043 = vmatpush.msra.mxu0 %v644
    %1044 = vmatmul.f32.gmra.mxu0 %v925
    %v1045 = vpop.f32.mrf.mxu0
    %v1046 = vadd.f32 %v762, %v1045
    %1047 = vdwg.mxu0
    %v1048 = vld [vmem:[#allocation3 + $0x18] sm:$0xff]
    %v1049 = vld [vmem:[#allocation3 + $0x20] sm:$0xff]
    %v1050 = vld [vmem:[#allocation3 + $0x28] sm:$0xff]
    %v1051 = vld [vmem:[#allocation4 + $0x90] sm:$0xff]
    %v1052 = vld [vmem:[#allocation4 + $0x98] sm:$0xff]
    %v1053 = vld [vmem:[#allocation4 + $0xa0] sm:$0xff]
    %v1054 = vadd.f32 %v1048, %v946
    %v1055 = vxor.u32 %v1054, 2147483648
    %v1056 = vmul.f32 %v1055, 1.442695
    %v1057 = vpow.pop %v1056
    %v1058 = vadd.f32 %v1057, 1.0
    %v1059 = vrcp.pop %v1058
    %v1060 = vmul.f32 %v1058, %v1059
    %v1061 = vsub.f32 1.0, %v1060
    %v1062 = vmul.f32 %v1059, %v1061
    %v1063 = vadd.f32 %v1059, %v1062
    %vm1064 = vweird.f32 %v1058
    %vm1065 = vweird.f32 %v1059
    %vm1066 = vmor %vm1064, %vm1065
    %v1067 = vsel %vm1066, %v1059, %v1063
    %v1068 = vand.u32 2147483647, %v1058
    %vm1069 = vcmp.eq.f32.partialorder %v1068, 8.507059e+37
    %v1070 = vand.u32 %v1058, 2147483648
    %v1071 = vor.u32 1.1754944e-38, %v1070
    %v1072 = vsel %vm1069, %v1071, %v1067
    %v1073 = vmul.f32 1.0, %v1072
    %v1074 = vadd.f32 %v1049, %v966
    %v1075 = vxor.u32 %v1074, 2147483648
    %v1076 = vmul.f32 %v1075, 1.442695
    %v1077 = vpow.pop %v1076
    %v1078 = vadd.f32 %v1077, 1.0
    %v1079 = vrcp.pop %v1078
    %v1080 = vmul.f32 %v1078, %v1079
    %v1081 = vsub.f32 1.0, %v1080
    %v1082 = vmul.f32 %v1079, %v1081
    %v1083 = vadd.f32 %v1079, %v1082
    %vm1084 = vweird.f32 %v1078
    %vm1085 = vweird.f32 %v1079
    %vm1086 = vmor %vm1084, %vm1085
    %v1087 = vsel %vm1086, %v1079, %v1083
    %v1088 = vand.u32 2147483647, %v1078
    %vm1089 = vcmp.eq.f32.partialorder %v1088, 8.507059e+37
    %v1090 = vand.u32 %v1078, 2147483648
    %v1091 = vor.u32 1.1754944e-38, %v1090
    %v1092 = vsel %vm1089, %v1091, %v1087
    %v1093 = vmul.f32 1.0, %v1092
    %v1094 = vmul.f32 %v1073, %v986
    %v1095 = vadd.f32 %v1050, %v1094
    %v1096 = vtanh.pop %v1095
    %v1097 = vsub.f32 1.0, %v1093
    %v1098 = vmul.f32 %v1097, %v1096
    %v1099 = vmul.f32 %v1093, %v878
    %v1100 = vadd.f32 %v1098, %v1099
    %v1101 = vadd.f32 %v1051, %v1006
    %v1102 = vxor.u32 %v1101, 2147483648
    %v1103 = vmul.f32 %v1102, 1.442695
    %v1104 = vpow.pop %v1103
    %v1105 = vadd.f32 %v1104, 1.0
    %v1106 = vrcp.pop %v1105
    %v1107 = vmul.f32 %v1105, %v1106
    %v1108 = vsub.f32 1.0, %v1107
    %v1109 = vmul.f32 %v1106, %v1108
    %v1110 = vadd.f32 %v1106, %v1109
    %vm1111 = vweird.f32 %v1105
    %vm1112 = vweird.f32 %v1106
    %vm1113 = vmor %vm1111, %vm1112
    %v1114 = vsel %vm1113, %v1106, %v1110
    %v1115 = vand.u32 2147483647, %v1105
    %vm1116 = vcmp.eq.f32.partialorder %v1115, 8.507059e+37
    %v1117 = vand.u32 %v1105, 2147483648
    %v1118 = vor.u32 1.1754944e-38, %v1117
    %v1119 = vsel %vm1116, %v1118, %v1114
    %v1120 = vmul.f32 1.0, %v1119
    %v1121 = vadd.f32 %v1052, %v1026
    %v1122 = vxor.u32 %v1121, 2147483648
    %v1123 = vmul.f32 %v1122, 1.442695
    %v1124 = vpow.pop %v1123
    %v1125 = vadd.f32 %v1124, 1.0
    %v1126 = vrcp.pop %v1125
    %v1127 = vmul.f32 %v1125, %v1126
    %v1128 = vsub.f32 1.0, %v1127
    %v1129 = vmul.f32 %v1126, %v1128
    %v1130 = vadd.f32 %v1126, %v1129
    %vm1131 = vweird.f32 %v1125
    %vm1132 = vweird.f32 %v1126
    %vm1133 = vmor %vm1131, %vm1132
    %v1134 = vsel %vm1133, %v1126, %v1130
    %v1135 = vand.u32 2147483647, %v1125
    %vm1136 = vcmp.eq.f32.partialorder %v1135, 8.507059e+37
    %v1137 = vand.u32 %v1125, 2147483648
    %v1138 = vor.u32 1.1754944e-38, %v1137
    %v1139 = vsel %vm1136, %v1138, %v1134
    %v1140 = vmul.f32 1.0, %v1139
    %v1141 = vmul.f32 %v1120, %v1046
    %v1142 = vadd.f32 %v1053, %v1141
    %v1143 = vtanh.pop %v1142
    %v1144 = vsub.f32 1.0, %v1140
    %v1145 = vmul.f32 %v1144, %v1143
    %v1146 = vmul.f32 %v1140, %v925
    %v1147 = vadd.f32 %v1145, %v1146
    %1148 = vst [vmem:[#allocation2 + $0x10] sm:$0xff] %v1100
    %1149 = vst [vmem:[#allocation2 + $0x68] sm:$0xff] %v1147
    %1150 = vmatpush.msra.mxu0 %v639
    %1151 = vmatpush.msra.mxu0 %v636
    %1152 = vmatpush.msra.mxu0 %v633
    %1153 = vmatpush.msra.mxu0 %v630
    %1154 = vmatpush.msra.mxu0 %v627
    %1155 = vmatpush.msra.mxu0 %v624
    %1156 = vmatpush.msra.mxu0 %v621
    %1157 = vmatpush.msra.mxu0 %v618
    %1158 = vmatpush.msra.mxu0 %v615
    %1159 = vmatpush.msra.mxu0 %v612
    %1160 = vmatpush.msra.mxu0 %v609
    %1161 = vmatpush.msra.mxu0 %v606
    %1162 = vmatpush.msra.mxu0 %v603
    %1163 = vmatpush.msra.mxu0 %v600
    %1164 = vmatpush.msra.mxu0 %v597
    %1165 = vmatpush.msra.mxu0 %v594
    %1166 = vmatmul.f32.gmra.mxu0 %v1100
    %v1167 = vpop.f32.mrf.mxu0
    %v1168 = vadd.f32 %v693, %v1167
    %1169 = vdwg.mxu0
    %1170 = vmatpush.msra.mxu0 %v640
    %1171 = vmatpush.msra.mxu0 %v637
    %1172 = vmatpush.msra.mxu0 %v634
    %1173 = vmatpush.msra.mxu0 %v631
    %1174 = vmatpush.msra.mxu0 %v628
    %1175 = vmatpush.msra.mxu0 %v625
    %1176 = vmatpush.msra.mxu0 %v622
    %1177 = vmatpush.msra.mxu0 %v619
    %1178 = vmatpush.msra.mxu0 %v616
    %1179 = vmatpush.msra.mxu0 %v613
    %1180 = vmatpush.msra.mxu0 %v610
    %1181 = vmatpush.msra.mxu0 %v607
    %1182 = vmatpush.msra.mxu0 %v604
    %1183 = vmatpush.msra.mxu0 %v601
    %1184 = vmatpush.msra.mxu0 %v598
    %1185 = vmatpush.msra.mxu0 %v595
    %1186 = vmatmul.f32.gmra.mxu0 %v1100
    %v1187 = vpop.f32.mrf.mxu0
    %v1188 = vadd.f32 %v694, %v1187
    %1189 = vdwg.mxu0
    %1190 = vmatpush.msra.mxu0 %v641
    %1191 = vmatpush.msra.mxu0 %v638
    %1192 = vmatpush.msra.mxu0 %v635
    %1193 = vmatpush.msra.mxu0 %v632
    %1194 = vmatpush.msra.mxu0 %v629
    %1195 = vmatpush.msra.mxu0 %v626
    %1196 = vmatpush.msra.mxu0 %v623
    %1197 = vmatpush.msra.mxu0 %v620
    %1198 = vmatpush.msra.mxu0 %v617
    %1199 = vmatpush.msra.mxu0 %v614
    %1200 = vmatpush.msra.mxu0 %v611
    %1201 = vmatpush.msra.mxu0 %v608
    %1202 = vmatpush.msra.mxu0 %v605
    %1203 = vmatpush.msra.mxu0 %v602
    %1204 = vmatpush.msra.mxu0 %v599
    %1205 = vmatpush.msra.mxu0 %v596
    %1206 = vmatmul.f32.gmra.mxu0 %v1100
    %v1207 = vpop.f32.mrf.mxu0
    %v1208 = vadd.f32 %v695, %v1207
    %1209 = vdwg.mxu0
    %1210 = vmatpush.msra.mxu0 %v687
    %1211 = vmatpush.msra.mxu0 %v684
    %1212 = vmatpush.msra.mxu0 %v681
    %1213 = vmatpush.msra.mxu0 %v678
    %1214 = vmatpush.msra.mxu0 %v675
    %1215 = vmatpush.msra.mxu0 %v672
    %1216 = vmatpush.msra.mxu0 %v669
    %1217 = vmatpush.msra.mxu0 %v666
    %1218 = vmatpush.msra.mxu0 %v663
    %1219 = vmatpush.msra.mxu0 %v660
    %1220 = vmatpush.msra.mxu0 %v657
    %1221 = vmatpush.msra.mxu0 %v654
    %1222 = vmatpush.msra.mxu0 %v651
    %1223 = vmatpush.msra.mxu0 %v648
    %1224 = vmatpush.msra.mxu0 %v645
    %1225 = vmatpush.msra.mxu0 %v642
    %1226 = vmatmul.f32.gmra.mxu0 %v1147
    %v1227 = vpop.f32.mrf.mxu0
    %v1228 = vadd.f32 %v760, %v1227
    %1229 = vdwg.mxu0
    %1230 = vmatpush.msra.mxu0 %v688
    %1231 = vmatpush.msra.mxu0 %v685
    %1232 = vmatpush.msra.mxu0 %v682
    %1233 = vmatpush.msra.mxu0 %v679
    %1234 = vmatpush.msra.mxu0 %v676
    %1235 = vmatpush.msra.mxu0 %v673
    %1236 = vmatpush.msra.mxu0 %v670
    %1237 = vmatpush.msra.mxu0 %v667
    %1238 = vmatpush.msra.mxu0 %v664
    %1239 = vmatpush.msra.mxu0 %v661
    %1240 = vmatpush.msra.mxu0 %v658
    %1241 = vmatpush.msra.mxu0 %v655
    %1242 = vmatpush.msra.mxu0 %v652
    %1243 = vmatpush.msra.mxu0 %v649
    %1244 = vmatpush.msra.mxu0 %v646
    %1245 = vmatpush.msra.mxu0 %v643
    %1246 = vmatmul.f32.gmra.mxu0 %v1147
    %v1247 = vpop.f32.mrf.mxu0
    %v1248 = vadd.f32 %v761, %v1247
    %1249 = vdwg.mxu0
    %1250 = vmatpush.msra.mxu0 %v689
    %1251 = vmatpush.msra.mxu0 %v686
    %1252 = vmatpush.msra.mxu0 %v683
    %1253 = vmatpush.msra.mxu0 %v680
    %1254 = vmatpush.msra.mxu0 %v677
    %1255 = vmatpush.msra.mxu0 %v674
    %1256 = vmatpush.msra.mxu0 %v671
    %1257 = vmatpush.msra.mxu0 %v668
    %1258 = vmatpush.msra.mxu0 %v665
    %1259 = vmatpush.msra.mxu0 %v662
    %1260 = vmatpush.msra.mxu0 %v659
    %1261 = vmatpush.msra.mxu0 %v656
    %1262 = vmatpush.msra.mxu0 %v653
    %1263 = vmatpush.msra.mxu0 %v650
    %1264 = vmatpush.msra.mxu0 %v647
    %1265 = vmatpush.msra.mxu0 %v644
    %1266 = vmatmul.f32.gmra.mxu0 %v1147
    %v1267 = vpop.f32.mrf.mxu0
    %v1268 = vadd.f32 %v762, %v1267
    %1269 = vdwg.mxu0
    %v1270 = vld [vmem:[#allocation3 + $0x30] sm:$0xff]
    %v1271 = vld [vmem:[#allocation3 + $0x38] sm:$0xff]
    %v1272 = vld [vmem:[#allocation3 + $0x40] sm:$0xff]
    %v1273 = vld [vmem:[#allocation4 + $0x78] sm:$0xff]
    %v1274 = vld [vmem:[#allocation4 + $0x80] sm:$0xff]
    %v1275 = vld [vmem:[#allocation4 + $0x88] sm:$0xff]
    %v1276 = vadd.f32 %v1270, %v1168
    %v1277 = vxor.u32 %v1276, 2147483648
    %v1278 = vmul.f32 %v1277, 1.442695
    %v1279 = vpow.pop %v1278
    %v1280 = vadd.f32 %v1279, 1.0
    %v1281 = vrcp.pop %v1280
    %v1282 = vmul.f32 %v1280, %v1281
    %v1283 = vsub.f32 1.0, %v1282
    %v1284 = vmul.f32 %v1281, %v1283
    %v1285 = vadd.f32 %v1281, %v1284
    %vm1286 = vweird.f32 %v1280
    %vm1287 = vweird.f32 %v1281
    %vm1288 = vmor %vm1286, %vm1287
    %v1289 = vsel %vm1288, %v1281, %v1285
    %v1290 = vand.u32 2147483647, %v1280
    %vm1291 = vcmp.eq.f32.partialorder %v1290, 8.507059e+37
    %v1292 = vand.u32 %v1280, 2147483648
    %v1293 = vor.u32 1.1754944e-38, %v1292
    %v1294 = vsel %vm1291, %v1293, %v1289
    %v1295 = vmul.f32 1.0, %v1294
    %v1296 = vadd.f32 %v1271, %v1188
    %v1297 = vxor.u32 %v1296, 2147483648
    %v1298 = vmul.f32 %v1297, 1.442695
    %v1299 = vpow.pop %v1298
    %v1300 = vadd.f32 %v1299, 1.0
    %v1301 = vrcp.pop %v1300
    %v1302 = vmul.f32 %v1300, %v1301
    %v1303 = vsub.f32 1.0, %v1302
    %v1304 = vmul.f32 %v1301, %v1303
    %v1305 = vadd.f32 %v1301, %v1304
    %vm1306 = vweird.f32 %v1300
    %vm1307 = vweird.f32 %v1301
    %vm1308 = vmor %vm1306, %vm1307
    %v1309 = vsel %vm1308, %v1301, %v1305
    %v1310 = vand.u32 2147483647, %v1300
    %vm1311 = vcmp.eq.f32.partialorder %v1310, 8.507059e+37
    %v1312 = vand.u32 %v1300, 2147483648
    %v1313 = vor.u32 1.1754944e-38, %v1312
    %v1314 = vsel %vm1311, %v1313, %v1309
    %v1315 = vmul.f32 1.0, %v1314
    %v1316 = vmul.f32 %v1295, %v1208
    %v1317 = vadd.f32 %v1272, %v1316
    %v1318 = vtanh.pop %v1317
    %v1319 = vsub.f32 1.0, %v1315
    %v1320 = vmul.f32 %v1319, %v1318
    %v1321 = vmul.f32 %v1315, %v1100
    %v1322 = vadd.f32 %v1320, %v1321
    %v1323 = vadd.f32 %v1273, %v1228
    %v1324 = vxor.u32 %v1323, 2147483648
    %v1325 = vmul.f32 %v1324, 1.442695
    %v1326 = vpow.pop %v1325
    %v1327 = vadd.f32 %v1326, 1.0
    %v1328 = vrcp.pop %v1327
    %v1329 = vmul.f32 %v1327, %v1328
    %v1330 = vsub.f32 1.0, %v1329
    %v1331 = vmul.f32 %v1328, %v1330
    %v1332 = vadd.f32 %v1328, %v1331
    %vm1333 = vweird.f32 %v1327
    %vm1334 = vweird.f32 %v1328
    %vm1335 = vmor %vm1333, %vm1334
    %v1336 = vsel %vm1335, %v1328, %v1332
    %v1337 = vand.u32 2147483647, %v1327
    %vm1338 = vcmp.eq.f32.partialorder %v1337, 8.507059e+37
    %v1339 = vand.u32 %v1327, 2147483648
    %v1340 = vor.u32 1.1754944e-38, %v1339
    %v1341 = vsel %vm1338, %v1340, %v1336
    %v1342 = vmul.f32 1.0, %v1341
    %v1343 = vadd.f32 %v1274, %v1248
    %v1344 = vxor.u32 %v1343, 2147483648
    %v1345 = vmul.f32 %v1344, 1.442695
    %v1346 = vpow.pop %v1345
    %v1347 = vadd.f32 %v1346, 1.0
    %v1348 = vrcp.pop %v1347
    %v1349 = vmul.f32 %v1347, %v1348
    %v1350 = vsub.f32 1.0, %v1349
    %v1351 = vmul.f32 %v1348, %v1350
    %v1352 = vadd.f32 %v1348, %v1351
    %vm1353 = vweird.f32 %v1347
    %vm1354 = vweird.f32 %v1348
    %vm1355 = vmor %vm1353, %vm1354
    %v1356 = vsel %vm1355, %v1348, %v1352
    %v1357 = vand.u32 2147483647, %v1347
    %vm1358 = vcmp.eq.f32.partialorder %v1357, 8.507059e+37
    %v1359 = vand.u32 %v1347, 2147483648
    %v1360 = vor.u32 1.1754944e-38, %v1359
    %v1361 = vsel %vm1358, %v1360, %v1356
    %v1362 = vmul.f32 1.0, %v1361
    %v1363 = vmul.f32 %v1342, %v1268
    %v1364 = vadd.f32 %v1275, %v1363
    %v1365 = vtanh.pop %v1364
    %v1366 = vsub.f32 1.0, %v1362
    %v1367 = vmul.f32 %v1366, %v1365
    %v1368 = vmul.f32 %v1362, %v1147
    %v1369 = vadd.f32 %v1367, %v1368
    %1370 = vst [vmem:[#allocation2 + $0x20] sm:$0xff] %v1322
    %1371 = vst [vmem:[#allocation2 + $0x58] sm:$0xff] %v1369
    %1372 = vmatpush.msra.mxu0 %v639
    %1373 = vmatpush.msra.mxu0 %v636
    %1374 = vmatpush.msra.mxu0 %v633
    %1375 = vmatpush.msra.mxu0 %v630
    %1376 = vmatpush.msra.mxu0 %v627
    %1377 = vmatpush.msra.mxu0 %v624
    %1378 = vmatpush.msra.mxu0 %v621
    %1379 = vmatpush.msra.mxu0 %v618
    %1380 = vmatpush.msra.mxu0 %v615
    %1381 = vmatpush.msra.mxu0 %v612
    %1382 = vmatpush.msra.mxu0 %v609
    %1383 = vmatpush.msra.mxu0 %v606
    %1384 = vmatpush.msra.mxu0 %v603
    %1385 = vmatpush.msra.mxu0 %v600
    %1386 = vmatpush.msra.mxu0 %v597
    %1387 = vmatpush.msra.mxu0 %v594
    %1388 = vmatmul.f32.gmra.mxu0 %v1322
    %v1389 = vpop.f32.mrf.mxu0
    %v1390 = vadd.f32 %v693, %v1389
    %1391 = vdwg.mxu0
    %1392 = vmatpush.msra.mxu0 %v640
    %1393 = vmatpush.msra.mxu0 %v637
    %1394 = vmatpush.msra.mxu0 %v634
    %1395 = vmatpush.msra.mxu0 %v631
    %1396 = vmatpush.msra.mxu0 %v628
    %1397 = vmatpush.msra.mxu0 %v625
    %1398 = vmatpush.msra.mxu0 %v622
    %1399 = vmatpush.msra.mxu0 %v619
    %1400 = vmatpush.msra.mxu0 %v616
    %1401 = vmatpush.msra.mxu0 %v613
    %1402 = vmatpush.msra.mxu0 %v610
    %1403 = vmatpush.msra.mxu0 %v607
    %1404 = vmatpush.msra.mxu0 %v604
    %1405 = vmatpush.msra.mxu0 %v601
    %1406 = vmatpush.msra.mxu0 %v598
    %1407 = vmatpush.msra.mxu0 %v595
    %1408 = vmatmul.f32.gmra.mxu0 %v1322
    %v1409 = vpop.f32.mrf.mxu0
    %v1410 = vadd.f32 %v694, %v1409
    %1411 = vdwg.mxu0
    %1412 = vmatpush.msra.mxu0 %v641
    %1413 = vmatpush.msra.mxu0 %v638
    %1414 = vmatpush.msra.mxu0 %v635
    %1415 = vmatpush.msra.mxu0 %v632
    %1416 = vmatpush.msra.mxu0 %v629
    %1417 = vmatpush.msra.mxu0 %v626
    %1418 = vmatpush.msra.mxu0 %v623
    %1419 = vmatpush.msra.mxu0 %v620
    %1420 = vmatpush.msra.mxu0 %v617
    %1421 = vmatpush.msra.mxu0 %v614
    %1422 = vmatpush.msra.mxu0 %v611
    %1423 = vmatpush.msra.mxu0 %v608
    %1424 = vmatpush.msra.mxu0 %v605
    %1425 = vmatpush.msra.mxu0 %v602
    %1426 = vmatpush.msra.mxu0 %v599
    %1427 = vmatpush.msra.mxu0 %v596
    %1428 = vmatmul.f32.gmra.mxu0 %v1322
    %v1429 = vpop.f32.mrf.mxu0
    %v1430 = vadd.f32 %v695, %v1429
    %1431 = vdwg.mxu0
    %1432 = vmatpush.msra.mxu0 %v687
    %1433 = vmatpush.msra.mxu0 %v684
    %1434 = vmatpush.msra.mxu0 %v681
    %1435 = vmatpush.msra.mxu0 %v678
    %1436 = vmatpush.msra.mxu0 %v675
    %1437 = vmatpush.msra.mxu0 %v672
    %1438 = vmatpush.msra.mxu0 %v669
    %1439 = vmatpush.msra.mxu0 %v666
    %1440 = vmatpush.msra.mxu0 %v663
    %1441 = vmatpush.msra.mxu0 %v660
    %1442 = vmatpush.msra.mxu0 %v657
    %1443 = vmatpush.msra.mxu0 %v654
    %1444 = vmatpush.msra.mxu0 %v651
    %1445 = vmatpush.msra.mxu0 %v648
    %1446 = vmatpush.msra.mxu0 %v645
    %1447 = vmatpush.msra.mxu0 %v642
    %1448 = vmatmul.f32.gmra.mxu0 %v1369
    %v1449 = vpop.f32.mrf.mxu0
    %v1450 = vadd.f32 %v760, %v1449
    %1451 = vdwg.mxu0
    %1452 = vmatpush.msra.mxu0 %v688
    %1453 = vmatpush.msra.mxu0 %v685
    %1454 = vmatpush.msra.mxu0 %v682
    %1455 = vmatpush.msra.mxu0 %v679
    %1456 = vmatpush.msra.mxu0 %v676
    %1457 = vmatpush.msra.mxu0 %v673
    %1458 = vmatpush.msra.mxu0 %v670
    %1459 = vmatpush.msra.mxu0 %v667
    %1460 = vmatpush.msra.mxu0 %v664
    %1461 = vmatpush.msra.mxu0 %v661
    %1462 = vmatpush.msra.mxu0 %v658
    %1463 = vmatpush.msra.mxu0 %v655
    %1464 = vmatpush.msra.mxu0 %v652
    %1465 = vmatpush.msra.mxu0 %v649
    %1466 = vmatpush.msra.mxu0 %v646
    %1467 = vmatpush.msra.mxu0 %v643
    %1468 = vmatmul.f32.gmra.mxu0 %v1369
    %v1469 = vpop.f32.mrf.mxu0
    %v1470 = vadd.f32 %v761, %v1469
    %1471 = vdwg.mxu0
    %1472 = vmatpush.msra.mxu0 %v689
    %1473 = vmatpush.msra.mxu0 %v686
    %1474 = vmatpush.msra.mxu0 %v683
    %1475 = vmatpush.msra.mxu0 %v680
    %1476 = vmatpush.msra.mxu0 %v677
    %1477 = vmatpush.msra.mxu0 %v674
    %1478 = vmatpush.msra.mxu0 %v671
    %1479 = vmatpush.msra.mxu0 %v668
    %1480 = vmatpush.msra.mxu0 %v665
    %1481 = vmatpush.msra.mxu0 %v662
    %1482 = vmatpush.msra.mxu0 %v659
    %1483 = vmatpush.msra.mxu0 %v656
    %1484 = vmatpush.msra.mxu0 %v653
    %1485 = vmatpush.msra.mxu0 %v650
    %1486 = vmatpush.msra.mxu0 %v647
    %1487 = vmatpush.msra.mxu0 %v644
    %1488 = vmatmul.f32.gmra.mxu0 %v1369
    %v1489 = vpop.f32.mrf.mxu0
    %v1490 = vadd.f32 %v762, %v1489
    %1491 = vdwg.mxu0
    %v1492 = vld [vmem:[#allocation3 + $0x48] sm:$0xff]
    %v1493 = vld [vmem:[#allocation3 + $0x50] sm:$0xff]
    %v1494 = vld [vmem:[#allocation3 + $0x58] sm:$0xff]
    %v1495 = vld [vmem:[#allocation4 + $0x60] sm:$0xff]
    %v1496 = vld [vmem:[#allocation4 + $0x68] sm:$0xff]
    %v1497 = vld [vmem:[#allocation4 + $0x70] sm:$0xff]
    %v1498 = vadd.f32 %v1492, %v1390
    %v1499 = vxor.u32 %v1498, 2147483648
    %v1500 = vmul.f32 %v1499, 1.442695
    %v1501 = vpow.pop %v1500
    %v1502 = vadd.f32 %v1501, 1.0
    %v1503 = vrcp.pop %v1502
    %v1504 = vmul.f32 %v1502, %v1503
    %v1505 = vsub.f32 1.0, %v1504
    %v1506 = vmul.f32 %v1503, %v1505
    %v1507 = vadd.f32 %v1503, %v1506
    %vm1508 = vweird.f32 %v1502
    %vm1509 = vweird.f32 %v1503
    %vm1510 = vmor %vm1508, %vm1509
    %v1511 = vsel %vm1510, %v1503, %v1507
    %v1512 = vand.u32 2147483647, %v1502
    %vm1513 = vcmp.eq.f32.partialorder %v1512, 8.507059e+37
    %v1514 = vand.u32 %v1502, 2147483648
    %v1515 = vor.u32 1.1754944e-38, %v1514
    %v1516 = vsel %vm1513, %v1515, %v1511
    %v1517 = vmul.f32 1.0, %v1516
    %v1518 = vadd.f32 %v1493, %v1410
    %v1519 = vxor.u32 %v1518, 2147483648
    %v1520 = vmul.f32 %v1519, 1.442695
    %v1521 = vpow.pop %v1520
    %v1522 = vadd.f32 %v1521, 1.0
    %v1523 = vrcp.pop %v1522
    %v1524 = vmul.f32 %v1522, %v1523
    %v1525 = vsub.f32 1.0, %v1524
    %v1526 = vmul.f32 %v1523, %v1525
    %v1527 = vadd.f32 %v1523, %v1526
    %vm1528 = vweird.f32 %v1522
    %vm1529 = vweird.f32 %v1523
    %vm1530 = vmor %vm1528, %vm1529
    %v1531 = vsel %vm1530, %v1523, %v1527
    %v1532 = vand.u32 2147483647, %v1522
    %vm1533 = vcmp.eq.f32.partialorder %v1532, 8.507059e+37
    %v1534 = vand.u32 %v1522, 2147483648
    %v1535 = vor.u32 1.1754944e-38, %v1534
    %v1536 = vsel %vm1533, %v1535, %v1531
    %v1537 = vmul.f32 1.0, %v1536
    %v1538 = vmul.f32 %v1517, %v1430
    %v1539 = vadd.f32 %v1494, %v1538
    %v1540 = vtanh.pop %v1539
    %v1541 = vsub.f32 1.0, %v1537
    %v1542 = vmul.f32 %v1541, %v1540
    %v1543 = vmul.f32 %v1537, %v1322
    %v1544 = vadd.f32 %v1542, %v1543
    %v1545 = vadd.f32 %v1495, %v1450
    %v1546 = vxor.u32 %v1545, 2147483648
    %v1547 = vmul.f32 %v1546, 1.442695
    %v1548 = vpow.pop %v1547
    %v1549 = vadd.f32 %v1548, 1.0
    %v1550 = vrcp.pop %v1549
    %v1551 = vmul.f32 %v1549, %v1550
    %v1552 = vsub.f32 1.0, %v1551
    %v1553 = vmul.f32 %v1550, %v1552
    %v1554 = vadd.f32 %v1550, %v1553
    %vm1555 = vweird.f32 %v1549
    %vm1556 = vweird.f32 %v1550
    %vm1557 = vmor %vm1555, %vm1556
    %v1558 = vsel %vm1557, %v1550, %v1554
    %v1559 = vand.u32 2147483647, %v1549
    %vm1560 = vcmp.eq.f32.partialorder %v1559, 8.507059e+37
    %v1561 = vand.u32 %v1549, 2147483648
    %v1562 = vor.u32 1.1754944e-38, %v1561
    %v1563 = vsel %vm1560, %v1562, %v1558
    %v1564 = vmul.f32 1.0, %v1563
    %v1565 = vadd.f32 %v1496, %v1470
    %v1566 = vxor.u32 %v1565, 2147483648
    %v1567 = vmul.f32 %v1566, 1.442695
    %v1568 = vpow.pop %v1567
    %v1569 = vadd.f32 %v1568, 1.0
    %v1570 = vrcp.pop %v1569
    %v1571 = vmul.f32 %v1569, %v1570
    %v1572 = vsub.f32 1.0, %v1571
    %v1573 = vmul.f32 %v1570, %v1572
    %v1574 = vadd.f32 %v1570, %v1573
    %vm1575 = vweird.f32 %v1569
    %vm1576 = vweird.f32 %v1570
    %vm1577 = vmor %vm1575, %vm1576
    %v1578 = vsel %vm1577, %v1570, %v1574
    %v1579 = vand.u32 2147483647, %v1569
    %vm1580 = vcmp.eq.f32.partialorder %v1579, 8.507059e+37
    %v1581 = vand.u32 %v1569, 2147483648
    %v1582 = vor.u32 1.1754944e-38, %v1581
    %v1583 = vsel %vm1580, %v1582, %v1578
    %v1584 = vmul.f32 1.0, %v1583
    %v1585 = vmul.f32 %v1564, %v1490
    %v1586 = vadd.f32 %v1497, %v1585
    %v1587 = vtanh.pop %v1586
    %v1588 = vsub.f32 1.0, %v1584
    %v1589 = vmul.f32 %v1588, %v1587
    %v1590 = vmul.f32 %v1584, %v1369
    %v1591 = vadd.f32 %v1589, %v1590
    %1592 = vst [vmem:[#allocation2 + $0x30] sm:$0xff] %v1544
    %1593 = vst [vmem:[#allocation2 + $0x48] sm:$0xff] %v1591
    %1594 = vmatpush.msra.mxu0 %v639
    %1595 = vmatpush.msra.mxu0 %v636
    %1596 = vmatpush.msra.mxu0 %v633
    %1597 = vmatpush.msra.mxu0 %v630
    %1598 = vmatpush.msra.mxu0 %v627
    %1599 = vmatpush.msra.mxu0 %v624
    %1600 = vmatpush.msra.mxu0 %v621
    %1601 = vmatpush.msra.mxu0 %v618
    %1602 = vmatpush.msra.mxu0 %v615
    %1603 = vmatpush.msra.mxu0 %v612
    %1604 = vmatpush.msra.mxu0 %v609
    %1605 = vmatpush.msra.mxu0 %v606
    %1606 = vmatpush.msra.mxu0 %v603
    %1607 = vmatpush.msra.mxu0 %v600
    %1608 = vmatpush.msra.mxu0 %v597
    %1609 = vmatpush.msra.mxu0 %v594
    %1610 = vmatmul.f32.gmra.mxu0 %v1544
    %v1611 = vpop.f32.mrf.mxu0
    %v1612 = vadd.f32 %v693, %v1611
    %1613 = vdwg.mxu0
    %1614 = vmatpush.msra.mxu0 %v640
    %1615 = vmatpush.msra.mxu0 %v637
    %1616 = vmatpush.msra.mxu0 %v634
    %1617 = vmatpush.msra.mxu0 %v631
    %1618 = vmatpush.msra.mxu0 %v628
    %1619 = vmatpush.msra.mxu0 %v625
    %1620 = vmatpush.msra.mxu0 %v622
    %1621 = vmatpush.msra.mxu0 %v619
    %1622 = vmatpush.msra.mxu0 %v616
    %1623 = vmatpush.msra.mxu0 %v613
    %1624 = vmatpush.msra.mxu0 %v610
    %1625 = vmatpush.msra.mxu0 %v607
    %1626 = vmatpush.msra.mxu0 %v604
    %1627 = vmatpush.msra.mxu0 %v601
    %1628 = vmatpush.msra.mxu0 %v598
    %1629 = vmatpush.msra.mxu0 %v595
    %1630 = vmatmul.f32.gmra.mxu0 %v1544
    %v1631 = vpop.f32.mrf.mxu0
    %v1632 = vadd.f32 %v694, %v1631
    %1633 = vdwg.mxu0
    %1634 = vmatpush.msra.mxu0 %v641
    %1635 = vmatpush.msra.mxu0 %v638
    %1636 = vmatpush.msra.mxu0 %v635
    %1637 = vmatpush.msra.mxu0 %v632
    %1638 = vmatpush.msra.mxu0 %v629
    %1639 = vmatpush.msra.mxu0 %v626
    %1640 = vmatpush.msra.mxu0 %v623
    %1641 = vmatpush.msra.mxu0 %v620
    %1642 = vmatpush.msra.mxu0 %v617
    %1643 = vmatpush.msra.mxu0 %v614
    %1644 = vmatpush.msra.mxu0 %v611
    %1645 = vmatpush.msra.mxu0 %v608
    %1646 = vmatpush.msra.mxu0 %v605
    %1647 = vmatpush.msra.mxu0 %v602
    %1648 = vmatpush.msra.mxu0 %v599
    %1649 = vmatpush.msra.mxu0 %v596
    %1650 = vmatmul.f32.gmra.mxu0 %v1544
    %v1651 = vpop.f32.mrf.mxu0
    %v1652 = vadd.f32 %v695, %v1651
    %1653 = vdwg.mxu0
    %1654 = vmatpush.msra.mxu0 %v687
    %1655 = vmatpush.msra.mxu0 %v684
    %1656 = vmatpush.msra.mxu0 %v681
    %1657 = vmatpush.msra.mxu0 %v678
    %1658 = vmatpush.msra.mxu0 %v675
    %1659 = vmatpush.msra.mxu0 %v672
    %1660 = vmatpush.msra.mxu0 %v669
    %1661 = vmatpush.msra.mxu0 %v666
    %1662 = vmatpush.msra.mxu0 %v663
    %1663 = vmatpush.msra.mxu0 %v660
    %1664 = vmatpush.msra.mxu0 %v657
    %1665 = vmatpush.msra.mxu0 %v654
    %1666 = vmatpush.msra.mxu0 %v651
    %1667 = vmatpush.msra.mxu0 %v648
    %1668 = vmatpush.msra.mxu0 %v645
    %1669 = vmatpush.msra.mxu0 %v642
    %1670 = vmatmul.f32.gmra.mxu0 %v1591
    %v1671 = vpop.f32.mrf.mxu0
    %v1672 = vadd.f32 %v760, %v1671
    %1673 = vdwg.mxu0
    %1674 = vmatpush.msra.mxu0 %v688
    %1675 = vmatpush.msra.mxu0 %v685
    %1676 = vmatpush.msra.mxu0 %v682
    %1677 = vmatpush.msra.mxu0 %v679
    %1678 = vmatpush.msra.mxu0 %v676
    %1679 = vmatpush.msra.mxu0 %v673
    %1680 = vmatpush.msra.mxu0 %v670
    %1681 = vmatpush.msra.mxu0 %v667
    %1682 = vmatpush.msra.mxu0 %v664
    %1683 = vmatpush.msra.mxu0 %v661
    %1684 = vmatpush.msra.mxu0 %v658
    %1685 = vmatpush.msra.mxu0 %v655
    %1686 = vmatpush.msra.mxu0 %v652
    %1687 = vmatpush.msra.mxu0 %v649
    %1688 = vmatpush.msra.mxu0 %v646
    %1689 = vmatpush.msra.mxu0 %v643
    %1690 = vmatmul.f32.gmra.mxu0 %v1591
    %v1691 = vpop.f32.mrf.mxu0
    %v1692 = vadd.f32 %v761, %v1691
    %1693 = vdwg.mxu0
    %1694 = vmatpush.msra.mxu0 %v689
    %1695 = vmatpush.msra.mxu0 %v686
    %1696 = vmatpush.msra.mxu0 %v683
    %1697 = vmatpush.msra.mxu0 %v680
    %1698 = vmatpush.msra.mxu0 %v677
    %1699 = vmatpush.msra.mxu0 %v674
    %1700 = vmatpush.msra.mxu0 %v671
    %1701 = vmatpush.msra.mxu0 %v668
    %1702 = vmatpush.msra.mxu0 %v665
    %1703 = vmatpush.msra.mxu0 %v662
    %1704 = vmatpush.msra.mxu0 %v659
    %1705 = vmatpush.msra.mxu0 %v656
    %1706 = vmatpush.msra.mxu0 %v653
    %1707 = vmatpush.msra.mxu0 %v650
    %1708 = vmatpush.msra.mxu0 %v647
    %1709 = vmatpush.msra.mxu0 %v644
    %1710 = vmatmul.f32.gmra.mxu0 %v1591
    %v1711 = vpop.f32.mrf.mxu0
    %v1712 = vadd.f32 %v762, %v1711
    %1713 = vdwg.mxu0
    %v1714 = vld [vmem:[#allocation3 + $0x60] sm:$0xff]
    %v1715 = vld [vmem:[#allocation3 + $0x68] sm:$0xff]
    %v1716 = vld [vmem:[#allocation3 + $0x70] sm:$0xff]
    %v1717 = vld [vmem:[#allocation4 + $0x48] sm:$0xff]
    %v1718 = vld [vmem:[#allocation4 + $0x50] sm:$0xff]
    %v1719 = vld [vmem:[#allocation4 + $0x58] sm:$0xff]
    %v1720 = vadd.f32 %v1714, %v1612
    %v1721 = vxor.u32 %v1720, 2147483648
    %v1722 = vmul.f32 %v1721, 1.442695
    %v1723 = vpow.pop %v1722
    %v1724 = vadd.f32 %v1723, 1.0
    %v1725 = vrcp.pop %v1724
    %v1726 = vmul.f32 %v1724, %v1725
    %v1727 = vsub.f32 1.0, %v1726
    %v1728 = vmul.f32 %v1725, %v1727
    %v1729 = vadd.f32 %v1725, %v1728
    %vm1730 = vweird.f32 %v1724
    %vm1731 = vweird.f32 %v1725
    %vm1732 = vmor %vm1730, %vm1731
    %v1733 = vsel %vm1732, %v1725, %v1729
    %v1734 = vand.u32 2147483647, %v1724
    %vm1735 = vcmp.eq.f32.partialorder %v1734, 8.507059e+37
    %v1736 = vand.u32 %v1724, 2147483648
    %v1737 = vor.u32 1.1754944e-38, %v1736
    %v1738 = vsel %vm1735, %v1737, %v1733
    %v1739 = vmul.f32 1.0, %v1738
    %v1740 = vadd.f32 %v1715, %v1632
    %v1741 = vxor.u32 %v1740, 2147483648
    %v1742 = vmul.f32 %v1741, 1.442695
    %v1743 = vpow.pop %v1742
    %v1744 = vadd.f32 %v1743, 1.0
    %v1745 = vrcp.pop %v1744
    %v1746 = vmul.f32 %v1744, %v1745
    %v1747 = vsub.f32 1.0, %v1746
    %v1748 = vmul.f32 %v1745, %v1747
    %v1749 = vadd.f32 %v1745, %v1748
    %vm1750 = vweird.f32 %v1744
    %vm1751 = vweird.f32 %v1745
    %vm1752 = vmor %vm1750, %vm1751
    %v1753 = vsel %vm1752, %v1745, %v1749
    %v1754 = vand.u32 2147483647, %v1744
    %vm1755 = vcmp.eq.f32.partialorder %v1754, 8.507059e+37
    %v1756 = vand.u32 %v1744, 2147483648
    %v1757 = vor.u32 1.1754944e-38, %v1756
    %v1758 = vsel %vm1755, %v1757, %v1753
    %v1759 = vmul.f32 1.0, %v1758
    %v1760 = vmul.f32 %v1739, %v1652
    %v1761 = vadd.f32 %v1716, %v1760
    %v1762 = vtanh.pop %v1761
    %v1763 = vsub.f32 1.0, %v1759
    %v1764 = vmul.f32 %v1763, %v1762
    %v1765 = vmul.f32 %v1759, %v1544
    %v1766 = vadd.f32 %v1764, %v1765
    %v1767 = vadd.f32 %v1717, %v1672
    %v1768 = vxor.u32 %v1767, 2147483648
    %v1769 = vmul.f32 %v1768, 1.442695
    %v1770 = vpow.pop %v1769
    %v1771 = vadd.f32 %v1770, 1.0
    %v1772 = vrcp.pop %v1771
    %v1773 = vmul.f32 %v1771, %v1772
    %v1774 = vsub.f32 1.0, %v1773
    %v1775 = vmul.f32 %v1772, %v1774
    %v1776 = vadd.f32 %v1772, %v1775
    %vm1777 = vweird.f32 %v1771
    %vm1778 = vweird.f32 %v1772
    %vm1779 = vmor %vm1777, %vm1778
    %v1780 = vsel %vm1779, %v1772, %v1776
    %v1781 = vand.u32 2147483647, %v1771
    %vm1782 = vcmp.eq.f32.partialorder %v1781, 8.507059e+37
    %v1783 = vand.u32 %v1771, 2147483648
    %v1784 = vor.u32 1.1754944e-38, %v1783
    %v1785 = vsel %vm1782, %v1784, %v1780
    %v1786 = vmul.f32 1.0, %v1785
    %v1787 = vadd.f32 %v1718, %v1692
    %v1788 = vxor.u32 %v1787, 2147483648
    %v1789 = vmul.f32 %v1788, 1.442695
    %v1790 = vpow.pop %v1789
    %v1791 = vadd.f32 %v1790, 1.0
    %v1792 = vrcp.pop %v1791
    %v1793 = vmul.f32 %v1791, %v1792
    %v1794 = vsub.f32 1.0, %v1793
    %v1795 = vmul.f32 %v1792, %v1794
    %v1796 = vadd.f32 %v1792, %v1795
    %vm1797 = vweird.f32 %v1791
    %vm1798 = vweird.f32 %v1792
    %vm1799 = vmor %vm1797, %vm1798
    %v1800 = vsel %vm1799, %v1792, %v1796
    %v1801 = vand.u32 2147483647, %v1791
    %vm1802 = vcmp.eq.f32.partialorder %v1801, 8.507059e+37
    %v1803 = vand.u32 %v1791, 2147483648
    %v1804 = vor.u32 1.1754944e-38, %v1803
    %v1805 = vsel %vm1802, %v1804, %v1800
    %v1806 = vmul.f32 1.0, %v1805
    %v1807 = vmul.f32 %v1786, %v1712
    %v1808 = vadd.f32 %v1719, %v1807
    %v1809 = vtanh.pop %v1808
    %v1810 = vsub.f32 1.0, %v1806
    %v1811 = vmul.f32 %v1810, %v1809
    %v1812 = vmul.f32 %v1806, %v1591
    %v1813 = vadd.f32 %v1811, %v1812
    %1814 = vst [vmem:[#allocation2 + $0x40] sm:$0xff] %v1766
    %1815 = vst [vmem:[#allocation2 + $0x38] sm:$0xff] %v1813
    %1816 = vmatpush.msra.mxu0 %v639
    %1817 = vmatpush.msra.mxu0 %v636
    %1818 = vmatpush.msra.mxu0 %v633
    %1819 = vmatpush.msra.mxu0 %v630
    %1820 = vmatpush.msra.mxu0 %v627
    %1821 = vmatpush.msra.mxu0 %v624
    %1822 = vmatpush.msra.mxu0 %v621
    %1823 = vmatpush.msra.mxu0 %v618
    %1824 = vmatpush.msra.mxu0 %v615
    %1825 = vmatpush.msra.mxu0 %v612
    %1826 = vmatpush.msra.mxu0 %v609
    %1827 = vmatpush.msra.mxu0 %v606
    %1828 = vmatpush.msra.mxu0 %v603
    %1829 = vmatpush.msra.mxu0 %v600
    %1830 = vmatpush.msra.mxu0 %v597
    %1831 = vmatpush.msra.mxu0 %v594
    %1832 = vmatmul.f32.gmra.mxu0 %v1766
    %v1833 = vpop.f32.mrf.mxu0
    %v1834 = vadd.f32 %v693, %v1833
    %1835 = vdwg.mxu0
    %1836 = vmatpush.msra.mxu0 %v640
    %1837 = vmatpush.msra.mxu0 %v637
    %1838 = vmatpush.msra.mxu0 %v634
    %1839 = vmatpush.msra.mxu0 %v631
    %1840 = vmatpush.msra.mxu0 %v628
    %1841 = vmatpush.msra.mxu0 %v625
    %1842 = vmatpush.msra.mxu0 %v622
    %1843 = vmatpush.msra.mxu0 %v619
    %1844 = vmatpush.msra.mxu0 %v616
    %1845 = vmatpush.msra.mxu0 %v613
    %1846 = vmatpush.msra.mxu0 %v610
    %1847 = vmatpush.msra.mxu0 %v607
    %1848 = vmatpush.msra.mxu0 %v604
    %1849 = vmatpush.msra.mxu0 %v601
    %1850 = vmatpush.msra.mxu0 %v598
    %1851 = vmatpush.msra.mxu0 %v595
    %1852 = vmatmul.f32.gmra.mxu0 %v1766
    %v1853 = vpop.f32.mrf.mxu0
    %v1854 = vadd.f32 %v694, %v1853
    %1855 = vdwg.mxu0
    %1856 = vmatpush.msra.mxu0 %v641
    %1857 = vmatpush.msra.mxu0 %v638
    %1858 = vmatpush.msra.mxu0 %v635
    %1859 = vmatpush.msra.mxu0 %v632
    %1860 = vmatpush.msra.mxu0 %v629
    %1861 = vmatpush.msra.mxu0 %v626
    %1862 = vmatpush.msra.mxu0 %v623
    %1863 = vmatpush.msra.mxu0 %v620
    %1864 = vmatpush.msra.mxu0 %v617
    %1865 = vmatpush.msra.mxu0 %v614
    %1866 = vmatpush.msra.mxu0 %v611
    %1867 = vmatpush.msra.mxu0 %v608
    %1868 = vmatpush.msra.mxu0 %v605
    %1869 = vmatpush.msra.mxu0 %v602
    %1870 = vmatpush.msra.mxu0 %v599
    %1871 = vmatpush.msra.mxu0 %v596
    %1872 = vmatmul.f32.gmra.mxu0 %v1766
    %v1873 = vpop.f32.mrf.mxu0
    %v1874 = vadd.f32 %v695, %v1873
    %1875 = vdwg.mxu0
    %1876 = vmatpush.msra.mxu0 %v687
    %1877 = vmatpush.msra.mxu0 %v684
    %1878 = vmatpush.msra.mxu0 %v681
    %1879 = vmatpush.msra.mxu0 %v678
    %1880 = vmatpush.msra.mxu0 %v675
    %1881 = vmatpush.msra.mxu0 %v672
    %1882 = vmatpush.msra.mxu0 %v669
    %1883 = vmatpush.msra.mxu0 %v666
    %1884 = vmatpush.msra.mxu0 %v663
    %1885 = vmatpush.msra.mxu0 %v660
    %1886 = vmatpush.msra.mxu0 %v657
    %1887 = vmatpush.msra.mxu0 %v654
    %1888 = vmatpush.msra.mxu0 %v651
    %1889 = vmatpush.msra.mxu0 %v648
    %1890 = vmatpush.msra.mxu0 %v645
    %1891 = vmatpush.msra.mxu0 %v642
    %1892 = vmatmul.f32.gmra.mxu0 %v1813
    %v1893 = vpop.f32.mrf.mxu0
    %v1894 = vadd.f32 %v760, %v1893
    %1895 = vdwg.mxu0
    %1896 = vmatpush.msra.mxu0 %v688
    %1897 = vmatpush.msra.mxu0 %v685
    %1898 = vmatpush.msra.mxu0 %v682
    %1899 = vmatpush.msra.mxu0 %v679
    %1900 = vmatpush.msra.mxu0 %v676
    %1901 = vmatpush.msra.mxu0 %v673
    %1902 = vmatpush.msra.mxu0 %v670
    %1903 = vmatpush.msra.mxu0 %v667
    %1904 = vmatpush.msra.mxu0 %v664
    %1905 = vmatpush.msra.mxu0 %v661
    %1906 = vmatpush.msra.mxu0 %v658
    %1907 = vmatpush.msra.mxu0 %v655
    %1908 = vmatpush.msra.mxu0 %v652
    %1909 = vmatpush.msra.mxu0 %v649
    %1910 = vmatpush.msra.mxu0 %v646
    %1911 = vmatpush.msra.mxu0 %v643
    %1912 = vmatmul.f32.gmra.mxu0 %v1813
    %v1913 = vpop.f32.mrf.mxu0
    %v1914 = vadd.f32 %v761, %v1913
    %1915 = vdwg.mxu0
    %1916 = vmatpush.msra.mxu0 %v689
    %1917 = vmatpush.msra.mxu0 %v686
    %1918 = vmatpush.msra.mxu0 %v683
    %1919 = vmatpush.msra.mxu0 %v680
    %1920 = vmatpush.msra.mxu0 %v677
    %1921 = vmatpush.msra.mxu0 %v674
    %1922 = vmatpush.msra.mxu0 %v671
    %1923 = vmatpush.msra.mxu0 %v668
    %1924 = vmatpush.msra.mxu0 %v665
    %1925 = vmatpush.msra.mxu0 %v662
    %1926 = vmatpush.msra.mxu0 %v659
    %1927 = vmatpush.msra.mxu0 %v656
    %1928 = vmatpush.msra.mxu0 %v653
    %1929 = vmatpush.msra.mxu0 %v650
    %1930 = vmatpush.msra.mxu0 %v647
    %1931 = vmatpush.msra.mxu0 %v644
    %1932 = vmatmul.f32.gmra.mxu0 %v1813
    %v1933 = vpop.f32.mrf.mxu0
    %v1934 = vadd.f32 %v762, %v1933
    %1935 = vdwg.mxu0
    %v1936 = vld [vmem:[#allocation3 + $0x78] sm:$0xff]
    %v1937 = vld [vmem:[#allocation3 + $0x80] sm:$0xff]
    %v1938 = vld [vmem:[#allocation3 + $0x88] sm:$0xff]
    %v1939 = vld [vmem:[#allocation4 + $0x30] sm:$0xff]
    %v1940 = vld [vmem:[#allocation4 + $0x38] sm:$0xff]
    %v1941 = vld [vmem:[#allocation4 + $0x40] sm:$0xff]
    %v1942 = vadd.f32 %v1936, %v1834
    %v1943 = vxor.u32 %v1942, 2147483648
    %v1944 = vmul.f32 %v1943, 1.442695
    %v1945 = vpow.pop %v1944
    %v1946 = vadd.f32 %v1945, 1.0
    %v1947 = vrcp.pop %v1946
    %v1948 = vmul.f32 %v1946, %v1947
    %v1949 = vsub.f32 1.0, %v1948
    %v1950 = vmul.f32 %v1947, %v1949
    %v1951 = vadd.f32 %v1947, %v1950
    %vm1952 = vweird.f32 %v1946
    %vm1953 = vweird.f32 %v1947
    %vm1954 = vmor %vm1952, %vm1953
    %v1955 = vsel %vm1954, %v1947, %v1951
    %v1956 = vand.u32 2147483647, %v1946
    %vm1957 = vcmp.eq.f32.partialorder %v1956, 8.507059e+37
    %v1958 = vand.u32 %v1946, 2147483648
    %v1959 = vor.u32 1.1754944e-38, %v1958
    %v1960 = vsel %vm1957, %v1959, %v1955
    %v1961 = vmul.f32 1.0, %v1960
    %v1962 = vadd.f32 %v1937, %v1854
    %v1963 = vxor.u32 %v1962, 2147483648
    %v1964 = vmul.f32 %v1963, 1.442695
    %v1965 = vpow.pop %v1964
    %v1966 = vadd.f32 %v1965, 1.0
    %v1967 = vrcp.pop %v1966
    %v1968 = vmul.f32 %v1966, %v1967
    %v1969 = vsub.f32 1.0, %v1968
    %v1970 = vmul.f32 %v1967, %v1969
    %v1971 = vadd.f32 %v1967, %v1970
    %vm1972 = vweird.f32 %v1966
    %vm1973 = vweird.f32 %v1967
    %vm1974 = vmor %vm1972, %vm1973
    %v1975 = vsel %vm1974, %v1967, %v1971
    %v1976 = vand.u32 2147483647, %v1966
    %vm1977 = vcmp.eq.f32.partialorder %v1976, 8.507059e+37
    %v1978 = vand.u32 %v1966, 2147483648
    %v1979 = vor.u32 1.1754944e-38, %v1978
    %v1980 = vsel %vm1977, %v1979, %v1975
    %v1981 = vmul.f32 1.0, %v1980
    %v1982 = vmul.f32 %v1961, %v1874
    %v1983 = vadd.f32 %v1938, %v1982
    %v1984 = vtanh.pop %v1983
    %v1985 = vsub.f32 1.0, %v1981
    %v1986 = vmul.f32 %v1985, %v1984
    %v1987 = vmul.f32 %v1981, %v1766
    %v1988 = vadd.f32 %v1986, %v1987
    %v1989 = vadd.f32 %v1939, %v1894
    %v1990 = vxor.u32 %v1989, 2147483648
    %v1991 = vmul.f32 %v1990, 1.442695
    %v1992 = vpow.pop %v1991
    %v1993 = vadd.f32 %v1992, 1.0
    %v1994 = vrcp.pop %v1993
    %v1995 = vmul.f32 %v1993, %v1994
    %v1996 = vsub.f32 1.0, %v1995
    %v1997 = vmul.f32 %v1994, %v1996
    %v1998 = vadd.f32 %v1994, %v1997
    %vm1999 = vweird.f32 %v1993
    %vm2000 = vweird.f32 %v1994
    %vm2001 = vmor %vm1999, %vm2000
    %v2002 = vsel %vm2001, %v1994, %v1998
    %v2003 = vand.u32 2147483647, %v1993
    %vm2004 = vcmp.eq.f32.partialorder %v2003, 8.507059e+37
    %v2005 = vand.u32 %v1993, 2147483648
    %v2006 = vor.u32 1.1754944e-38, %v2005
    %v2007 = vsel %vm2004, %v2006, %v2002
    %v2008 = vmul.f32 1.0, %v2007
    %v2009 = vadd.f32 %v1940, %v1914
    %v2010 = vxor.u32 %v2009, 2147483648
    %v2011 = vmul.f32 %v2010, 1.442695
    %v2012 = vpow.pop %v2011
    %v2013 = vadd.f32 %v2012, 1.0
    %v2014 = vrcp.pop %v2013
    %v2015 = vmul.f32 %v2013, %v2014
    %v2016 = vsub.f32 1.0, %v2015
    %v2017 = vmul.f32 %v2014, %v2016
    %v2018 = vadd.f32 %v2014, %v2017
    %vm2019 = vweird.f32 %v2013
    %vm2020 = vweird.f32 %v2014
    %vm2021 = vmor %vm2019, %vm2020
    %v2022 = vsel %vm2021, %v2014, %v2018
    %v2023 = vand.u32 2147483647, %v2013
    %vm2024 = vcmp.eq.f32.partialorder %v2023, 8.507059e+37
    %v2025 = vand.u32 %v2013, 2147483648
    %v2026 = vor.u32 1.1754944e-38, %v2025
    %v2027 = vsel %vm2024, %v2026, %v2022
    %v2028 = vmul.f32 1.0, %v2027
    %v2029 = vmul.f32 %v2008, %v1934
    %v2030 = vadd.f32 %v1941, %v2029
    %v2031 = vtanh.pop %v2030
    %v2032 = vsub.f32 1.0, %v2028
    %v2033 = vmul.f32 %v2032, %v2031
    %v2034 = vmul.f32 %v2028, %v1813
    %v2035 = vadd.f32 %v2033, %v2034
    %2036 = vst [vmem:[#allocation2 + $0x50] sm:$0xff] %v1988
    %2037 = vst [vmem:[#allocation2 + $0x28] sm:$0xff] %v2035
    %2038 = vmatpush.msra.mxu0 %v639
    %2039 = vmatpush.msra.mxu0 %v636
    %2040 = vmatpush.msra.mxu0 %v633
    %2041 = vmatpush.msra.mxu0 %v630
    %2042 = vmatpush.msra.mxu0 %v627
    %2043 = vmatpush.msra.mxu0 %v624
    %2044 = vmatpush.msra.mxu0 %v621
    %2045 = vmatpush.msra.mxu0 %v618
    %2046 = vmatpush.msra.mxu0 %v615
    %2047 = vmatpush.msra.mxu0 %v612
    %2048 = vmatpush.msra.mxu0 %v609
    %2049 = vmatpush.msra.mxu0 %v606
    %2050 = vmatpush.msra.mxu0 %v603
    %2051 = vmatpush.msra.mxu0 %v600
    %2052 = vmatpush.msra.mxu0 %v597
    %2053 = vmatpush.msra.mxu0 %v594
    %2054 = vmatmul.f32.gmra.mxu0 %v1988
    %v2055 = vpop.f32.mrf.mxu0
    %v2056 = vadd.f32 %v693, %v2055
    %2057 = vdwg.mxu0
    %2058 = vmatpush.msra.mxu0 %v640
    %2059 = vmatpush.msra.mxu0 %v637
    %2060 = vmatpush.msra.mxu0 %v634
    %2061 = vmatpush.msra.mxu0 %v631
    %2062 = vmatpush.msra.mxu0 %v628
    %2063 = vmatpush.msra.mxu0 %v625
    %2064 = vmatpush.msra.mxu0 %v622
    %2065 = vmatpush.msra.mxu0 %v619
    %2066 = vmatpush.msra.mxu0 %v616
    %2067 = vmatpush.msra.mxu0 %v613
    %2068 = vmatpush.msra.mxu0 %v610
    %2069 = vmatpush.msra.mxu0 %v607
    %2070 = vmatpush.msra.mxu0 %v604
    %2071 = vmatpush.msra.mxu0 %v601
    %2072 = vmatpush.msra.mxu0 %v598
    %2073 = vmatpush.msra.mxu0 %v595
    %2074 = vmatmul.f32.gmra.mxu0 %v1988
    %v2075 = vpop.f32.mrf.mxu0
    %v2076 = vadd.f32 %v694, %v2075
    %2077 = vdwg.mxu0
    %2078 = vmatpush.msra.mxu0 %v641
    %2079 = vmatpush.msra.mxu0 %v638
    %2080 = vmatpush.msra.mxu0 %v635
    %2081 = vmatpush.msra.mxu0 %v632
    %2082 = vmatpush.msra.mxu0 %v629
    %2083 = vmatpush.msra.mxu0 %v626
    %2084 = vmatpush.msra.mxu0 %v623
    %2085 = vmatpush.msra.mxu0 %v620
    %2086 = vmatpush.msra.mxu0 %v617
    %2087 = vmatpush.msra.mxu0 %v614
    %2088 = vmatpush.msra.mxu0 %v611
    %2089 = vmatpush.msra.mxu0 %v608
    %2090 = vmatpush.msra.mxu0 %v605
    %2091 = vmatpush.msra.mxu0 %v602
    %2092 = vmatpush.msra.mxu0 %v599
    %2093 = vmatpush.msra.mxu0 %v596
    %2094 = vmatmul.f32.gmra.mxu0 %v1988
    %v2095 = vpop.f32.mrf.mxu0
    %v2096 = vadd.f32 %v695, %v2095
    %2097 = vdwg.mxu0
    %2098 = vmatpush.msra.mxu0 %v687
    %2099 = vmatpush.msra.mxu0 %v684
    %2100 = vmatpush.msra.mxu0 %v681
    %2101 = vmatpush.msra.mxu0 %v678
    %2102 = vmatpush.msra.mxu0 %v675
    %2103 = vmatpush.msra.mxu0 %v672
    %2104 = vmatpush.msra.mxu0 %v669
    %2105 = vmatpush.msra.mxu0 %v666
    %2106 = vmatpush.msra.mxu0 %v663
    %2107 = vmatpush.msra.mxu0 %v660
    %2108 = vmatpush.msra.mxu0 %v657
    %2109 = vmatpush.msra.mxu0 %v654
    %2110 = vmatpush.msra.mxu0 %v651
    %2111 = vmatpush.msra.mxu0 %v648
    %2112 = vmatpush.msra.mxu0 %v645
    %2113 = vmatpush.msra.mxu0 %v642
    %2114 = vmatmul.f32.gmra.mxu0 %v2035
    %v2115 = vpop.f32.mrf.mxu0
    %v2116 = vadd.f32 %v760, %v2115
    %2117 = vdwg.mxu0
    %2118 = vmatpush.msra.mxu0 %v688
    %2119 = vmatpush.msra.mxu0 %v685
    %2120 = vmatpush.msra.mxu0 %v682
    %2121 = vmatpush.msra.mxu0 %v679
    %2122 = vmatpush.msra.mxu0 %v676
    %2123 = vmatpush.msra.mxu0 %v673
    %2124 = vmatpush.msra.mxu0 %v670
    %2125 = vmatpush.msra.mxu0 %v667
    %2126 = vmatpush.msra.mxu0 %v664
    %2127 = vmatpush.msra.mxu0 %v661
    %2128 = vmatpush.msra.mxu0 %v658
    %2129 = vmatpush.msra.mxu0 %v655
    %2130 = vmatpush.msra.mxu0 %v652
    %2131 = vmatpush.msra.mxu0 %v649
    %2132 = vmatpush.msra.mxu0 %v646
    %2133 = vmatpush.msra.mxu0 %v643
    %2134 = vmatmul.f32.gmra.mxu0 %v2035
    %v2135 = vpop.f32.mrf.mxu0
    %v2136 = vadd.f32 %v761, %v2135
    %2137 = vdwg.mxu0
    %2138 = vmatpush.msra.mxu0 %v689
    %2139 = vmatpush.msra.mxu0 %v686
    %2140 = vmatpush.msra.mxu0 %v683
    %2141 = vmatpush.msra.mxu0 %v680
    %2142 = vmatpush.msra.mxu0 %v677
    %2143 = vmatpush.msra.mxu0 %v674
    %2144 = vmatpush.msra.mxu0 %v671
    %2145 = vmatpush.msra.mxu0 %v668
    %2146 = vmatpush.msra.mxu0 %v665
    %2147 = vmatpush.msra.mxu0 %v662
    %2148 = vmatpush.msra.mxu0 %v659
    %2149 = vmatpush.msra.mxu0 %v656
    %2150 = vmatpush.msra.mxu0 %v653
    %2151 = vmatpush.msra.mxu0 %v650
    %2152 = vmatpush.msra.mxu0 %v647
    %2153 = vmatpush.msra.mxu0 %v644
    %2154 = vmatmul.f32.gmra.mxu0 %v2035
    %v2155 = vpop.f32.mrf.mxu0
    %v2156 = vadd.f32 %v762, %v2155
    %2157 = vdwg.mxu0
    %v2158 = vld [vmem:[#allocation3 + $0x90] sm:$0xff]
    %v2159 = vld [vmem:[#allocation3 + $0x98] sm:$0xff]
    %v2160 = vld [vmem:[#allocation3 + $0xa0] sm:$0xff]
    %v2161 = vld [vmem:[#allocation4 + $0x18] sm:$0xff]
    %v2162 = vld [vmem:[#allocation4 + $0x20] sm:$0xff]
    %v2163 = vld [vmem:[#allocation4 + $0x28] sm:$0xff]
    %v2164 = vadd.f32 %v2158, %v2056
    %v2165 = vxor.u32 %v2164, 2147483648
    %v2166 = vmul.f32 %v2165, 1.442695
    %v2167 = vpow.pop %v2166
    %v2168 = vadd.f32 %v2167, 1.0
    %v2169 = vrcp.pop %v2168
    %v2170 = vmul.f32 %v2168, %v2169
    %v2171 = vsub.f32 1.0, %v2170
    %v2172 = vmul.f32 %v2169, %v2171
    %v2173 = vadd.f32 %v2169, %v2172
    %vm2174 = vweird.f32 %v2168
    %vm2175 = vweird.f32 %v2169
    %vm2176 = vmor %vm2174, %vm2175
    %v2177 = vsel %vm2176, %v2169, %v2173
    %v2178 = vand.u32 2147483647, %v2168
    %vm2179 = vcmp.eq.f32.partialorder %v2178, 8.507059e+37
    %v2180 = vand.u32 %v2168, 2147483648
    %v2181 = vor.u32 1.1754944e-38, %v2180
    %v2182 = vsel %vm2179, %v2181, %v2177
    %v2183 = vmul.f32 1.0, %v2182
    %v2184 = vadd.f32 %v2159, %v2076
    %v2185 = vxor.u32 %v2184, 2147483648
    %v2186 = vmul.f32 %v2185, 1.442695
    %v2187 = vpow.pop %v2186
    %v2188 = vadd.f32 %v2187, 1.0
    %v2189 = vrcp.pop %v2188
    %v2190 = vmul.f32 %v2188, %v2189
    %v2191 = vsub.f32 1.0, %v2190
    %v2192 = vmul.f32 %v2189, %v2191
    %v2193 = vadd.f32 %v2189, %v2192
    %vm2194 = vweird.f32 %v2188
    %vm2195 = vweird.f32 %v2189
    %vm2196 = vmor %vm2194, %vm2195
    %v2197 = vsel %vm2196, %v2189, %v2193
    %v2198 = vand.u32 2147483647, %v2188
    %vm2199 = vcmp.eq.f32.partialorder %v2198, 8.507059e+37
    %v2200 = vand.u32 %v2188, 2147483648
    %v2201 = vor.u32 1.1754944e-38, %v2200
    %v2202 = vsel %vm2199, %v2201, %v2197
    %v2203 = vmul.f32 1.0, %v2202
    %v2204 = vmul.f32 %v2183, %v2096
    %v2205 = vadd.f32 %v2160, %v2204
    %v2206 = vtanh.pop %v2205
    %v2207 = vsub.f32 1.0, %v2203
    %v2208 = vmul.f32 %v2207, %v2206
    %v2209 = vmul.f32 %v2203, %v1988
    %v2210 = vadd.f32 %v2208, %v2209
    %v2211 = vadd.f32 %v2161, %v2116
    %v2212 = vxor.u32 %v2211, 2147483648
    %v2213 = vmul.f32 %v2212, 1.442695
    %v2214 = vpow.pop %v2213
    %v2215 = vadd.f32 %v2214, 1.0
    %v2216 = vrcp.pop %v2215
    %v2217 = vmul.f32 %v2215, %v2216
    %v2218 = vsub.f32 1.0, %v2217
    %v2219 = vmul.f32 %v2216, %v2218
    %v2220 = vadd.f32 %v2216, %v2219
    %vm2221 = vweird.f32 %v2215
    %vm2222 = vweird.f32 %v2216
    %vm2223 = vmor %vm2221, %vm2222
    %v2224 = vsel %vm2223, %v2216, %v2220
    %v2225 = vand.u32 2147483647, %v2215
    %vm2226 = vcmp.eq.f32.partialorder %v2225, 8.507059e+37
    %v2227 = vand.u32 %v2215, 2147483648
    %v2228 = vor.u32 1.1754944e-38, %v2227
    %v2229 = vsel %vm2226, %v2228, %v2224
    %v2230 = vmul.f32 1.0, %v2229
    %v2231 = vadd.f32 %v2162, %v2136
    %v2232 = vxor.u32 %v2231, 2147483648
    %v2233 = vmul.f32 %v2232, 1.442695
    %v2234 = vpow.pop %v2233
    %v2235 = vadd.f32 %v2234, 1.0
    %v2236 = vrcp.pop %v2235
    %v2237 = vmul.f32 %v2235, %v2236
    %v2238 = vsub.f32 1.0, %v2237
    %v2239 = vmul.f32 %v2236, %v2238
    %v2240 = vadd.f32 %v2236, %v2239
    %vm2241 = vweird.f32 %v2235
    %vm2242 = vweird.f32 %v2236
    %vm2243 = vmor %vm2241, %vm2242
    %v2244 = vsel %vm2243, %v2236, %v2240
    %v2245 = vand.u32 2147483647, %v2235
    %vm2246 = vcmp.eq.f32.partialorder %v2245, 8.507059e+37
    %v2247 = vand.u32 %v2235, 2147483648
    %v2248 = vor.u32 1.1754944e-38, %v2247
    %v2249 = vsel %vm2246, %v2248, %v2244
    %v2250 = vmul.f32 1.0, %v2249
    %v2251 = vmul.f32 %v2230, %v2156
    %v2252 = vadd.f32 %v2163, %v2251
    %v2253 = vtanh.pop %v2252
    %v2254 = vsub.f32 1.0, %v2250
    %v2255 = vmul.f32 %v2254, %v2253
    %v2256 = vmul.f32 %v2250, %v2035
    %v2257 = vadd.f32 %v2255, %v2256
    %2258 = vst [vmem:[#allocation2 + $0x60] sm:$0xff] %v2210
    %2259 = vst [vmem:[#allocation2 + $0x18] sm:$0xff] %v2257
    %2260 = vmatpush.msra.mxu0 %v639
    %2261 = vmatpush.msra.mxu0 %v636
    %2262 = vmatpush.msra.mxu0 %v633
    %2263 = vmatpush.msra.mxu0 %v630
    %2264 = vmatpush.msra.mxu0 %v627
    %2265 = vmatpush.msra.mxu0 %v624
    %2266 = vmatpush.msra.mxu0 %v621
    %2267 = vmatpush.msra.mxu0 %v618
    %2268 = vmatpush.msra.mxu0 %v615
    %2269 = vmatpush.msra.mxu0 %v612
    %2270 = vmatpush.msra.mxu0 %v609
    %2271 = vmatpush.msra.mxu0 %v606
    %2272 = vmatpush.msra.mxu0 %v603
    %2273 = vmatpush.msra.mxu0 %v600
    %2274 = vmatpush.msra.mxu0 %v597
    %2275 = vmatpush.msra.mxu0 %v594
    %2276 = vmatmul.f32.gmra.mxu0 %v2210
    %v2277 = vpop.f32.mrf.mxu0
    %v2278 = vadd.f32 %v693, %v2277
    %2279 = vdwg.mxu0
    %2280 = vmatpush.msra.mxu0 %v640
    %2281 = vmatpush.msra.mxu0 %v637
    %2282 = vmatpush.msra.mxu0 %v634
    %2283 = vmatpush.msra.mxu0 %v631
    %2284 = vmatpush.msra.mxu0 %v628
    %2285 = vmatpush.msra.mxu0 %v625
    %2286 = vmatpush.msra.mxu0 %v622
    %2287 = vmatpush.msra.mxu0 %v619
    %2288 = vmatpush.msra.mxu0 %v616
    %2289 = vmatpush.msra.mxu0 %v613
    %2290 = vmatpush.msra.mxu0 %v610
    %2291 = vmatpush.msra.mxu0 %v607
    %2292 = vmatpush.msra.mxu0 %v604
    %2293 = vmatpush.msra.mxu0 %v601
    %2294 = vmatpush.msra.mxu0 %v598
    %2295 = vmatpush.msra.mxu0 %v595
    %2296 = vmatmul.f32.gmra.mxu0 %v2210
    %v2297 = vpop.f32.mrf.mxu0
    %v2298 = vadd.f32 %v694, %v2297
    %2299 = vdwg.mxu0
    %2300 = vmatpush.msra.mxu0 %v641
    %2301 = vmatpush.msra.mxu0 %v638
    %2302 = vmatpush.msra.mxu0 %v635
    %2303 = vmatpush.msra.mxu0 %v632
    %2304 = vmatpush.msra.mxu0 %v629
    %2305 = vmatpush.msra.mxu0 %v626
    %2306 = vmatpush.msra.mxu0 %v623
    %2307 = vmatpush.msra.mxu0 %v620
    %2308 = vmatpush.msra.mxu0 %v617
    %2309 = vmatpush.msra.mxu0 %v614
    %2310 = vmatpush.msra.mxu0 %v611
    %2311 = vmatpush.msra.mxu0 %v608
    %2312 = vmatpush.msra.mxu0 %v605
    %2313 = vmatpush.msra.mxu0 %v602
    %2314 = vmatpush.msra.mxu0 %v599
    %2315 = vmatpush.msra.mxu0 %v596
    %2316 = vmatmul.f32.gmra.mxu0 %v2210
    %v2317 = vpop.f32.mrf.mxu0
    %v2318 = vadd.f32 %v695, %v2317
    %2319 = vdwg.mxu0
    %2320 = vmatpush.msra.mxu0 %v687
    %2321 = vmatpush.msra.mxu0 %v684
    %2322 = vmatpush.msra.mxu0 %v681
    %2323 = vmatpush.msra.mxu0 %v678
    %2324 = vmatpush.msra.mxu0 %v675
    %2325 = vmatpush.msra.mxu0 %v672
    %2326 = vmatpush.msra.mxu0 %v669
    %2327 = vmatpush.msra.mxu0 %v666
    %2328 = vmatpush.msra.mxu0 %v663
    %2329 = vmatpush.msra.mxu0 %v660
    %2330 = vmatpush.msra.mxu0 %v657
    %2331 = vmatpush.msra.mxu0 %v654
    %2332 = vmatpush.msra.mxu0 %v651
    %2333 = vmatpush.msra.mxu0 %v648
    %2334 = vmatpush.msra.mxu0 %v645
    %2335 = vmatpush.msra.mxu0 %v642
    %2336 = vmatmul.f32.gmra.mxu0 %v2257
    %v2337 = vpop.f32.mrf.mxu0
    %v2338 = vadd.f32 %v760, %v2337
    %2339 = vdwg.mxu0
    %2340 = vmatpush.msra.mxu0 %v688
    %2341 = vmatpush.msra.mxu0 %v685
    %2342 = vmatpush.msra.mxu0 %v682
    %2343 = vmatpush.msra.mxu0 %v679
    %2344 = vmatpush.msra.mxu0 %v676
    %2345 = vmatpush.msra.mxu0 %v673
    %2346 = vmatpush.msra.mxu0 %v670
    %2347 = vmatpush.msra.mxu0 %v667
    %2348 = vmatpush.msra.mxu0 %v664
    %2349 = vmatpush.msra.mxu0 %v661
    %2350 = vmatpush.msra.mxu0 %v658
    %2351 = vmatpush.msra.mxu0 %v655
    %2352 = vmatpush.msra.mxu0 %v652
    %2353 = vmatpush.msra.mxu0 %v649
    %2354 = vmatpush.msra.mxu0 %v646
    %2355 = vmatpush.msra.mxu0 %v643
    %2356 = vmatmul.f32.gmra.mxu0 %v2257
    %v2357 = vpop.f32.mrf.mxu0
    %v2358 = vadd.f32 %v761, %v2357
    %2359 = vdwg.mxu0
    %2360 = vmatpush.msra.mxu0 %v689
    %2361 = vmatpush.msra.mxu0 %v686
    %2362 = vmatpush.msra.mxu0 %v683
    %2363 = vmatpush.msra.mxu0 %v680
    %2364 = vmatpush.msra.mxu0 %v677
    %2365 = vmatpush.msra.mxu0 %v674
    %2366 = vmatpush.msra.mxu0 %v671
    %2367 = vmatpush.msra.mxu0 %v668
    %2368 = vmatpush.msra.mxu0 %v665
    %2369 = vmatpush.msra.mxu0 %v662
    %2370 = vmatpush.msra.mxu0 %v659
    %2371 = vmatpush.msra.mxu0 %v656
    %2372 = vmatpush.msra.mxu0 %v653
    %2373 = vmatpush.msra.mxu0 %v650
    %2374 = vmatpush.msra.mxu0 %v647
    %2375 = vmatpush.msra.mxu0 %v644
    %2376 = vmatmul.f32.gmra.mxu0 %v2257
    %v2377 = vpop.f32.mrf.mxu0
    %v2378 = vadd.f32 %v762, %v2377
    %2379 = vdwg.mxu0
    %v2380 = vld [vmem:[#allocation3 + $0xa8] sm:$0xff]
    %v2381 = vld [vmem:[#allocation3 + $0xb0] sm:$0xff]
    %v2382 = vld [vmem:[#allocation3 + $0xb8] sm:$0xff]
    %v2383 = vld [vmem:[#allocation4] sm:$0xff]
    %v2384 = vld [vmem:[#allocation4 + $0x8] sm:$0xff]
    %v2385 = vld [vmem:[#allocation4 + $0x10] sm:$0xff]
    %v2386 = vadd.f32 %v2380, %v2278
    %v2387 = vxor.u32 %v2386, 2147483648
    %v2388 = vmul.f32 %v2387, 1.442695
    %v2389 = vpow.pop %v2388
    %v2390 = vadd.f32 %v2389, 1.0
    %v2391 = vrcp.pop %v2390
    %v2392 = vmul.f32 %v2390, %v2391
    %v2393 = vsub.f32 1.0, %v2392
    %v2394 = vmul.f32 %v2391, %v2393
    %v2395 = vadd.f32 %v2391, %v2394
    %vm2396 = vweird.f32 %v2390
    %vm2397 = vweird.f32 %v2391
    %vm2398 = vmor %vm2396, %vm2397
    %v2399 = vsel %vm2398, %v2391, %v2395
    %v2400 = vand.u32 2147483647, %v2390
    %vm2401 = vcmp.eq.f32.partialorder %v2400, 8.507059e+37
    %v2402 = vand.u32 %v2390, 2147483648
    %v2403 = vor.u32 1.1754944e-38, %v2402
    %v2404 = vsel %vm2401, %v2403, %v2399
    %v2405 = vmul.f32 1.0, %v2404
    %v2406 = vadd.f32 %v2381, %v2298
    %v2407 = vxor.u32 %v2406, 2147483648
    %v2408 = vmul.f32 %v2407, 1.442695
    %v2409 = vpow.pop %v2408
    %v2410 = vadd.f32 %v2409, 1.0
    %v2411 = vrcp.pop %v2410
    %v2412 = vmul.f32 %v2410, %v2411
    %v2413 = vsub.f32 1.0, %v2412
    %v2414 = vmul.f32 %v2411, %v2413
    %v2415 = vadd.f32 %v2411, %v2414
    %vm2416 = vweird.f32 %v2410
    %vm2417 = vweird.f32 %v2411
    %vm2418 = vmor %vm2416, %vm2417
    %v2419 = vsel %vm2418, %v2411, %v2415
    %v2420 = vand.u32 2147483647, %v2410
    %vm2421 = vcmp.eq.f32.partialorder %v2420, 8.507059e+37
    %v2422 = vand.u32 %v2410, 2147483648
    %v2423 = vor.u32 1.1754944e-38, %v2422
    %v2424 = vsel %vm2421, %v2423, %v2419
    %v2425 = vmul.f32 1.0, %v2424
    %v2426 = vmul.f32 %v2405, %v2318
    %v2427 = vadd.f32 %v2382, %v2426
    %v2428 = vtanh.pop %v2427
    %v2429 = vsub.f32 1.0, %v2425
    %v2430 = vmul.f32 %v2429, %v2428
    %v2431 = vmul.f32 %v2425, %v2210
    %v2432 = vadd.f32 %v2430, %v2431
    %v2433 = vadd.f32 %v2383, %v2338
    %v2434 = vxor.u32 %v2433, 2147483648
    %v2435 = vmul.f32 %v2434, 1.442695
    %v2436 = vpow.pop %v2435
    %v2437 = vadd.f32 %v2436, 1.0
    %v2438 = vrcp.pop %v2437
    %v2439 = vmul.f32 %v2437, %v2438
    %v2440 = vsub.f32 1.0, %v2439
    %v2441 = vmul.f32 %v2438, %v2440
    %v2442 = vadd.f32 %v2438, %v2441
    %vm2443 = vweird.f32 %v2437
    %vm2444 = vweird.f32 %v2438
    %vm2445 = vmor %vm2443, %vm2444
    %v2446 = vsel %vm2445, %v2438, %v2442
    %v2447 = vand.u32 2147483647, %v2437
    %vm2448 = vcmp.eq.f32.partialorder %v2447, 8.507059e+37
    %v2449 = vand.u32 %v2437, 2147483648
    %v2450 = vor.u32 1.1754944e-38, %v2449
    %v2451 = vsel %vm2448, %v2450, %v2446
    %v2452 = vmul.f32 1.0, %v2451
    %v2453 = vadd.f32 %v2384, %v2358
    %v2454 = vxor.u32 %v2453, 2147483648
    %v2455 = vmul.f32 %v2454, 1.442695
    %v2456 = vpow.pop %v2455
    %v2457 = vadd.f32 %v2456, 1.0
    %v2458 = vrcp.pop %v2457
    %v2459 = vmul.f32 %v2457, %v2458
    %v2460 = vsub.f32 1.0, %v2459
    %v2461 = vmul.f32 %v2458, %v2460
    %v2462 = vadd.f32 %v2458, %v2461
    %vm2463 = vweird.f32 %v2457
    %vm2464 = vweird.f32 %v2458
    %vm2465 = vmor %vm2463, %vm2464
    %v2466 = vsel %vm2465, %v2458, %v2462
    %v2467 = vand.u32 2147483647, %v2457
    %vm2468 = vcmp.eq.f32.partialorder %v2467, 8.507059e+37
    %v2469 = vand.u32 %v2457, 2147483648
    %v2470 = vor.u32 1.1754944e-38, %v2469
    %v2471 = vsel %vm2468, %v2470, %v2466
    %v2472 = vmul.f32 1.0, %v2471
    %v2473 = vmul.f32 %v2452, %v2378
    %v2474 = vadd.f32 %v2385, %v2473
    %v2475 = vtanh.pop %v2474
    %v2476 = vsub.f32 1.0, %v2472
    %v2477 = vmul.f32 %v2476, %v2475
    %v2478 = vmul.f32 %v2472, %v2257
    %v2479 = vadd.f32 %v2477, %v2478
    %2480 = vst [vmem:[#allocation2 + $0x70] sm:$0xff] %v2432
    %2481 = vst [vmem:[#allocation2 + $0x8] sm:$0xff] %v2479
    %v2482 = vld [vmem:[#allocation2] sm:$0xff]
    %v2483 = vld [vmem:[#allocation2 + $0x8] sm:$0xff]
    %v2484 = vld [vmem:[#allocation2 + $0x10] sm:$0xff]
    %v2485 = vld [vmem:[#allocation2 + $0x18] sm:$0xff]
    %v2486 = vld [vmem:[#allocation2 + $0x20] sm:$0xff]
    %v2487 = vld [vmem:[#allocation2 + $0x28] sm:$0xff]
    %v2488 = vld [vmem:[#allocation2 + $0x30] sm:$0xff]
    %v2489 = vld [vmem:[#allocation2 + $0x38] sm:$0xff]
    %v2490 = vld [vmem:[#allocation2 + $0x40] sm:$0xff]
    %v2491 = vld [vmem:[#allocation2 + $0x48] sm:$0xff]
    %v2492 = vld [vmem:[#allocation2 + $0x50] sm:$0xff]
    %v2493 = vld [vmem:[#allocation2 + $0x58] sm:$0xff]
    %v2494 = vld [vmem:[#allocation2 + $0x60] sm:$0xff]
    %v2495 = vld [vmem:[#allocation2 + $0x68] sm:$0xff]
    %v2496 = vld [vmem:[#allocation2 + $0x70] sm:$0xff]
    %v2497 = vld [vmem:[#allocation2 + $0x78] sm:$0xff]
    %v2498 = vld [vmem:[#allocation12] sm:$0xff]
    %v2499 = vld [vmem:[#allocation12 + $0x8] sm:$0xff]
    %v2500 = vld [vmem:[#allocation12 + $0x10] sm:$0xff]
    %v2501 = vld [vmem:[#allocation12 + $0x18] sm:$0xff]
    %v2502 = vld [vmem:[#allocation12 + $0x20] sm:$0xff]
    %v2503 = vld [vmem:[#allocation12 + $0x28] sm:$0xff]
    %v2504 = vld [vmem:[#allocation12 + $0x30] sm:$0xff]
    %v2505 = vld [vmem:[#allocation12 + $0x38] sm:$0xff]
    %v2506 = vld [vmem:[#allocation12 + $0x40] sm:$0xff]
    %v2507 = vld [vmem:[#allocation12 + $0x48] sm:$0xff]
    %v2508 = vld [vmem:[#allocation12 + $0x50] sm:$0xff]
    %v2509 = vld [vmem:[#allocation12 + $0x58] sm:$0xff]
    %v2510 = vld [vmem:[#allocation12 + $0x60] sm:$0xff]
    %v2511 = vld [vmem:[#allocation12 + $0x68] sm:$0xff]
    %v2512 = vld [vmem:[#allocation12 + $0x70] sm:$0xff]
    %v2513 = vld [vmem:[#allocation12 + $0x78] sm:$0xff]
    %v2514 = vld [vmem:[#allocation12 + $0x80] sm:$0xff]
    %v2515 = vld [vmem:[#allocation12 + $0x88] sm:$0xff]
    %v2516 = vld [vmem:[#allocation12 + $0x90] sm:$0xff]
    %v2517 = vld [vmem:[#allocation12 + $0x98] sm:$0xff]
    %v2518 = vld [vmem:[#allocation12 + $0xa0] sm:$0xff]
    %v2519 = vld [vmem:[#allocation12 + $0xa8] sm:$0xff]
    %v2520 = vld [vmem:[#allocation12 + $0xb0] sm:$0xff]
    %v2521 = vld [vmem:[#allocation12 + $0xb8] sm:$0xff]
    %v2522 = vld [vmem:[#allocation12 + $0xc0] sm:$0xff]
    %v2523 = vld [vmem:[#allocation12 + $0xc8] sm:$0xff]
    %v2524 = vld [vmem:[#allocation12 + $0xd0] sm:$0xff]
    %v2525 = vld [vmem:[#allocation12 + $0xd8] sm:$0xff]
    %v2526 = vld [vmem:[#allocation12 + $0xe0] sm:$0xff]
    %v2527 = vld [vmem:[#allocation12 + $0xe8] sm:$0xff]
    %v2528 = vld [vmem:[#allocation12 + $0xf0] sm:$0xff]
    %v2529 = vld [vmem:[#allocation12 + $0xf8] sm:$0xff]
    %v2530 = vld [vmem:[#allocation12 + $0x100] sm:$0xff]
    %v2531 = vld [vmem:[#allocation12 + $0x108] sm:$0xff]
    %v2532 = vld [vmem:[#allocation12 + $0x110] sm:$0xff]
    %v2533 = vld [vmem:[#allocation12 + $0x118] sm:$0xff]
    %v2534 = vld [vmem:[#allocation12 + $0x120] sm:$0xff]
    %v2535 = vld [vmem:[#allocation12 + $0x128] sm:$0xff]
    %v2536 = vld [vmem:[#allocation12 + $0x130] sm:$0xff]
    %v2537 = vld [vmem:[#allocation12 + $0x138] sm:$0xff]
    %v2538 = vld [vmem:[#allocation12 + $0x140] sm:$0xff]
    %v2539 = vld [vmem:[#allocation12 + $0x148] sm:$0xff]
    %v2540 = vld [vmem:[#allocation12 + $0x150] sm:$0xff]
    %v2541 = vld [vmem:[#allocation12 + $0x158] sm:$0xff]
    %v2542 = vld [vmem:[#allocation12 + $0x160] sm:$0xff]
    %v2543 = vld [vmem:[#allocation12 + $0x168] sm:$0xff]
    %v2544 = vld [vmem:[#allocation12 + $0x170] sm:$0xff]
    %v2545 = vld [vmem:[#allocation12 + $0x178] sm:$0xff]
    %v2546 = vld [vmem:[#allocation12 + $0x180] sm:$0xff]
    %v2547 = vld [vmem:[#allocation12 + $0x188] sm:$0xff]
    %v2548 = vld [vmem:[#allocation12 + $0x190] sm:$0xff]
    %v2549 = vld [vmem:[#allocation12 + $0x198] sm:$0xff]
    %v2550 = vld [vmem:[#allocation12 + $0x1a0] sm:$0xff]
    %v2551 = vld [vmem:[#allocation12 + $0x1a8] sm:$0xff]
    %v2552 = vld [vmem:[#allocation12 + $0x1b0] sm:$0xff]
    %v2553 = vld [vmem:[#allocation12 + $0x1b8] sm:$0xff]
    %v2554 = vld [vmem:[#allocation12 + $0x1c0] sm:$0xff]
    %v2555 = vld [vmem:[#allocation12 + $0x1c8] sm:$0xff]
    %v2556 = vld [vmem:[#allocation12 + $0x1d0] sm:$0xff]
    %v2557 = vld [vmem:[#allocation12 + $0x1d8] sm:$0xff]
    %v2558 = vld [vmem:[#allocation12 + $0x1e0] sm:$0xff]
    %v2559 = vld [vmem:[#allocation12 + $0x1e8] sm:$0xff]
    %v2560 = vld [vmem:[#allocation12 + $0x1f0] sm:$0xff]
    %v2561 = vld [vmem:[#allocation12 + $0x1f8] sm:$0xff]
    %v2562 = vld [vmem:[#allocation12 + $0x200] sm:$0xff]
    %v2563 = vld [vmem:[#allocation12 + $0x208] sm:$0xff]
    %v2564 = vld [vmem:[#allocation12 + $0x210] sm:$0xff]
    %v2565 = vld [vmem:[#allocation12 + $0x218] sm:$0xff]
    %v2566 = vld [vmem:[#allocation12 + $0x220] sm:$0xff]
    %v2567 = vld [vmem:[#allocation12 + $0x228] sm:$0xff]
    %v2568 = vld [vmem:[#allocation12 + $0x230] sm:$0xff]
    %v2569 = vld [vmem:[#allocation12 + $0x238] sm:$0xff]
    %v2570 = vld [vmem:[#allocation12 + $0x240] sm:$0xff]
    %v2571 = vld [vmem:[#allocation12 + $0x248] sm:$0xff]
    %v2572 = vld [vmem:[#allocation12 + $0x250] sm:$0xff]
    %v2573 = vld [vmem:[#allocation12 + $0x258] sm:$0xff]
    %v2574 = vld [vmem:[#allocation12 + $0x260] sm:$0xff]
    %v2575 = vld [vmem:[#allocation12 + $0x268] sm:$0xff]
    %v2576 = vld [vmem:[#allocation12 + $0x270] sm:$0xff]
    %v2577 = vld [vmem:[#allocation12 + $0x278] sm:$0xff]
    %v2578 = vld [vmem:[#allocation12 + $0x280] sm:$0xff]
    %v2579 = vld [vmem:[#allocation12 + $0x288] sm:$0xff]
    %v2580 = vld [vmem:[#allocation12 + $0x290] sm:$0xff]
    %v2581 = vld [vmem:[#allocation12 + $0x298] sm:$0xff]
    %v2582 = vld [vmem:[#allocation12 + $0x2a0] sm:$0xff]
    %v2583 = vld [vmem:[#allocation12 + $0x2a8] sm:$0xff]
    %v2584 = vld [vmem:[#allocation12 + $0x2b0] sm:$0xff]
    %v2585 = vld [vmem:[#allocation12 + $0x2b8] sm:$0xff]
    %v2586 = vld [vmem:[#allocation12 + $0x2c0] sm:$0xff]
    %v2587 = vld [vmem:[#allocation12 + $0x2c8] sm:$0xff]
    %v2588 = vld [vmem:[#allocation12 + $0x2d0] sm:$0xff]
    %v2589 = vld [vmem:[#allocation12 + $0x2d8] sm:$0xff]
    %v2590 = vld [vmem:[#allocation12 + $0x2e0] sm:$0xff]
    %v2591 = vld [vmem:[#allocation12 + $0x2e8] sm:$0xff]
    %v2592 = vld [vmem:[#allocation12 + $0x2f0] sm:$0xff]
    %v2593 = vld [vmem:[#allocation12 + $0x2f8] sm:$0xff]
    %v2594 = vld [vmem:[%s11] sm:$0x7]
    %v2596 = vperm.slane %v2594, 0
    %v2597 = vperm.slane %v2594, 1
    %v2598 = vperm.slane %v2594, 2
    %2602 = vmatpush.msra.mxu0 %v2543
    %2603 = vmatpush.msra.mxu0 %v2540
    %2604 = vmatpush.msra.mxu0 %v2537
    %2605 = vmatpush.msra.mxu0 %v2534
    %2606 = vmatpush.msra.mxu0 %v2531
    %2607 = vmatpush.msra.mxu0 %v2528
    %2608 = vmatpush.msra.mxu0 %v2525
    %2609 = vmatpush.msra.mxu0 %v2522
    %2610 = vmatpush.msra.mxu0 %v2519
    %2611 = vmatpush.msra.mxu0 %v2516
    %2612 = vmatpush.msra.mxu0 %v2513
    %2613 = vmatpush.msra.mxu0 %v2510
    %2614 = vmatpush.msra.mxu0 %v2507
    %2615 = vmatpush.msra.mxu0 %v2504
    %2616 = vmatpush.msra.mxu0 %v2501
    %2617 = vmatpush.msra.mxu0 %v2498
    %2618 = vmatmul.f32.gmra.mxu0 %v2482
    %v2619 = vpop.f32.mrf.mxu0
    %v2620 = vadd.f32 %v2596, %v2619
    %2621 = vmatmul.f32.gmra.mxu0 %v2484
    %v2622 = vpop.f32.mrf.mxu0
    %v2623 = vadd.f32 %v2596, %v2622
    %2624 = vmatmul.f32.gmra.mxu0 %v2486
    %v2625 = vpop.f32.mrf.mxu0
    %v2626 = vadd.f32 %v2596, %v2625
    %2627 = vmatmul.f32.gmra.mxu0 %v2488
    %v2628 = vpop.f32.mrf.mxu0
    %v2629 = vadd.f32 %v2596, %v2628
    %2630 = vmatmul.f32.gmra.mxu0 %v2490
    %v2631 = vpop.f32.mrf.mxu0
    %v2632 = vadd.f32 %v2596, %v2631
    %2633 = vmatmul.f32.gmra.mxu0 %v2492
    %v2634 = vpop.f32.mrf.mxu0
    %v2635 = vadd.f32 %v2596, %v2634
    %2636 = vmatmul.f32.gmra.mxu0 %v2494
    %v2637 = vpop.f32.mrf.mxu0
    %v2638 = vadd.f32 %v2596, %v2637
    %2639 = vmatmul.f32.gmra.mxu0 %v2496
    %v2640 = vpop.f32.mrf.mxu0
    %v2641 = vadd.f32 %v2596, %v2640
    %2642 = vdwg.mxu0
    %2643 = vmatpush.msra.mxu0 %v2591
    %2644 = vmatpush.msra.mxu0 %v2588
    %2645 = vmatpush.msra.mxu0 %v2585
    %2646 = vmatpush.msra.mxu0 %v2582
    %2647 = vmatpush.msra.mxu0 %v2579
    %2648 = vmatpush.msra.mxu0 %v2576
    %2649 = vmatpush.msra.mxu0 %v2573
    %2650 = vmatpush.msra.mxu0 %v2570
    %2651 = vmatpush.msra.mxu0 %v2567
    %2652 = vmatpush.msra.mxu0 %v2564
    %2653 = vmatpush.msra.mxu0 %v2561
    %2654 = vmatpush.msra.mxu0 %v2558
    %2655 = vmatpush.msra.mxu0 %v2555
    %2656 = vmatpush.msra.mxu0 %v2552
    %2657 = vmatpush.msra.mxu0 %v2549
    %2658 = vmatpush.msra.mxu0 %v2546
    %2659 = vmatmul.f32.gmra.mxu0 %v2483
    %v2660 = vpop.f32.mrf.mxu0
    %v2661 = vadd.f32 %v2620, %v2660
    %2662 = vmatmul.f32.gmra.mxu0 %v2485
    %v2663 = vpop.f32.mrf.mxu0
    %v2664 = vadd.f32 %v2623, %v2663
    %2665 = vmatmul.f32.gmra.mxu0 %v2487
    %v2666 = vpop.f32.mrf.mxu0
    %v2667 = vadd.f32 %v2626, %v2666
    %2668 = vmatmul.f32.gmra.mxu0 %v2489
    %v2669 = vpop.f32.mrf.mxu0
    %v2670 = vadd.f32 %v2629, %v2669
    %2671 = vmatmul.f32.gmra.mxu0 %v2491
    %v2672 = vpop.f32.mrf.mxu0
    %v2673 = vadd.f32 %v2632, %v2672
    %2674 = vmatmul.f32.gmra.mxu0 %v2493
    %v2675 = vpop.f32.mrf.mxu0
    %v2676 = vadd.f32 %v2635, %v2675
    %2677 = vmatmul.f32.gmra.mxu0 %v2495
    %v2678 = vpop.f32.mrf.mxu0
    %v2679 = vadd.f32 %v2638, %v2678
    %2680 = vmatmul.f32.gmra.mxu0 %v2497
    %v2681 = vpop.f32.mrf.mxu0
    %v2682 = vadd.f32 %v2641, %v2681
    %2683 = vdwg.mxu0
    %2684 = vmatpush.msra.mxu0 %v2544
    %2685 = vmatpush.msra.mxu0 %v2541
    %2686 = vmatpush.msra.mxu0 %v2538
    %2687 = vmatpush.msra.mxu0 %v2535
    %2688 = vmatpush.msra.mxu0 %v2532
    %2689 = vmatpush.msra.mxu0 %v2529
    %2690 = vmatpush.msra.mxu0 %v2526
    %2691 = vmatpush.msra.mxu0 %v2523
    %2692 = vmatpush.msra.mxu0 %v2520
    %2693 = vmatpush.msra.mxu0 %v2517
    %2694 = vmatpush.msra.mxu0 %v2514
    %2695 = vmatpush.msra.mxu0 %v2511
    %2696 = vmatpush.msra.mxu0 %v2508
    %2697 = vmatpush.msra.mxu0 %v2505
    %2698 = vmatpush.msra.mxu0 %v2502
    %2699 = vmatpush.msra.mxu0 %v2499
    %2700 = vmatmul.f32.gmra.mxu0 %v2482
    %v2701 = vpop.f32.mrf.mxu0
    %v2702 = vadd.f32 %v2597, %v2701
    %2703 = vmatmul.f32.gmra.mxu0 %v2484
    %v2704 = vpop.f32.mrf.mxu0
    %v2705 = vadd.f32 %v2597, %v2704
    %2706 = vmatmul.f32.gmra.mxu0 %v2486
    %v2707 = vpop.f32.mrf.mxu0
    %v2708 = vadd.f32 %v2597, %v2707
    %2709 = vmatmul.f32.gmra.mxu0 %v2488
    %v2710 = vpop.f32.mrf.mxu0
    %v2711 = vadd.f32 %v2597, %v2710
    %2712 = vmatmul.f32.gmra.mxu0 %v2490
    %v2713 = vpop.f32.mrf.mxu0
    %v2714 = vadd.f32 %v2597, %v2713
    %2715 = vmatmul.f32.gmra.mxu0 %v2492
    %v2716 = vpop.f32.mrf.mxu0
    %v2717 = vadd.f32 %v2597, %v2716
    %2718 = vmatmul.f32.gmra.mxu0 %v2494
    %v2719 = vpop.f32.mrf.mxu0
    %v2720 = vadd.f32 %v2597, %v2719
    %2721 = vmatmul.f32.gmra.mxu0 %v2496
    %v2722 = vpop.f32.mrf.mxu0
    %v2723 = vadd.f32 %v2597, %v2722
    %2724 = vdwg.mxu0
    %2725 = vmatpush.msra.mxu0 %v2592
    %2726 = vmatpush.msra.mxu0 %v2589
    %2727 = vmatpush.msra.mxu0 %v2586
    %2728 = vmatpush.msra.mxu0 %v2583
    %2729 = vmatpush.msra.mxu0 %v2580
    %2730 = vmatpush.msra.mxu0 %v2577
    %2731 = vmatpush.msra.mxu0 %v2574
    %2732 = vmatpush.msra.mxu0 %v2571
    %2733 = vmatpush.msra.mxu0 %v2568
    %2734 = vmatpush.msra.mxu0 %v2565
    %2735 = vmatpush.msra.mxu0 %v2562
    %2736 = vmatpush.msra.mxu0 %v2559
    %2737 = vmatpush.msra.mxu0 %v2556
    %2738 = vmatpush.msra.mxu0 %v2553
    %2739 = vmatpush.msra.mxu0 %v2550
    %2740 = vmatpush.msra.mxu0 %v2547
    %2741 = vmatmul.f32.gmra.mxu0 %v2483
    %v2742 = vpop.f32.mrf.mxu0
    %v2743 = vadd.f32 %v2702, %v2742
    %2744 = vmatmul.f32.gmra.mxu0 %v2485
    %v2745 = vpop.f32.mrf.mxu0
    %v2746 = vadd.f32 %v2705, %v2745
    %2747 = vmatmul.f32.gmra.mxu0 %v2487
    %v2748 = vpop.f32.mrf.mxu0
    %v2749 = vadd.f32 %v2708, %v2748
    %2750 = vmatmul.f32.gmra.mxu0 %v2489
    %v2751 = vpop.f32.mrf.mxu0
    %v2752 = vadd.f32 %v2711, %v2751
    %2753 = vmatmul.f32.gmra.mxu0 %v2491
    %v2754 = vpop.f32.mrf.mxu0
    %v2755 = vadd.f32 %v2714, %v2754
    %2756 = vmatmul.f32.gmra.mxu0 %v2493
    %v2757 = vpop.f32.mrf.mxu0
    %v2758 = vadd.f32 %v2717, %v2757
    %2759 = vmatmul.f32.gmra.mxu0 %v2495
    %v2760 = vpop.f32.mrf.mxu0
    %v2761 = vadd.f32 %v2720, %v2760
    %2762 = vmatmul.f32.gmra.mxu0 %v2497
    %v2763 = vpop.f32.mrf.mxu0
    %v2764 = vadd.f32 %v2723, %v2763
    %2765 = vdwg.mxu0
    %2766 = vmatpush.msra.mxu0 %v2545
    %2767 = vmatpush.msra.mxu0 %v2542
    %2768 = vmatpush.msra.mxu0 %v2539
    %2769 = vmatpush.msra.mxu0 %v2536
    %2770 = vmatpush.msra.mxu0 %v2533
    %2771 = vmatpush.msra.mxu0 %v2530
    %2772 = vmatpush.msra.mxu0 %v2527
    %2773 = vmatpush.msra.mxu0 %v2524
    %2774 = vmatpush.msra.mxu0 %v2521
    %2775 = vmatpush.msra.mxu0 %v2518
    %2776 = vmatpush.msra.mxu0 %v2515
    %2777 = vmatpush.msra.mxu0 %v2512
    %2778 = vmatpush.msra.mxu0 %v2509
    %2779 = vmatpush.msra.mxu0 %v2506
    %2780 = vmatpush.msra.mxu0 %v2503
    %2781 = vmatpush.msra.mxu0 %v2500
    %2782 = vmatmul.f32.gmra.mxu0 %v2482
    %v2783 = vpop.f32.mrf.mxu0
    %v2784 = vadd.f32 %v2598, %v2783
    %2785 = vmatmul.f32.gmra.mxu0 %v2484
    %v2786 = vpop.f32.mrf.mxu0
    %v2787 = vadd.f32 %v2598, %v2786
    %2788 = vmatmul.f32.gmra.mxu0 %v2486
    %v2789 = vpop.f32.mrf.mxu0
    %v2790 = vadd.f32 %v2598, %v2789
    %2791 = vmatmul.f32.gmra.mxu0 %v2488
    %v2792 = vpop.f32.mrf.mxu0
    %v2793 = vadd.f32 %v2598, %v2792
    %2794 = vmatmul.f32.gmra.mxu0 %v2490
    %v2795 = vpop.f32.mrf.mxu0
    %v2796 = vadd.f32 %v2598, %v2795
    %2797 = vmatmul.f32.gmra.mxu0 %v2492
    %v2798 = vpop.f32.mrf.mxu0
    %v2799 = vadd.f32 %v2598, %v2798
    %2800 = vmatmul.f32.gmra.mxu0 %v2494
    %v2801 = vpop.f32.mrf.mxu0
    %v2802 = vadd.f32 %v2598, %v2801
    %2803 = vmatmul.f32.gmra.mxu0 %v2496
    %v2804 = vpop.f32.mrf.mxu0
    %v2805 = vadd.f32 %v2598, %v2804
    %2806 = vdwg.mxu0
    %2807 = vmatpush.msra.mxu0 %v2593
    %2808 = vmatpush.msra.mxu0 %v2590
    %2809 = vmatpush.msra.mxu0 %v2587
    %2810 = vmatpush.msra.mxu0 %v2584
    %2811 = vmatpush.msra.mxu0 %v2581
    %2812 = vmatpush.msra.mxu0 %v2578
    %2813 = vmatpush.msra.mxu0 %v2575
    %2814 = vmatpush.msra.mxu0 %v2572
    %2815 = vmatpush.msra.mxu0 %v2569
    %2816 = vmatpush.msra.mxu0 %v2566
    %2817 = vmatpush.msra.mxu0 %v2563
    %2818 = vmatpush.msra.mxu0 %v2560
    %2819 = vmatpush.msra.mxu0 %v2557
    %2820 = vmatpush.msra.mxu0 %v2554
    %2821 = vmatpush.msra.mxu0 %v2551
    %2822 = vmatpush.msra.mxu0 %v2548
    %2823 = vmatmul.f32.gmra.mxu0 %v2483
    %v2824 = vpop.f32.mrf.mxu0
    %v2825 = vadd.f32 %v2784, %v2824
    %2826 = vmatmul.f32.gmra.mxu0 %v2485
    %v2827 = vpop.f32.mrf.mxu0
    %v2828 = vadd.f32 %v2787, %v2827
    %2829 = vmatmul.f32.gmra.mxu0 %v2487
    %v2830 = vpop.f32.mrf.mxu0
    %v2831 = vadd.f32 %v2790, %v2830
    %2832 = vmatmul.f32.gmra.mxu0 %v2489
    %v2833 = vpop.f32.mrf.mxu0
    %v2834 = vadd.f32 %v2793, %v2833
    %2835 = vmatmul.f32.gmra.mxu0 %v2491
    %v2836 = vpop.f32.mrf.mxu0
    %v2837 = vadd.f32 %v2796, %v2836
    %2838 = vmatmul.f32.gmra.mxu0 %v2493
    %v2839 = vpop.f32.mrf.mxu0
    %v2840 = vadd.f32 %v2799, %v2839
    %2841 = vmatmul.f32.gmra.mxu0 %v2495
    %v2842 = vpop.f32.mrf.mxu0
    %v2843 = vadd.f32 %v2802, %v2842
    %2844 = vmatmul.f32.gmra.mxu0 %v2497
    %v2845 = vpop.f32.mrf.mxu0
    %v2846 = vadd.f32 %v2805, %v2845
    %2847 = vdwg.mxu0
    %2848 = vst [vmem:[#allocation3] sm:$0xff] %v2661
    %2849 = vst [vmem:[#allocation3 + $0x8] sm:$0xff] %v2743
    %2850 = vst [vmem:[#allocation3 + $0x10] sm:$0xff] %v2825
    %2851 = vst [vmem:[#allocation3 + $0x18] sm:$0xff] %v2664
    %2852 = vst [vmem:[#allocation3 + $0x20] sm:$0xff] %v2746
    %2853 = vst [vmem:[#allocation3 + $0x28] sm:$0xff] %v2828
    %2854 = vst [vmem:[#allocation3 + $0x30] sm:$0xff] %v2667
    %2855 = vst [vmem:[#allocation3 + $0x38] sm:$0xff] %v2749
    %2856 = vst [vmem:[#allocation3 + $0x40] sm:$0xff] %v2831
    %2857 = vst [vmem:[#allocation3 + $0x48] sm:$0xff] %v2670
    %2858 = vst [vmem:[#allocation3 + $0x50] sm:$0xff] %v2752
    %2859 = vst [vmem:[#allocation3 + $0x58] sm:$0xff] %v2834
    %2860 = vst [vmem:[#allocation3 + $0x60] sm:$0xff] %v2673
    %2861 = vst [vmem:[#allocation3 + $0x68] sm:$0xff] %v2755
    %2862 = vst [vmem:[#allocation3 + $0x70] sm:$0xff] %v2837
    %2863 = vst [vmem:[#allocation3 + $0x78] sm:$0xff] %v2676
    %2864 = vst [vmem:[#allocation3 + $0x80] sm:$0xff] %v2758
    %2865 = vst [vmem:[#allocation3 + $0x88] sm:$0xff] %v2840
    %2866 = vst [vmem:[#allocation3 + $0x90] sm:$0xff] %v2679
    %2867 = vst [vmem:[#allocation3 + $0x98] sm:$0xff] %v2761
    %2868 = vst [vmem:[#allocation3 + $0xa0] sm:$0xff] %v2843
    %2869 = vst [vmem:[#allocation3 + $0xa8] sm:$0xff] %v2682
    %2870 = vst [vmem:[#allocation3 + $0xb0] sm:$0xff] %v2764
    %2871 = vst [vmem:[#allocation3 + $0xb8] sm:$0xff] %v2846
    %v2872 = vld [vmem:[#allocation15] sm:$0xff]
    %v2873 = vld [vmem:[#allocation15 + $0x8] sm:$0xff]
    %v2874 = vld [vmem:[#allocation15 + $0x10] sm:$0xff]
    %v2875 = vld [vmem:[#allocation15 + $0x18] sm:$0xff]
    %v2876 = vld [vmem:[#allocation15 + $0x20] sm:$0xff]
    %v2877 = vld [vmem:[#allocation15 + $0x28] sm:$0xff]
    %v2878 = vld [vmem:[#allocation15 + $0x30] sm:$0xff]
    %v2879 = vld [vmem:[#allocation15 + $0x38] sm:$0xff]
    %v2880 = vld [vmem:[#allocation15 + $0x40] sm:$0xff]
    %v2881 = vld [vmem:[#allocation15 + $0x48] sm:$0xff]
    %v2882 = vld [vmem:[#allocation15 + $0x50] sm:$0xff]
    %v2883 = vld [vmem:[#allocation15 + $0x58] sm:$0xff]
    %v2884 = vld [vmem:[#allocation15 + $0x60] sm:$0xff]
    %v2885 = vld [vmem:[#allocation15 + $0x68] sm:$0xff]
    %v2886 = vld [vmem:[#allocation15 + $0x70] sm:$0xff]
    %v2887 = vld [vmem:[#allocation15 + $0x78] sm:$0xff]
    %v2888 = vld [vmem:[#allocation15 + $0x80] sm:$0xff]
    %v2889 = vld [vmem:[#allocation15 + $0x88] sm:$0xff]
    %v2890 = vld [vmem:[#allocation15 + $0x90] sm:$0xff]
    %v2891 = vld [vmem:[#allocation15 + $0x98] sm:$0xff]
    %v2892 = vld [vmem:[#allocation15 + $0xa0] sm:$0xff]
    %v2893 = vld [vmem:[#allocation15 + $0xa8] sm:$0xff]
    %v2894 = vld [vmem:[#allocation15 + $0xb0] sm:$0xff]
    %v2895 = vld [vmem:[#allocation15 + $0xb8] sm:$0xff]
    %v2896 = vld [vmem:[#allocation15 + $0xc0] sm:$0xff]
    %v2897 = vld [vmem:[#allocation15 + $0xc8] sm:$0xff]
    %v2898 = vld [vmem:[#allocation15 + $0xd0] sm:$0xff]
    %v2899 = vld [vmem:[#allocation15 + $0xd8] sm:$0xff]
    %v2900 = vld [vmem:[#allocation15 + $0xe0] sm:$0xff]
    %v2901 = vld [vmem:[#allocation15 + $0xe8] sm:$0xff]
    %v2902 = vld [vmem:[#allocation15 + $0xf0] sm:$0xff]
    %v2903 = vld [vmem:[#allocation15 + $0xf8] sm:$0xff]
    %v2904 = vld [vmem:[#allocation15 + $0x100] sm:$0xff]
    %v2905 = vld [vmem:[#allocation15 + $0x108] sm:$0xff]
    %v2906 = vld [vmem:[#allocation15 + $0x110] sm:$0xff]
    %v2907 = vld [vmem:[#allocation15 + $0x118] sm:$0xff]
    %v2908 = vld [vmem:[#allocation15 + $0x120] sm:$0xff]
    %v2909 = vld [vmem:[#allocation15 + $0x128] sm:$0xff]
    %v2910 = vld [vmem:[#allocation15 + $0x130] sm:$0xff]
    %v2911 = vld [vmem:[#allocation15 + $0x138] sm:$0xff]
    %v2912 = vld [vmem:[#allocation15 + $0x140] sm:$0xff]
    %v2913 = vld [vmem:[#allocation15 + $0x148] sm:$0xff]
    %v2914 = vld [vmem:[#allocation15 + $0x150] sm:$0xff]
    %v2915 = vld [vmem:[#allocation15 + $0x158] sm:$0xff]
    %v2916 = vld [vmem:[#allocation15 + $0x160] sm:$0xff]
    %v2917 = vld [vmem:[#allocation15 + $0x168] sm:$0xff]
    %v2918 = vld [vmem:[#allocation15 + $0x170] sm:$0xff]
    %v2919 = vld [vmem:[#allocation15 + $0x178] sm:$0xff]
    %v2920 = vld [vmem:[#allocation15 + $0x180] sm:$0xff]
    %v2921 = vld [vmem:[#allocation15 + $0x188] sm:$0xff]
    %v2922 = vld [vmem:[#allocation15 + $0x190] sm:$0xff]
    %v2923 = vld [vmem:[#allocation15 + $0x198] sm:$0xff]
    %v2924 = vld [vmem:[#allocation15 + $0x1a0] sm:$0xff]
    %v2925 = vld [vmem:[#allocation15 + $0x1a8] sm:$0xff]
    %v2926 = vld [vmem:[#allocation15 + $0x1b0] sm:$0xff]
    %v2927 = vld [vmem:[#allocation15 + $0x1b8] sm:$0xff]
    %v2928 = vld [vmem:[#allocation15 + $0x1c0] sm:$0xff]
    %v2929 = vld [vmem:[#allocation15 + $0x1c8] sm:$0xff]
    %v2930 = vld [vmem:[#allocation15 + $0x1d0] sm:$0xff]
    %v2931 = vld [vmem:[#allocation15 + $0x1d8] sm:$0xff]
    %v2932 = vld [vmem:[#allocation15 + $0x1e0] sm:$0xff]
    %v2933 = vld [vmem:[#allocation15 + $0x1e8] sm:$0xff]
    %v2934 = vld [vmem:[#allocation15 + $0x1f0] sm:$0xff]
    %v2935 = vld [vmem:[#allocation15 + $0x1f8] sm:$0xff]
    %v2936 = vld [vmem:[#allocation15 + $0x200] sm:$0xff]
    %v2937 = vld [vmem:[#allocation15 + $0x208] sm:$0xff]
    %v2938 = vld [vmem:[#allocation15 + $0x210] sm:$0xff]
    %v2939 = vld [vmem:[#allocation15 + $0x218] sm:$0xff]
    %v2940 = vld [vmem:[#allocation15 + $0x220] sm:$0xff]
    %v2941 = vld [vmem:[#allocation15 + $0x228] sm:$0xff]
    %v2942 = vld [vmem:[#allocation15 + $0x230] sm:$0xff]
    %v2943 = vld [vmem:[#allocation15 + $0x238] sm:$0xff]
    %v2944 = vld [vmem:[#allocation15 + $0x240] sm:$0xff]
    %v2945 = vld [vmem:[#allocation15 + $0x248] sm:$0xff]
    %v2946 = vld [vmem:[#allocation15 + $0x250] sm:$0xff]
    %v2947 = vld [vmem:[#allocation15 + $0x258] sm:$0xff]
    %v2948 = vld [vmem:[#allocation15 + $0x260] sm:$0xff]
    %v2949 = vld [vmem:[#allocation15 + $0x268] sm:$0xff]
    %v2950 = vld [vmem:[#allocation15 + $0x270] sm:$0xff]
    %v2951 = vld [vmem:[#allocation15 + $0x278] sm:$0xff]
    %v2952 = vld [vmem:[#allocation15 + $0x280] sm:$0xff]
    %v2953 = vld [vmem:[#allocation15 + $0x288] sm:$0xff]
    %v2954 = vld [vmem:[#allocation15 + $0x290] sm:$0xff]
    %v2955 = vld [vmem:[#allocation15 + $0x298] sm:$0xff]
    %v2956 = vld [vmem:[#allocation15 + $0x2a0] sm:$0xff]
    %v2957 = vld [vmem:[#allocation15 + $0x2a8] sm:$0xff]
    %v2958 = vld [vmem:[#allocation15 + $0x2b0] sm:$0xff]
    %v2959 = vld [vmem:[#allocation15 + $0x2b8] sm:$0xff]
    %v2960 = vld [vmem:[#allocation15 + $0x2c0] sm:$0xff]
    %v2961 = vld [vmem:[#allocation15 + $0x2c8] sm:$0xff]
    %v2962 = vld [vmem:[#allocation15 + $0x2d0] sm:$0xff]
    %v2963 = vld [vmem:[#allocation15 + $0x2d8] sm:$0xff]
    %v2964 = vld [vmem:[#allocation15 + $0x2e0] sm:$0xff]
    %v2965 = vld [vmem:[#allocation15 + $0x2e8] sm:$0xff]
    %v2966 = vld [vmem:[#allocation15 + $0x2f0] sm:$0xff]
    %v2967 = vld [vmem:[#allocation15 + $0x2f8] sm:$0xff]
    %v2968 = vld [vmem:[%s15] sm:$0x7]
    %v2970 = vperm.slane %v2968, 0
    %v2971 = vperm.slane %v2968, 1
    %v2972 = vperm.slane %v2968, 2
    %2976 = vmatpush.msra.mxu0 %v2917
    %2977 = vmatpush.msra.mxu0 %v2914
    %2978 = vmatpush.msra.mxu0 %v2911
    %2979 = vmatpush.msra.mxu0 %v2908
    %2980 = vmatpush.msra.mxu0 %v2905
    %2981 = vmatpush.msra.mxu0 %v2902
    %2982 = vmatpush.msra.mxu0 %v2899
    %2983 = vmatpush.msra.mxu0 %v2896
    %2984 = vmatpush.msra.mxu0 %v2893
    %2985 = vmatpush.msra.mxu0 %v2890
    %2986 = vmatpush.msra.mxu0 %v2887
    %2987 = vmatpush.msra.mxu0 %v2884
    %2988 = vmatpush.msra.mxu0 %v2881
    %2989 = vmatpush.msra.mxu0 %v2878
    %2990 = vmatpush.msra.mxu0 %v2875
    %2991 = vmatpush.msra.mxu0 %v2872
    %2992 = vmatmul.f32.gmra.mxu0 %v2482
    %v2993 = vpop.f32.mrf.mxu0
    %v2994 = vadd.f32 %v2970, %v2993
    %2995 = vmatmul.f32.gmra.mxu0 %v2484
    %v2996 = vpop.f32.mrf.mxu0
    %v2997 = vadd.f32 %v2970, %v2996
    %2998 = vmatmul.f32.gmra.mxu0 %v2486
    %v2999 = vpop.f32.mrf.mxu0
    %v3000 = vadd.f32 %v2970, %v2999
    %3001 = vmatmul.f32.gmra.mxu0 %v2488
    %v3002 = vpop.f32.mrf.mxu0
    %v3003 = vadd.f32 %v2970, %v3002
    %3004 = vmatmul.f32.gmra.mxu0 %v2490
    %v3005 = vpop.f32.mrf.mxu0
    %v3006 = vadd.f32 %v2970, %v3005
    %3007 = vmatmul.f32.gmra.mxu0 %v2492
    %v3008 = vpop.f32.mrf.mxu0
    %v3009 = vadd.f32 %v2970, %v3008
    %3010 = vmatmul.f32.gmra.mxu0 %v2494
    %v3011 = vpop.f32.mrf.mxu0
    %v3012 = vadd.f32 %v2970, %v3011
    %3013 = vmatmul.f32.gmra.mxu0 %v2496
    %v3014 = vpop.f32.mrf.mxu0
    %v3015 = vadd.f32 %v2970, %v3014
    %3016 = vdwg.mxu0
    %3017 = vmatpush.msra.mxu0 %v2965
    %3018 = vmatpush.msra.mxu0 %v2962
    %3019 = vmatpush.msra.mxu0 %v2959
    %3020 = vmatpush.msra.mxu0 %v2956
    %3021 = vmatpush.msra.mxu0 %v2953
    %3022 = vmatpush.msra.mxu0 %v2950
    %3023 = vmatpush.msra.mxu0 %v2947
    %3024 = vmatpush.msra.mxu0 %v2944
    %3025 = vmatpush.msra.mxu0 %v2941
    %3026 = vmatpush.msra.mxu0 %v2938
    %3027 = vmatpush.msra.mxu0 %v2935
    %3028 = vmatpush.msra.mxu0 %v2932
    %3029 = vmatpush.msra.mxu0 %v2929
    %3030 = vmatpush.msra.mxu0 %v2926
    %3031 = vmatpush.msra.mxu0 %v2923
    %3032 = vmatpush.msra.mxu0 %v2920
    %3033 = vmatmul.f32.gmra.mxu0 %v2483
    %v3034 = vpop.f32.mrf.mxu0
    %v3035 = vadd.f32 %v2994, %v3034
    %3036 = vmatmul.f32.gmra.mxu0 %v2485
    %v3037 = vpop.f32.mrf.mxu0
    %v3038 = vadd.f32 %v2997, %v3037
    %3039 = vmatmul.f32.gmra.mxu0 %v2487
    %v3040 = vpop.f32.mrf.mxu0
    %v3041 = vadd.f32 %v3000, %v3040
    %3042 = vmatmul.f32.gmra.mxu0 %v2489
    %v3043 = vpop.f32.mrf.mxu0
    %v3044 = vadd.f32 %v3003, %v3043
    %3045 = vmatmul.f32.gmra.mxu0 %v2491
    %v3046 = vpop.f32.mrf.mxu0
    %v3047 = vadd.f32 %v3006, %v3046
    %3048 = vmatmul.f32.gmra.mxu0 %v2493
    %v3049 = vpop.f32.mrf.mxu0
    %v3050 = vadd.f32 %v3009, %v3049
    %3051 = vmatmul.f32.gmra.mxu0 %v2495
    %v3052 = vpop.f32.mrf.mxu0
    %v3053 = vadd.f32 %v3012, %v3052
    %3054 = vmatmul.f32.gmra.mxu0 %v2497
    %v3055 = vpop.f32.mrf.mxu0
    %v3056 = vadd.f32 %v3015, %v3055
    %3057 = vdwg.mxu0
    %3058 = vmatpush.msra.mxu0 %v2918
    %3059 = vmatpush.msra.mxu0 %v2915
    %3060 = vmatpush.msra.mxu0 %v2912
    %3061 = vmatpush.msra.mxu0 %v2909
    %3062 = vmatpush.msra.mxu0 %v2906
    %3063 = vmatpush.msra.mxu0 %v2903
    %3064 = vmatpush.msra.mxu0 %v2900
    %3065 = vmatpush.msra.mxu0 %v2897
    %3066 = vmatpush.msra.mxu0 %v2894
    %3067 = vmatpush.msra.mxu0 %v2891
    %3068 = vmatpush.msra.mxu0 %v2888
    %3069 = vmatpush.msra.mxu0 %v2885
    %3070 = vmatpush.msra.mxu0 %v2882
    %3071 = vmatpush.msra.mxu0 %v2879
    %3072 = vmatpush.msra.mxu0 %v2876
    %3073 = vmatpush.msra.mxu0 %v2873
    %3074 = vmatmul.f32.gmra.mxu0 %v2482
    %v3075 = vpop.f32.mrf.mxu0
    %v3076 = vadd.f32 %v2971, %v3075
    %3077 = vmatmul.f32.gmra.mxu0 %v2484
    %v3078 = vpop.f32.mrf.mxu0
    %v3079 = vadd.f32 %v2971, %v3078
    %3080 = vmatmul.f32.gmra.mxu0 %v2486
    %v3081 = vpop.f32.mrf.mxu0
    %v3082 = vadd.f32 %v2971, %v3081
    %3083 = vmatmul.f32.gmra.mxu0 %v2488
    %v3084 = vpop.f32.mrf.mxu0
    %v3085 = vadd.f32 %v2971, %v3084
    %3086 = vmatmul.f32.gmra.mxu0 %v2490
    %v3087 = vpop.f32.mrf.mxu0
    %v3088 = vadd.f32 %v2971, %v3087
    %3089 = vmatmul.f32.gmra.mxu0 %v2492
    %v3090 = vpop.f32.mrf.mxu0
    %v3091 = vadd.f32 %v2971, %v3090
    %3092 = vmatmul.f32.gmra.mxu0 %v2494
    %v3093 = vpop.f32.mrf.mxu0
    %v3094 = vadd.f32 %v2971, %v3093
    %3095 = vmatmul.f32.gmra.mxu0 %v2496
    %v3096 = vpop.f32.mrf.mxu0
    %v3097 = vadd.f32 %v2971, %v3096
    %3098 = vdwg.mxu0
    %3099 = vmatpush.msra.mxu0 %v2966
    %3100 = vmatpush.msra.mxu0 %v2963
    %3101 = vmatpush.msra.mxu0 %v2960
    %3102 = vmatpush.msra.mxu0 %v2957
    %3103 = vmatpush.msra.mxu0 %v2954
    %3104 = vmatpush.msra.mxu0 %v2951
    %3105 = vmatpush.msra.mxu0 %v2948
    %3106 = vmatpush.msra.mxu0 %v2945
    %3107 = vmatpush.msra.mxu0 %v2942
    %3108 = vmatpush.msra.mxu0 %v2939
    %3109 = vmatpush.msra.mxu0 %v2936
    %3110 = vmatpush.msra.mxu0 %v2933
    %3111 = vmatpush.msra.mxu0 %v2930
    %3112 = vmatpush.msra.mxu0 %v2927
    %3113 = vmatpush.msra.mxu0 %v2924
    %3114 = vmatpush.msra.mxu0 %v2921
    %3115 = vmatmul.f32.gmra.mxu0 %v2483
    %v3116 = vpop.f32.mrf.mxu0
    %v3117 = vadd.f32 %v3076, %v3116
    %3118 = vmatmul.f32.gmra.mxu0 %v2485
    %v3119 = vpop.f32.mrf.mxu0
    %v3120 = vadd.f32 %v3079, %v3119
    %3121 = vmatmul.f32.gmra.mxu0 %v2487
    %v3122 = vpop.f32.mrf.mxu0
    %v3123 = vadd.f32 %v3082, %v3122
    %3124 = vmatmul.f32.gmra.mxu0 %v2489
    %v3125 = vpop.f32.mrf.mxu0
    %v3126 = vadd.f32 %v3085, %v3125
    %3127 = vmatmul.f32.gmra.mxu0 %v2491
    %v3128 = vpop.f32.mrf.mxu0
    %v3129 = vadd.f32 %v3088, %v3128
    %3130 = vmatmul.f32.gmra.mxu0 %v2493
    %v3131 = vpop.f32.mrf.mxu0
    %v3132 = vadd.f32 %v3091, %v3131
    %3133 = vmatmul.f32.gmra.mxu0 %v2495
    %v3134 = vpop.f32.mrf.mxu0
    %v3135 = vadd.f32 %v3094, %v3134
    %3136 = vmatmul.f32.gmra.mxu0 %v2497
    %v3137 = vpop.f32.mrf.mxu0
    %v3138 = vadd.f32 %v3097, %v3137
    %3139 = vdwg.mxu0
    %3140 = vmatpush.msra.mxu0 %v2919
    %3141 = vmatpush.msra.mxu0 %v2916
    %3142 = vmatpush.msra.mxu0 %v2913
    %3143 = vmatpush.msra.mxu0 %v2910
    %3144 = vmatpush.msra.mxu0 %v2907
    %3145 = vmatpush.msra.mxu0 %v2904
    %3146 = vmatpush.msra.mxu0 %v2901
    %3147 = vmatpush.msra.mxu0 %v2898
    %3148 = vmatpush.msra.mxu0 %v2895
    %3149 = vmatpush.msra.mxu0 %v2892
    %3150 = vmatpush.msra.mxu0 %v2889
    %3151 = vmatpush.msra.mxu0 %v2886
    %3152 = vmatpush.msra.mxu0 %v2883
    %3153 = vmatpush.msra.mxu0 %v2880
    %3154 = vmatpush.msra.mxu0 %v2877
    %3155 = vmatpush.msra.mxu0 %v2874
    %3156 = vmatmul.f32.gmra.mxu0 %v2482
    %v3157 = vpop.f32.mrf.mxu0
    %v3158 = vadd.f32 %v2972, %v3157
    %3159 = vmatmul.f32.gmra.mxu0 %v2484
    %v3160 = vpop.f32.mrf.mxu0
    %v3161 = vadd.f32 %v2972, %v3160
    %3162 = vmatmul.f32.gmra.mxu0 %v2486
    %v3163 = vpop.f32.mrf.mxu0
    %v3164 = vadd.f32 %v2972, %v3163
    %3165 = vmatmul.f32.gmra.mxu0 %v2488
    %v3166 = vpop.f32.mrf.mxu0
    %v3167 = vadd.f32 %v2972, %v3166
    %3168 = vmatmul.f32.gmra.mxu0 %v2490
    %v3169 = vpop.f32.mrf.mxu0
    %v3170 = vadd.f32 %v2972, %v3169
    %3171 = vmatmul.f32.gmra.mxu0 %v2492
    %v3172 = vpop.f32.mrf.mxu0
    %v3173 = vadd.f32 %v2972, %v3172
    %3174 = vmatmul.f32.gmra.mxu0 %v2494
    %v3175 = vpop.f32.mrf.mxu0
    %v3176 = vadd.f32 %v2972, %v3175
    %3177 = vmatmul.f32.gmra.mxu0 %v2496
    %v3178 = vpop.f32.mrf.mxu0
    %v3179 = vadd.f32 %v2972, %v3178
    %3180 = vdwg.mxu0
    %3181 = vmatpush.msra.mxu0 %v2967
    %3182 = vmatpush.msra.mxu0 %v2964
    %3183 = vmatpush.msra.mxu0 %v2961
    %3184 = vmatpush.msra.mxu0 %v2958
    %3185 = vmatpush.msra.mxu0 %v2955
    %3186 = vmatpush.msra.mxu0 %v2952
    %3187 = vmatpush.msra.mxu0 %v2949
    %3188 = vmatpush.msra.mxu0 %v2946
    %3189 = vmatpush.msra.mxu0 %v2943
    %3190 = vmatpush.msra.mxu0 %v2940
    %3191 = vmatpush.msra.mxu0 %v2937
    %3192 = vmatpush.msra.mxu0 %v2934
    %3193 = vmatpush.msra.mxu0 %v2931
    %3194 = vmatpush.msra.mxu0 %v2928
    %3195 = vmatpush.msra.mxu0 %v2925
    %3196 = vmatpush.msra.mxu0 %v2922
    %3197 = vmatmul.f32.gmra.mxu0 %v2483
    %v3198 = vpop.f32.mrf.mxu0
    %v3199 = vadd.f32 %v3158, %v3198
    %3200 = vmatmul.f32.gmra.mxu0 %v2485
    %v3201 = vpop.f32.mrf.mxu0
    %v3202 = vadd.f32 %v3161, %v3201
    %3203 = vmatmul.f32.gmra.mxu0 %v2487
    %v3204 = vpop.f32.mrf.mxu0
    %v3205 = vadd.f32 %v3164, %v3204
    %3206 = vmatmul.f32.gmra.mxu0 %v2489
    %v3207 = vpop.f32.mrf.mxu0
    %v3208 = vadd.f32 %v3167, %v3207
    %3209 = vmatmul.f32.gmra.mxu0 %v2491
    %v3210 = vpop.f32.mrf.mxu0
    %v3211 = vadd.f32 %v3170, %v3210
    %3212 = vmatmul.f32.gmra.mxu0 %v2493
    %v3213 = vpop.f32.mrf.mxu0
    %v3214 = vadd.f32 %v3173, %v3213
    %3215 = vmatmul.f32.gmra.mxu0 %v2495
    %v3216 = vpop.f32.mrf.mxu0
    %v3217 = vadd.f32 %v3176, %v3216
    %3218 = vmatmul.f32.gmra.mxu0 %v2497
    %v3219 = vpop.f32.mrf.mxu0
    %v3220 = vadd.f32 %v3179, %v3219
    %3221 = vdwg.mxu0
    %3222 = vst [vmem:[#allocation4] sm:$0xff] %v3035
    %3223 = vst [vmem:[#allocation4 + $0x8] sm:$0xff] %v3117
    %3224 = vst [vmem:[#allocation4 + $0x10] sm:$0xff] %v3199
    %3225 = vst [vmem:[#allocation4 + $0x18] sm:$0xff] %v3038
    %3226 = vst [vmem:[#allocation4 + $0x20] sm:$0xff] %v3120
    %3227 = vst [vmem:[#allocation4 + $0x28] sm:$0xff] %v3202
    %3228 = vst [vmem:[#allocation4 + $0x30] sm:$0xff] %v3041
    %3229 = vst [vmem:[#allocation4 + $0x38] sm:$0xff] %v3123
    %3230 = vst [vmem:[#allocation4 + $0x40] sm:$0xff] %v3205
    %3231 = vst [vmem:[#allocation4 + $0x48] sm:$0xff] %v3044
    %3232 = vst [vmem:[#allocation4 + $0x50] sm:$0xff] %v3126
    %3233 = vst [vmem:[#allocation4 + $0x58] sm:$0xff] %v3208
    %3234 = vst [vmem:[#allocation4 + $0x60] sm:$0xff] %v3047
    %3235 = vst [vmem:[#allocation4 + $0x68] sm:$0xff] %v3129
    %3236 = vst [vmem:[#allocation4 + $0x70] sm:$0xff] %v3211
    %3237 = vst [vmem:[#allocation4 + $0x78] sm:$0xff] %v3050
    %3238 = vst [vmem:[#allocation4 + $0x80] sm:$0xff] %v3132
    %3239 = vst [vmem:[#allocation4 + $0x88] sm:$0xff] %v3214
    %3240 = vst [vmem:[#allocation4 + $0x90] sm:$0xff] %v3053
    %3241 = vst [vmem:[#allocation4 + $0x98] sm:$0xff] %v3135
    %3242 = vst [vmem:[#allocation4 + $0xa0] sm:$0xff] %v3217
    %3243 = vst [vmem:[#allocation4 + $0xa8] sm:$0xff] %v3056
    %3244 = vst [vmem:[#allocation4 + $0xb0] sm:$0xff] %v3138
    %3245 = vst [vmem:[#allocation4 + $0xb8] sm:$0xff] %v3220
    %v3246 = vld [vmem:[#allocation13] sm:$0xff]
    %v3247 = vld [vmem:[#allocation13 + $0x8] sm:$0xff]
    %v3248 = vld [vmem:[#allocation13 + $0x10] sm:$0xff]
    %v3249 = vld [vmem:[#allocation13 + $0x18] sm:$0xff]
    %v3250 = vld [vmem:[#allocation13 + $0x20] sm:$0xff]
    %v3251 = vld [vmem:[#allocation13 + $0x28] sm:$0xff]
    %v3252 = vld [vmem:[#allocation13 + $0x30] sm:$0xff]
    %v3253 = vld [vmem:[#allocation13 + $0x38] sm:$0xff]
    %v3254 = vld [vmem:[#allocation13 + $0x40] sm:$0xff]
    %v3255 = vld [vmem:[#allocation13 + $0x48] sm:$0xff]
    %v3256 = vld [vmem:[#allocation13 + $0x50] sm:$0xff]
    %v3257 = vld [vmem:[#allocation13 + $0x58] sm:$0xff]
    %v3258 = vld [vmem:[#allocation13 + $0x60] sm:$0xff]
    %v3259 = vld [vmem:[#allocation13 + $0x68] sm:$0xff]
    %v3260 = vld [vmem:[#allocation13 + $0x70] sm:$0xff]
    %v3261 = vld [vmem:[#allocation13 + $0x78] sm:$0xff]
    %v3262 = vld [vmem:[#allocation13 + $0x80] sm:$0xff]
    %v3263 = vld [vmem:[#allocation13 + $0x88] sm:$0xff]
    %v3264 = vld [vmem:[#allocation13 + $0x90] sm:$0xff]
    %v3265 = vld [vmem:[#allocation13 + $0x98] sm:$0xff]
    %v3266 = vld [vmem:[#allocation13 + $0xa0] sm:$0xff]
    %v3267 = vld [vmem:[#allocation13 + $0xa8] sm:$0xff]
    %v3268 = vld [vmem:[#allocation13 + $0xb0] sm:$0xff]
    %v3269 = vld [vmem:[#allocation13 + $0xb8] sm:$0xff]
    %v3270 = vld [vmem:[#allocation13 + $0xc0] sm:$0xff]
    %v3271 = vld [vmem:[#allocation13 + $0xc8] sm:$0xff]
    %v3272 = vld [vmem:[#allocation13 + $0xd0] sm:$0xff]
    %v3273 = vld [vmem:[#allocation13 + $0xd8] sm:$0xff]
    %v3274 = vld [vmem:[#allocation13 + $0xe0] sm:$0xff]
    %v3275 = vld [vmem:[#allocation13 + $0xe8] sm:$0xff]
    %v3276 = vld [vmem:[#allocation13 + $0xf0] sm:$0xff]
    %v3277 = vld [vmem:[#allocation13 + $0xf8] sm:$0xff]
    %v3278 = vld [vmem:[#allocation13 + $0x100] sm:$0xff]
    %v3279 = vld [vmem:[#allocation13 + $0x108] sm:$0xff]
    %v3280 = vld [vmem:[#allocation13 + $0x110] sm:$0xff]
    %v3281 = vld [vmem:[#allocation13 + $0x118] sm:$0xff]
    %v3282 = vld [vmem:[#allocation13 + $0x120] sm:$0xff]
    %v3283 = vld [vmem:[#allocation13 + $0x128] sm:$0xff]
    %v3284 = vld [vmem:[#allocation13 + $0x130] sm:$0xff]
    %v3285 = vld [vmem:[#allocation13 + $0x138] sm:$0xff]
    %v3286 = vld [vmem:[#allocation13 + $0x140] sm:$0xff]
    %v3287 = vld [vmem:[#allocation13 + $0x148] sm:$0xff]
    %v3288 = vld [vmem:[#allocation13 + $0x150] sm:$0xff]
    %v3289 = vld [vmem:[#allocation13 + $0x158] sm:$0xff]
    %v3290 = vld [vmem:[#allocation13 + $0x160] sm:$0xff]
    %v3291 = vld [vmem:[#allocation13 + $0x168] sm:$0xff]
    %v3292 = vld [vmem:[#allocation13 + $0x170] sm:$0xff]
    %v3293 = vld [vmem:[#allocation13 + $0x178] sm:$0xff]
    %v3294 = vld [vmem:[#allocation16] sm:$0xff]
    %v3295 = vld [vmem:[#allocation16 + $0x8] sm:$0xff]
    %v3296 = vld [vmem:[#allocation16 + $0x10] sm:$0xff]
    %v3297 = vld [vmem:[#allocation16 + $0x18] sm:$0xff]
    %v3298 = vld [vmem:[#allocation16 + $0x20] sm:$0xff]
    %v3299 = vld [vmem:[#allocation16 + $0x28] sm:$0xff]
    %v3300 = vld [vmem:[#allocation16 + $0x30] sm:$0xff]
    %v3301 = vld [vmem:[#allocation16 + $0x38] sm:$0xff]
    %v3302 = vld [vmem:[#allocation16 + $0x40] sm:$0xff]
    %v3303 = vld [vmem:[#allocation16 + $0x48] sm:$0xff]
    %v3304 = vld [vmem:[#allocation16 + $0x50] sm:$0xff]
    %v3305 = vld [vmem:[#allocation16 + $0x58] sm:$0xff]
    %v3306 = vld [vmem:[#allocation16 + $0x60] sm:$0xff]
    %v3307 = vld [vmem:[#allocation16 + $0x68] sm:$0xff]
    %v3308 = vld [vmem:[#allocation16 + $0x70] sm:$0xff]
    %v3309 = vld [vmem:[#allocation16 + $0x78] sm:$0xff]
    %v3310 = vld [vmem:[#allocation16 + $0x80] sm:$0xff]
    %v3311 = vld [vmem:[#allocation16 + $0x88] sm:$0xff]
    %v3312 = vld [vmem:[#allocation16 + $0x90] sm:$0xff]
    %v3313 = vld [vmem:[#allocation16 + $0x98] sm:$0xff]
    %v3314 = vld [vmem:[#allocation16 + $0xa0] sm:$0xff]
    %v3315 = vld [vmem:[#allocation16 + $0xa8] sm:$0xff]
    %v3316 = vld [vmem:[#allocation16 + $0xb0] sm:$0xff]
    %v3317 = vld [vmem:[#allocation16 + $0xb8] sm:$0xff]
    %v3318 = vld [vmem:[#allocation16 + $0xc0] sm:$0xff]
    %v3319 = vld [vmem:[#allocation16 + $0xc8] sm:$0xff]
    %v3320 = vld [vmem:[#allocation16 + $0xd0] sm:$0xff]
    %v3321 = vld [vmem:[#allocation16 + $0xd8] sm:$0xff]
    %v3322 = vld [vmem:[#allocation16 + $0xe0] sm:$0xff]
    %v3323 = vld [vmem:[#allocation16 + $0xe8] sm:$0xff]
    %v3324 = vld [vmem:[#allocation16 + $0xf0] sm:$0xff]
    %v3325 = vld [vmem:[#allocation16 + $0xf8] sm:$0xff]
    %v3326 = vld [vmem:[#allocation16 + $0x100] sm:$0xff]
    %v3327 = vld [vmem:[#allocation16 + $0x108] sm:$0xff]
    %v3328 = vld [vmem:[#allocation16 + $0x110] sm:$0xff]
    %v3329 = vld [vmem:[#allocation16 + $0x118] sm:$0xff]
    %v3330 = vld [vmem:[#allocation16 + $0x120] sm:$0xff]
    %v3331 = vld [vmem:[#allocation16 + $0x128] sm:$0xff]
    %v3332 = vld [vmem:[#allocation16 + $0x130] sm:$0xff]
    %v3333 = vld [vmem:[#allocation16 + $0x138] sm:$0xff]
    %v3334 = vld [vmem:[#allocation16 + $0x140] sm:$0xff]
    %v3335 = vld [vmem:[#allocation16 + $0x148] sm:$0xff]
    %v3336 = vld [vmem:[#allocation16 + $0x150] sm:$0xff]
    %v3337 = vld [vmem:[#allocation16 + $0x158] sm:$0xff]
    %v3338 = vld [vmem:[#allocation16 + $0x160] sm:$0xff]
    %v3339 = vld [vmem:[#allocation16 + $0x168] sm:$0xff]
    %v3340 = vld [vmem:[#allocation16 + $0x170] sm:$0xff]
    %v3341 = vld [vmem:[#allocation16 + $0x178] sm:$0xff]
    %v3342 = vld [vmem:[%s12] sm:$0x7]
    %v3343 = vld [vmem:[%s16] sm:$0x7]
    %v3345 = vperm.slane %v3342, 0
    %v3346 = vperm.slane %v3342, 1
    %v3347 = vperm.slane %v3342, 2
    %3351 = vmatpush.msra.mxu0 %v3291
    %3352 = vmatpush.msra.mxu0 %v3288
    %3353 = vmatpush.msra.mxu0 %v3285
    %3354 = vmatpush.msra.mxu0 %v3282
    %3355 = vmatpush.msra.mxu0 %v3279
    %3356 = vmatpush.msra.mxu0 %v3276
    %3357 = vmatpush.msra.mxu0 %v3273
    %3358 = vmatpush.msra.mxu0 %v3270
    %3359 = vmatpush.msra.mxu0 %v3267
    %3360 = vmatpush.msra.mxu0 %v3264
    %3361 = vmatpush.msra.mxu0 %v3261
    %3362 = vmatpush.msra.mxu0 %v3258
    %3363 = vmatpush.msra.mxu0 %v3255
    %3364 = vmatpush.msra.mxu0 %v3252
    %3365 = vmatpush.msra.mxu0 %v3249
    %3366 = vmatpush.msra.mxu0 %v3246
    %3367 = vmatmul.f32.gmra.mxu0 0.0
    %v3368 = vpop.f32.mrf.mxu0
    %v3369 = vadd.f32 %v3345, %v3368
    %3370 = vdwg.mxu0
    %3371 = vmatpush.msra.mxu0 %v3292
    %3372 = vmatpush.msra.mxu0 %v3289
    %3373 = vmatpush.msra.mxu0 %v3286
    %3374 = vmatpush.msra.mxu0 %v3283
    %3375 = vmatpush.msra.mxu0 %v3280
    %3376 = vmatpush.msra.mxu0 %v3277
    %3377 = vmatpush.msra.mxu0 %v3274
    %3378 = vmatpush.msra.mxu0 %v3271
    %3379 = vmatpush.msra.mxu0 %v3268
    %3380 = vmatpush.msra.mxu0 %v3265
    %3381 = vmatpush.msra.mxu0 %v3262
    %3382 = vmatpush.msra.mxu0 %v3259
    %3383 = vmatpush.msra.mxu0 %v3256
    %3384 = vmatpush.msra.mxu0 %v3253
    %3385 = vmatpush.msra.mxu0 %v3250
    %3386 = vmatpush.msra.mxu0 %v3247
    %3387 = vmatmul.f32.gmra.mxu0 0.0
    %v3388 = vpop.f32.mrf.mxu0
    %v3389 = vadd.f32 %v3346, %v3388
    %3390 = vdwg.mxu0
    %3391 = vmatpush.msra.mxu0 %v3293
    %3392 = vmatpush.msra.mxu0 %v3290
    %3393 = vmatpush.msra.mxu0 %v3287
    %3394 = vmatpush.msra.mxu0 %v3284
    %3395 = vmatpush.msra.mxu0 %v3281
    %3396 = vmatpush.msra.mxu0 %v3278
    %3397 = vmatpush.msra.mxu0 %v3275
    %3398 = vmatpush.msra.mxu0 %v3272
    %3399 = vmatpush.msra.mxu0 %v3269
    %3400 = vmatpush.msra.mxu0 %v3266
    %3401 = vmatpush.msra.mxu0 %v3263
    %3402 = vmatpush.msra.mxu0 %v3260
    %3403 = vmatpush.msra.mxu0 %v3257
    %3404 = vmatpush.msra.mxu0 %v3254
    %3405 = vmatpush.msra.mxu0 %v3251
    %3406 = vmatpush.msra.mxu0 %v3248
    %3407 = vmatmul.f32.gmra.mxu0 0.0
    %v3408 = vpop.f32.mrf.mxu0
    %v3409 = vadd.f32 %v3347, %v3408
    %3410 = vdwg.mxu0
    %v3412 = vperm.slane %v3343, 0
    %v3413 = vperm.slane %v3343, 1
    %v3414 = vperm.slane %v3343, 2
    %3418 = vmatpush.msra.mxu0 %v3339
    %3419 = vmatpush.msra.mxu0 %v3336
    %3420 = vmatpush.msra.mxu0 %v3333
    %3421 = vmatpush.msra.mxu0 %v3330
    %3422 = vmatpush.msra.mxu0 %v3327
    %3423 = vmatpush.msra.mxu0 %v3324
    %3424 = vmatpush.msra.mxu0 %v3321
    %3425 = vmatpush.msra.mxu0 %v3318
    %3426 = vmatpush.msra.mxu0 %v3315
    %3427 = vmatpush.msra.mxu0 %v3312
    %3428 = vmatpush.msra.mxu0 %v3309
    %3429 = vmatpush.msra.mxu0 %v3306
    %3430 = vmatpush.msra.mxu0 %v3303
    %3431 = vmatpush.msra.mxu0 %v3300
    %3432 = vmatpush.msra.mxu0 %v3297
    %3433 = vmatpush.msra.mxu0 %v3294
    %3434 = vmatmul.f32.gmra.mxu0 0.0
    %v3435 = vpop.f32.mrf.mxu0
    %v3436 = vadd.f32 %v3412, %v3435
    %3437 = vdwg.mxu0
    %3438 = vmatpush.msra.mxu0 %v3340
    %3439 = vmatpush.msra.mxu0 %v3337
    %3440 = vmatpush.msra.mxu0 %v3334
    %3441 = vmatpush.msra.mxu0 %v3331
    %3442 = vmatpush.msra.mxu0 %v3328
    %3443 = vmatpush.msra.mxu0 %v3325
    %3444 = vmatpush.msra.mxu0 %v3322
    %3445 = vmatpush.msra.mxu0 %v3319
    %3446 = vmatpush.msra.mxu0 %v3316
    %3447 = vmatpush.msra.mxu0 %v3313
    %3448 = vmatpush.msra.mxu0 %v3310
    %3449 = vmatpush.msra.mxu0 %v3307
    %3450 = vmatpush.msra.mxu0 %v3304
    %3451 = vmatpush.msra.mxu0 %v3301
    %3452 = vmatpush.msra.mxu0 %v3298
    %3453 = vmatpush.msra.mxu0 %v3295
    %3454 = vmatmul.f32.gmra.mxu0 0.0
    %v3455 = vpop.f32.mrf.mxu0
    %v3456 = vadd.f32 %v3413, %v3455
    %3457 = vdwg.mxu0
    %3458 = vmatpush.msra.mxu0 %v3341
    %3459 = vmatpush.msra.mxu0 %v3338
    %3460 = vmatpush.msra.mxu0 %v3335
    %3461 = vmatpush.msra.mxu0 %v3332
    %3462 = vmatpush.msra.mxu0 %v3329
    %3463 = vmatpush.msra.mxu0 %v3326
    %3464 = vmatpush.msra.mxu0 %v3323
    %3465 = vmatpush.msra.mxu0 %v3320
    %3466 = vmatpush.msra.mxu0 %v3317
    %3467 = vmatpush.msra.mxu0 %v3314
    %3468 = vmatpush.msra.mxu0 %v3311
    %3469 = vmatpush.msra.mxu0 %v3308
    %3470 = vmatpush.msra.mxu0 %v3305
    %3471 = vmatpush.msra.mxu0 %v3302
    %3472 = vmatpush.msra.mxu0 %v3299
    %3473 = vmatpush.msra.mxu0 %v3296
    %3474 = vmatmul.f32.gmra.mxu0 0.0
    %v3475 = vpop.f32.mrf.mxu0
    %v3476 = vadd.f32 %v3414, %v3475
    %3477 = vdwg.mxu0
    %v3478 = vld [vmem:[#allocation3] sm:$0xff]
    %v3479 = vld [vmem:[#allocation3 + $0x8] sm:$0xff]
    %v3480 = vld [vmem:[#allocation3 + $0x10] sm:$0xff]
    %v3481 = vld [vmem:[#allocation4 + $0xa8] sm:$0xff]
    %v3482 = vld [vmem:[#allocation4 + $0xb0] sm:$0xff]
    %v3483 = vld [vmem:[#allocation4 + $0xb8] sm:$0xff]
    %v3484 = vadd.f32 %v3478, %v3369
    %v3485 = vxor.u32 %v3484, 2147483648
    %v3486 = vmul.f32 %v3485, 1.442695
    %v3487 = vpow.pop %v3486
    %v3488 = vadd.f32 %v3487, 1.0
    %v3489 = vrcp.pop %v3488
    %v3490 = vmul.f32 %v3488, %v3489
    %v3491 = vsub.f32 1.0, %v3490
    %v3492 = vmul.f32 %v3489, %v3491
    %v3493 = vadd.f32 %v3489, %v3492
    %vm3494 = vweird.f32 %v3488
    %vm3495 = vweird.f32 %v3489
    %vm3496 = vmor %vm3494, %vm3495
    %v3497 = vsel %vm3496, %v3489, %v3493
    %v3498 = vand.u32 2147483647, %v3488
    %vm3499 = vcmp.eq.f32.partialorder %v3498, 8.507059e+37
    %v3500 = vand.u32 %v3488, 2147483648
    %v3501 = vor.u32 1.1754944e-38, %v3500
    %v3502 = vsel %vm3499, %v3501, %v3497
    %v3503 = vmul.f32 1.0, %v3502
    %v3504 = vadd.f32 %v3479, %v3389
    %v3505 = vxor.u32 %v3504, 2147483648
    %v3506 = vmul.f32 %v3505, 1.442695
    %v3507 = vpow.pop %v3506
    %v3508 = vadd.f32 %v3507, 1.0
    %v3509 = vrcp.pop %v3508
    %v3510 = vmul.f32 %v3508, %v3509
    %v3511 = vsub.f32 1.0, %v3510
    %v3512 = vmul.f32 %v3509, %v3511
    %v3513 = vadd.f32 %v3509, %v3512
    %vm3514 = vweird.f32 %v3508
    %vm3515 = vweird.f32 %v3509
    %vm3516 = vmor %vm3514, %vm3515
    %v3517 = vsel %vm3516, %v3509, %v3513
    %v3518 = vand.u32 2147483647, %v3508
    %vm3519 = vcmp.eq.f32.partialorder %v3518, 8.507059e+37
    %v3520 = vand.u32 %v3508, 2147483648
    %v3521 = vor.u32 1.1754944e-38, %v3520
    %v3522 = vsel %vm3519, %v3521, %v3517
    %v3523 = vmul.f32 1.0, %v3522
    %v3524 = vmul.f32 %v3503, %v3409
    %v3525 = vadd.f32 %v3480, %v3524
    %v3526 = vtanh.pop %v3525
    %v3527 = vsub.f32 1.0, %v3523
    %v3528 = vmul.f32 %v3527, %v3526
    %v3529 = vmul.f32 %v3523, 0.0
    %v3530 = vadd.f32 %v3528, %v3529
    %v3531 = vadd.f32 %v3481, %v3436
    %v3532 = vxor.u32 %v3531, 2147483648
    %v3533 = vmul.f32 %v3532, 1.442695
    %v3534 = vpow.pop %v3533
    %v3535 = vadd.f32 %v3534, 1.0
    %v3536 = vrcp.pop %v3535
    %v3537 = vmul.f32 %v3535, %v3536
    %v3538 = vsub.f32 1.0, %v3537
    %v3539 = vmul.f32 %v3536, %v3538
    %v3540 = vadd.f32 %v3536, %v3539
    %vm3541 = vweird.f32 %v3535
    %vm3542 = vweird.f32 %v3536
    %vm3543 = vmor %vm3541, %vm3542
    %v3544 = vsel %vm3543, %v3536, %v3540
    %v3545 = vand.u32 2147483647, %v3535
    %vm3546 = vcmp.eq.f32.partialorder %v3545, 8.507059e+37
    %v3547 = vand.u32 %v3535, 2147483648
    %v3548 = vor.u32 1.1754944e-38, %v3547
    %v3549 = vsel %vm3546, %v3548, %v3544
    %v3550 = vmul.f32 1.0, %v3549
    %v3551 = vadd.f32 %v3482, %v3456
    %v3552 = vxor.u32 %v3551, 2147483648
    %v3553 = vmul.f32 %v3552, 1.442695
    %v3554 = vpow.pop %v3553
    %v3555 = vadd.f32 %v3554, 1.0
    %v3556 = vrcp.pop %v3555
    %v3557 = vmul.f32 %v3555, %v3556
    %v3558 = vsub.f32 1.0, %v3557
    %v3559 = vmul.f32 %v3556, %v3558
    %v3560 = vadd.f32 %v3556, %v3559
    %vm3561 = vweird.f32 %v3555
    %vm3562 = vweird.f32 %v3556
    %vm3563 = vmor %vm3561, %vm3562
    %v3564 = vsel %vm3563, %v3556, %v3560
    %v3565 = vand.u32 2147483647, %v3555
    %vm3566 = vcmp.eq.f32.partialorder %v3565, 8.507059e+37
    %v3567 = vand.u32 %v3555, 2147483648
    %v3568 = vor.u32 1.1754944e-38, %v3567
    %v3569 = vsel %vm3566, %v3568, %v3564
    %v3570 = vmul.f32 1.0, %v3569
    %v3571 = vmul.f32 %v3550, %v3476
    %v3572 = vadd.f32 %v3483, %v3571
    %v3573 = vtanh.pop %v3572
    %v3574 = vsub.f32 1.0, %v3570
    %v3575 = vmul.f32 %v3574, %v3573
    %v3576 = vmul.f32 %v3570, 0.0
    %v3577 = vadd.f32 %v3575, %v3576
    %3578 = vmatpush.msra.mxu0 %v3291
    %3579 = vmatpush.msra.mxu0 %v3288
    %3580 = vmatpush.msra.mxu0 %v3285
    %3581 = vmatpush.msra.mxu0 %v3282
    %3582 = vmatpush.msra.mxu0 %v3279
    %3583 = vmatpush.msra.mxu0 %v3276
    %3584 = vmatpush.msra.mxu0 %v3273
    %3585 = vmatpush.msra.mxu0 %v3270
    %3586 = vmatpush.msra.mxu0 %v3267
    %3587 = vmatpush.msra.mxu0 %v3264
    %3588 = vmatpush.msra.mxu0 %v3261
    %3589 = vmatpush.msra.mxu0 %v3258
    %3590 = vmatpush.msra.mxu0 %v3255
    %3591 = vmatpush.msra.mxu0 %v3252
    %3592 = vmatpush.msra.mxu0 %v3249
    %3593 = vmatpush.msra.mxu0 %v3246
    %3594 = vmatmul.f32.gmra.mxu0 %v3530
    %v3595 = vpop.f32.mrf.mxu0
    %v3596 = vadd.f32 %v3345, %v3595
    %3597 = vdwg.mxu0
    %3598 = vmatpush.msra.mxu0 %v3292
    %3599 = vmatpush.msra.mxu0 %v3289
    %3600 = vmatpush.msra.mxu0 %v3286
    %3601 = vmatpush.msra.mxu0 %v3283
    %3602 = vmatpush.msra.mxu0 %v3280
    %3603 = vmatpush.msra.mxu0 %v3277
    %3604 = vmatpush.msra.mxu0 %v3274
    %3605 = vmatpush.msra.mxu0 %v3271
    %3606 = vmatpush.msra.mxu0 %v3268
    %3607 = vmatpush.msra.mxu0 %v3265
    %3608 = vmatpush.msra.mxu0 %v3262
    %3609 = vmatpush.msra.mxu0 %v3259
    %3610 = vmatpush.msra.mxu0 %v3256
    %3611 = vmatpush.msra.mxu0 %v3253
    %3612 = vmatpush.msra.mxu0 %v3250
    %3613 = vmatpush.msra.mxu0 %v3247
    %3614 = vmatmul.f32.gmra.mxu0 %v3530
    %v3615 = vpop.f32.mrf.mxu0
    %v3616 = vadd.f32 %v3346, %v3615
    %3617 = vdwg.mxu0
    %3618 = vmatpush.msra.mxu0 %v3293
    %3619 = vmatpush.msra.mxu0 %v3290
    %3620 = vmatpush.msra.mxu0 %v3287
    %3621 = vmatpush.msra.mxu0 %v3284
    %3622 = vmatpush.msra.mxu0 %v3281
    %3623 = vmatpush.msra.mxu0 %v3278
    %3624 = vmatpush.msra.mxu0 %v3275
    %3625 = vmatpush.msra.mxu0 %v3272
    %3626 = vmatpush.msra.mxu0 %v3269
    %3627 = vmatpush.msra.mxu0 %v3266
    %3628 = vmatpush.msra.mxu0 %v3263
    %3629 = vmatpush.msra.mxu0 %v3260
    %3630 = vmatpush.msra.mxu0 %v3257
    %3631 = vmatpush.msra.mxu0 %v3254
    %3632 = vmatpush.msra.mxu0 %v3251
    %3633 = vmatpush.msra.mxu0 %v3248
    %3634 = vmatmul.f32.gmra.mxu0 %v3530
    %v3635 = vpop.f32.mrf.mxu0
    %v3636 = vadd.f32 %v3347, %v3635
    %3637 = vdwg.mxu0
    %v3638 = vld [vmem:[#allocation3 + $0x18] sm:$0xff]
    %v3639 = vld [vmem:[#allocation3 + $0x20] sm:$0xff]
    %v3640 = vld [vmem:[#allocation3 + $0x28] sm:$0xff]
    %v3641 = vadd.f32 %v3638, %v3596
    %v3642 = vxor.u32 %v3641, 2147483648
    %v3643 = vmul.f32 %v3642, 1.442695
    %v3644 = vpow.pop %v3643
    %v3645 = vadd.f32 %v3644, 1.0
    %v3646 = vrcp.pop %v3645
    %v3647 = vmul.f32 %v3645, %v3646
    %v3648 = vsub.f32 1.0, %v3647
    %v3649 = vmul.f32 %v3646, %v3648
    %v3650 = vadd.f32 %v3646, %v3649
    %vm3651 = vweird.f32 %v3645
    %vm3652 = vweird.f32 %v3646
    %vm3653 = vmor %vm3651, %vm3652
    %v3654 = vsel %vm3653, %v3646, %v3650
    %v3655 = vand.u32 2147483647, %v3645
    %vm3656 = vcmp.eq.f32.partialorder %v3655, 8.507059e+37
    %v3657 = vand.u32 %v3645, 2147483648
    %v3658 = vor.u32 1.1754944e-38, %v3657
    %v3659 = vsel %vm3656, %v3658, %v3654
    %v3660 = vmul.f32 1.0, %v3659
    %v3661 = vadd.f32 %v3639, %v3616
    %v3662 = vxor.u32 %v3661, 2147483648
    %v3663 = vmul.f32 %v3662, 1.442695
    %v3664 = vpow.pop %v3663
    %v3665 = vadd.f32 %v3664, 1.0
    %v3666 = vrcp.pop %v3665
    %v3667 = vmul.f32 %v3665, %v3666
    %v3668 = vsub.f32 1.0, %v3667
    %v3669 = vmul.f32 %v3666, %v3668
    %v3670 = vadd.f32 %v3666, %v3669
    %vm3671 = vweird.f32 %v3665
    %vm3672 = vweird.f32 %v3666
    %vm3673 = vmor %vm3671, %vm3672
    %v3674 = vsel %vm3673, %v3666, %v3670
    %v3675 = vand.u32 2147483647, %v3665
    %vm3676 = vcmp.eq.f32.partialorder %v3675, 8.507059e+37
    %v3677 = vand.u32 %v3665, 2147483648
    %v3678 = vor.u32 1.1754944e-38, %v3677
    %v3679 = vsel %vm3676, %v3678, %v3674
    %v3680 = vmul.f32 1.0, %v3679
    %v3681 = vmul.f32 %v3660, %v3636
    %v3682 = vadd.f32 %v3640, %v3681
    %v3683 = vtanh.pop %v3682
    %v3684 = vsub.f32 1.0, %v3680
    %v3685 = vmul.f32 %v3684, %v3683
    %v3686 = vmul.f32 %v3680, %v3530
    %v3687 = vadd.f32 %v3685, %v3686
    %3688 = vmatpush.msra.mxu0 %v3291
    %3689 = vmatpush.msra.mxu0 %v3288
    %3690 = vmatpush.msra.mxu0 %v3285
    %3691 = vmatpush.msra.mxu0 %v3282
    %3692 = vmatpush.msra.mxu0 %v3279
    %3693 = vmatpush.msra.mxu0 %v3276
    %3694 = vmatpush.msra.mxu0 %v3273
    %3695 = vmatpush.msra.mxu0 %v3270
    %3696 = vmatpush.msra.mxu0 %v3267
    %3697 = vmatpush.msra.mxu0 %v3264
    %3698 = vmatpush.msra.mxu0 %v3261
    %3699 = vmatpush.msra.mxu0 %v3258
    %3700 = vmatpush.msra.mxu0 %v3255
    %3701 = vmatpush.msra.mxu0 %v3252
    %3702 = vmatpush.msra.mxu0 %v3249
    %3703 = vmatpush.msra.mxu0 %v3246
    %3704 = vmatmul.f32.gmra.mxu0 %v3687
    %v3705 = vpop.f32.mrf.mxu0
    %v3706 = vadd.f32 %v3345, %v3705
    %3707 = vdwg.mxu0
    %3708 = vmatpush.msra.mxu0 %v3292
    %3709 = vmatpush.msra.mxu0 %v3289
    %3710 = vmatpush.msra.mxu0 %v3286
    %3711 = vmatpush.msra.mxu0 %v3283
    %3712 = vmatpush.msra.mxu0 %v3280
    %3713 = vmatpush.msra.mxu0 %v3277
    %3714 = vmatpush.msra.mxu0 %v3274
    %3715 = vmatpush.msra.mxu0 %v3271
    %3716 = vmatpush.msra.mxu0 %v3268
    %3717 = vmatpush.msra.mxu0 %v3265
    %3718 = vmatpush.msra.mxu0 %v3262
    %3719 = vmatpush.msra.mxu0 %v3259
    %3720 = vmatpush.msra.mxu0 %v3256
    %3721 = vmatpush.msra.mxu0 %v3253
    %3722 = vmatpush.msra.mxu0 %v3250
    %3723 = vmatpush.msra.mxu0 %v3247
    %3724 = vmatmul.f32.gmra.mxu0 %v3687
    %v3725 = vpop.f32.mrf.mxu0
    %v3726 = vadd.f32 %v3346, %v3725
    %3727 = vdwg.mxu0
    %3728 = vmatpush.msra.mxu0 %v3293
    %3729 = vmatpush.msra.mxu0 %v3290
    %3730 = vmatpush.msra.mxu0 %v3287
    %3731 = vmatpush.msra.mxu0 %v3284
    %3732 = vmatpush.msra.mxu0 %v3281
    %3733 = vmatpush.msra.mxu0 %v3278
    %3734 = vmatpush.msra.mxu0 %v3275
    %3735 = vmatpush.msra.mxu0 %v3272
    %3736 = vmatpush.msra.mxu0 %v3269
    %3737 = vmatpush.msra.mxu0 %v3266
    %3738 = vmatpush.msra.mxu0 %v3263
    %3739 = vmatpush.msra.mxu0 %v3260
    %3740 = vmatpush.msra.mxu0 %v3257
    %3741 = vmatpush.msra.mxu0 %v3254
    %3742 = vmatpush.msra.mxu0 %v3251
    %3743 = vmatpush.msra.mxu0 %v3248
    %3744 = vmatmul.f32.gmra.mxu0 %v3687
    %v3745 = vpop.f32.mrf.mxu0
    %v3746 = vadd.f32 %v3347, %v3745
    %3747 = vdwg.mxu0
    %v3748 = vld [vmem:[#allocation3 + $0x30] sm:$0xff]
    %v3749 = vld [vmem:[#allocation3 + $0x38] sm:$0xff]
    %v3750 = vld [vmem:[#allocation3 + $0x40] sm:$0xff]
    %v3751 = vadd.f32 %v3748, %v3706
    %v3752 = vxor.u32 %v3751, 2147483648
    %v3753 = vmul.f32 %v3752, 1.442695
    %v3754 = vpow.pop %v3753
    %v3755 = vadd.f32 %v3754, 1.0
    %v3756 = vrcp.pop %v3755
    %v3757 = vmul.f32 %v3755, %v3756
    %v3758 = vsub.f32 1.0, %v3757
    %v3759 = vmul.f32 %v3756, %v3758
    %v3760 = vadd.f32 %v3756, %v3759
    %vm3761 = vweird.f32 %v3755
    %vm3762 = vweird.f32 %v3756
    %vm3763 = vmor %vm3761, %vm3762
    %v3764 = vsel %vm3763, %v3756, %v3760
    %v3765 = vand.u32 2147483647, %v3755
    %vm3766 = vcmp.eq.f32.partialorder %v3765, 8.507059e+37
    %v3767 = vand.u32 %v3755, 2147483648
    %v3768 = vor.u32 1.1754944e-38, %v3767
    %v3769 = vsel %vm3766, %v3768, %v3764
    %v3770 = vmul.f32 1.0, %v3769
    %v3771 = vadd.f32 %v3749, %v3726
    %v3772 = vxor.u32 %v3771, 2147483648
    %v3773 = vmul.f32 %v3772, 1.442695
    %v3774 = vpow.pop %v3773
    %v3775 = vadd.f32 %v3774, 1.0
    %v3776 = vrcp.pop %v3775
    %v3777 = vmul.f32 %v3775, %v3776
    %v3778 = vsub.f32 1.0, %v3777
    %v3779 = vmul.f32 %v3776, %v3778
    %v3780 = vadd.f32 %v3776, %v3779
    %vm3781 = vweird.f32 %v3775
    %vm3782 = vweird.f32 %v3776
    %vm3783 = vmor %vm3781, %vm3782
    %v3784 = vsel %vm3783, %v3776, %v3780
    %v3785 = vand.u32 2147483647, %v3775
    %vm3786 = vcmp.eq.f32.partialorder %v3785, 8.507059e+37
    %v3787 = vand.u32 %v3775, 2147483648
    %v3788 = vor.u32 1.1754944e-38, %v3787
    %v3789 = vsel %vm3786, %v3788, %v3784
    %v3790 = vmul.f32 1.0, %v3789
    %v3791 = vmul.f32 %v3770, %v3746
    %v3792 = vadd.f32 %v3750, %v3791
    %v3793 = vtanh.pop %v3792
    %v3794 = vsub.f32 1.0, %v3790
    %v3795 = vmul.f32 %v3794, %v3793
    %v3796 = vmul.f32 %v3790, %v3687
    %v3797 = vadd.f32 %v3795, %v3796
    %3798 = vmatpush.msra.mxu0 %v3291
    %3799 = vmatpush.msra.mxu0 %v3288
    %3800 = vmatpush.msra.mxu0 %v3285
    %3801 = vmatpush.msra.mxu0 %v3282
    %3802 = vmatpush.msra.mxu0 %v3279
    %3803 = vmatpush.msra.mxu0 %v3276
    %3804 = vmatpush.msra.mxu0 %v3273
    %3805 = vmatpush.msra.mxu0 %v3270
    %3806 = vmatpush.msra.mxu0 %v3267
    %3807 = vmatpush.msra.mxu0 %v3264
    %3808 = vmatpush.msra.mxu0 %v3261
    %3809 = vmatpush.msra.mxu0 %v3258
    %3810 = vmatpush.msra.mxu0 %v3255
    %3811 = vmatpush.msra.mxu0 %v3252
    %3812 = vmatpush.msra.mxu0 %v3249
    %3813 = vmatpush.msra.mxu0 %v3246
    %3814 = vmatmul.f32.gmra.mxu0 %v3797
    %v3815 = vpop.f32.mrf.mxu0
    %v3816 = vadd.f32 %v3345, %v3815
    %3817 = vdwg.mxu0
    %3818 = vmatpush.msra.mxu0 %v3292
    %3819 = vmatpush.msra.mxu0 %v3289
    %3820 = vmatpush.msra.mxu0 %v3286
    %3821 = vmatpush.msra.mxu0 %v3283
    %3822 = vmatpush.msra.mxu0 %v3280
    %3823 = vmatpush.msra.mxu0 %v3277
    %3824 = vmatpush.msra.mxu0 %v3274
    %3825 = vmatpush.msra.mxu0 %v3271
    %3826 = vmatpush.msra.mxu0 %v3268
    %3827 = vmatpush.msra.mxu0 %v3265
    %3828 = vmatpush.msra.mxu0 %v3262
    %3829 = vmatpush.msra.mxu0 %v3259
    %3830 = vmatpush.msra.mxu0 %v3256
    %3831 = vmatpush.msra.mxu0 %v3253
    %3832 = vmatpush.msra.mxu0 %v3250
    %3833 = vmatpush.msra.mxu0 %v3247
    %3834 = vmatmul.f32.gmra.mxu0 %v3797
    %v3835 = vpop.f32.mrf.mxu0
    %v3836 = vadd.f32 %v3346, %v3835
    %3837 = vdwg.mxu0
    %3838 = vmatpush.msra.mxu0 %v3293
    %3839 = vmatpush.msra.mxu0 %v3290
    %3840 = vmatpush.msra.mxu0 %v3287
    %3841 = vmatpush.msra.mxu0 %v3284
    %3842 = vmatpush.msra.mxu0 %v3281
    %3843 = vmatpush.msra.mxu0 %v3278
    %3844 = vmatpush.msra.mxu0 %v3275
    %3845 = vmatpush.msra.mxu0 %v3272
    %3846 = vmatpush.msra.mxu0 %v3269
    %3847 = vmatpush.msra.mxu0 %v3266
    %3848 = vmatpush.msra.mxu0 %v3263
    %3849 = vmatpush.msra.mxu0 %v3260
    %3850 = vmatpush.msra.mxu0 %v3257
    %3851 = vmatpush.msra.mxu0 %v3254
    %3852 = vmatpush.msra.mxu0 %v3251
    %3853 = vmatpush.msra.mxu0 %v3248
    %3854 = vmatmul.f32.gmra.mxu0 %v3797
    %v3855 = vpop.f32.mrf.mxu0
    %v3856 = vadd.f32 %v3347, %v3855
    %3857 = vdwg.mxu0
    %v3858 = vld [vmem:[#allocation3 + $0x48] sm:$0xff]
    %v3859 = vld [vmem:[#allocation3 + $0x50] sm:$0xff]
    %v3860 = vld [vmem:[#allocation3 + $0x58] sm:$0xff]
    %v3861 = vadd.f32 %v3858, %v3816
    %v3862 = vxor.u32 %v3861, 2147483648
    %v3863 = vmul.f32 %v3862, 1.442695
    %v3864 = vpow.pop %v3863
    %v3865 = vadd.f32 %v3864, 1.0
    %v3866 = vrcp.pop %v3865
    %v3867 = vmul.f32 %v3865, %v3866
    %v3868 = vsub.f32 1.0, %v3867
    %v3869 = vmul.f32 %v3866, %v3868
    %v3870 = vadd.f32 %v3866, %v3869
    %vm3871 = vweird.f32 %v3865
    %vm3872 = vweird.f32 %v3866
    %vm3873 = vmor %vm3871, %vm3872
    %v3874 = vsel %vm3873, %v3866, %v3870
    %v3875 = vand.u32 2147483647, %v3865
    %vm3876 = vcmp.eq.f32.partialorder %v3875, 8.507059e+37
    %v3877 = vand.u32 %v3865, 2147483648
    %v3878 = vor.u32 1.1754944e-38, %v3877
    %v3879 = vsel %vm3876, %v3878, %v3874
    %v3880 = vmul.f32 1.0, %v3879
    %v3881 = vadd.f32 %v3859, %v3836
    %v3882 = vxor.u32 %v3881, 2147483648
    %v3883 = vmul.f32 %v3882, 1.442695
    %v3884 = vpow.pop %v3883
    %v3885 = vadd.f32 %v3884, 1.0
    %v3886 = vrcp.pop %v3885
    %v3887 = vmul.f32 %v3885, %v3886
    %v3888 = vsub.f32 1.0, %v3887
    %v3889 = vmul.f32 %v3886, %v3888
    %v3890 = vadd.f32 %v3886, %v3889
    %vm3891 = vweird.f32 %v3885
    %vm3892 = vweird.f32 %v3886
    %vm3893 = vmor %vm3891, %vm3892
    %v3894 = vsel %vm3893, %v3886, %v3890
    %v3895 = vand.u32 2147483647, %v3885
    %vm3896 = vcmp.eq.f32.partialorder %v3895, 8.507059e+37
    %v3897 = vand.u32 %v3885, 2147483648
    %v3898 = vor.u32 1.1754944e-38, %v3897
    %v3899 = vsel %vm3896, %v3898, %v3894
    %v3900 = vmul.f32 1.0, %v3899
    %v3901 = vmul.f32 %v3880, %v3856
    %v3902 = vadd.f32 %v3860, %v3901
    %v3903 = vtanh.pop %v3902
    %v3904 = vsub.f32 1.0, %v3900
    %v3905 = vmul.f32 %v3904, %v3903
    %v3906 = vmul.f32 %v3900, %v3797
    %v3907 = vadd.f32 %v3905, %v3906
    %3908 = vmatpush.msra.mxu0 %v3291
    %3909 = vmatpush.msra.mxu0 %v3288
    %3910 = vmatpush.msra.mxu0 %v3285
    %3911 = vmatpush.msra.mxu0 %v3282
    %3912 = vmatpush.msra.mxu0 %v3279
    %3913 = vmatpush.msra.mxu0 %v3276
    %3914 = vmatpush.msra.mxu0 %v3273
    %3915 = vmatpush.msra.mxu0 %v3270
    %3916 = vmatpush.msra.mxu0 %v3267
    %3917 = vmatpush.msra.mxu0 %v3264
    %3918 = vmatpush.msra.mxu0 %v3261
    %3919 = vmatpush.msra.mxu0 %v3258
    %3920 = vmatpush.msra.mxu0 %v3255
    %3921 = vmatpush.msra.mxu0 %v3252
    %3922 = vmatpush.msra.mxu0 %v3249
    %3923 = vmatpush.msra.mxu0 %v3246
    %3924 = vmatmul.f32.gmra.mxu0 %v3907
    %v3925 = vpop.f32.mrf.mxu0
    %v3926 = vadd.f32 %v3345, %v3925
    %3927 = vdwg.mxu0
    %3928 = vmatpush.msra.mxu0 %v3292
    %3929 = vmatpush.msra.mxu0 %v3289
    %3930 = vmatpush.msra.mxu0 %v3286
    %3931 = vmatpush.msra.mxu0 %v3283
    %3932 = vmatpush.msra.mxu0 %v3280
    %3933 = vmatpush.msra.mxu0 %v3277
    %3934 = vmatpush.msra.mxu0 %v3274
    %3935 = vmatpush.msra.mxu0 %v3271
    %3936 = vmatpush.msra.mxu0 %v3268
    %3937 = vmatpush.msra.mxu0 %v3265
    %3938 = vmatpush.msra.mxu0 %v3262
    %3939 = vmatpush.msra.mxu0 %v3259
    %3940 = vmatpush.msra.mxu0 %v3256
    %3941 = vmatpush.msra.mxu0 %v3253
    %3942 = vmatpush.msra.mxu0 %v3250
    %3943 = vmatpush.msra.mxu0 %v3247
    %3944 = vmatmul.f32.gmra.mxu0 %v3907
    %v3945 = vpop.f32.mrf.mxu0
    %v3946 = vadd.f32 %v3346, %v3945
    %3947 = vdwg.mxu0
    %3948 = vmatpush.msra.mxu0 %v3293
    %3949 = vmatpush.msra.mxu0 %v3290
    %3950 = vmatpush.msra.mxu0 %v3287
    %3951 = vmatpush.msra.mxu0 %v3284
    %3952 = vmatpush.msra.mxu0 %v3281
    %3953 = vmatpush.msra.mxu0 %v3278
    %3954 = vmatpush.msra.mxu0 %v3275
    %3955 = vmatpush.msra.mxu0 %v3272
    %3956 = vmatpush.msra.mxu0 %v3269
    %3957 = vmatpush.msra.mxu0 %v3266
    %3958 = vmatpush.msra.mxu0 %v3263
    %3959 = vmatpush.msra.mxu0 %v3260
    %3960 = vmatpush.msra.mxu0 %v3257
    %3961 = vmatpush.msra.mxu0 %v3254
    %3962 = vmatpush.msra.mxu0 %v3251
    %3963 = vmatpush.msra.mxu0 %v3248
    %3964 = vmatmul.f32.gmra.mxu0 %v3907
    %v3965 = vpop.f32.mrf.mxu0
    %v3966 = vadd.f32 %v3347, %v3965
    %3967 = vdwg.mxu0
    %v3968 = vld [vmem:[#allocation3 + $0x60] sm:$0xff]
    %v3969 = vld [vmem:[#allocation3 + $0x68] sm:$0xff]
    %v3970 = vld [vmem:[#allocation3 + $0x70] sm:$0xff]
    %v3971 = vadd.f32 %v3968, %v3926
    %v3972 = vxor.u32 %v3971, 2147483648
    %v3973 = vmul.f32 %v3972, 1.442695
    %v3974 = vpow.pop %v3973
    %v3975 = vadd.f32 %v3974, 1.0
    %v3976 = vrcp.pop %v3975
    %v3977 = vmul.f32 %v3975, %v3976
    %v3978 = vsub.f32 1.0, %v3977
    %v3979 = vmul.f32 %v3976, %v3978
    %v3980 = vadd.f32 %v3976, %v3979
    %vm3981 = vweird.f32 %v3975
    %vm3982 = vweird.f32 %v3976
    %vm3983 = vmor %vm3981, %vm3982
    %v3984 = vsel %vm3983, %v3976, %v3980
    %v3985 = vand.u32 2147483647, %v3975
    %vm3986 = vcmp.eq.f32.partialorder %v3985, 8.507059e+37
    %v3987 = vand.u32 %v3975, 2147483648
    %v3988 = vor.u32 1.1754944e-38, %v3987
    %v3989 = vsel %vm3986, %v3988, %v3984
    %v3990 = vmul.f32 1.0, %v3989
    %v3991 = vadd.f32 %v3969, %v3946
    %v3992 = vxor.u32 %v3991, 2147483648
    %v3993 = vmul.f32 %v3992, 1.442695
    %v3994 = vpow.pop %v3993
    %v3995 = vadd.f32 %v3994, 1.0
    %v3996 = vrcp.pop %v3995
    %v3997 = vmul.f32 %v3995, %v3996
    %v3998 = vsub.f32 1.0, %v3997
    %v3999 = vmul.f32 %v3996, %v3998
    %v4000 = vadd.f32 %v3996, %v3999
    %vm4001 = vweird.f32 %v3995
    %vm4002 = vweird.f32 %v3996
    %vm4003 = vmor %vm4001, %vm4002
    %v4004 = vsel %vm4003, %v3996, %v4000
    %v4005 = vand.u32 2147483647, %v3995
    %vm4006 = vcmp.eq.f32.partialorder %v4005, 8.507059e+37
    %v4007 = vand.u32 %v3995, 2147483648
    %v4008 = vor.u32 1.1754944e-38, %v4007
    %v4009 = vsel %vm4006, %v4008, %v4004
    %v4010 = vmul.f32 1.0, %v4009
    %v4011 = vmul.f32 %v3990, %v3966
    %v4012 = vadd.f32 %v3970, %v4011
    %v4013 = vtanh.pop %v4012
    %v4014 = vsub.f32 1.0, %v4010
    %v4015 = vmul.f32 %v4014, %v4013
    %v4016 = vmul.f32 %v4010, %v3907
    %v4017 = vadd.f32 %v4015, %v4016
    %4018 = vmatpush.msra.mxu0 %v3291
    %4019 = vmatpush.msra.mxu0 %v3288
    %4020 = vmatpush.msra.mxu0 %v3285
    %4021 = vmatpush.msra.mxu0 %v3282
    %4022 = vmatpush.msra.mxu0 %v3279
    %4023 = vmatpush.msra.mxu0 %v3276
    %4024 = vmatpush.msra.mxu0 %v3273
    %4025 = vmatpush.msra.mxu0 %v3270
    %4026 = vmatpush.msra.mxu0 %v3267
    %4027 = vmatpush.msra.mxu0 %v3264
    %4028 = vmatpush.msra.mxu0 %v3261
    %4029 = vmatpush.msra.mxu0 %v3258
    %4030 = vmatpush.msra.mxu0 %v3255
    %4031 = vmatpush.msra.mxu0 %v3252
    %4032 = vmatpush.msra.mxu0 %v3249
    %4033 = vmatpush.msra.mxu0 %v3246
    %4034 = vmatmul.f32.gmra.mxu0 %v4017
    %v4035 = vpop.f32.mrf.mxu0
    %v4036 = vadd.f32 %v3345, %v4035
    %4037 = vdwg.mxu0
    %4038 = vmatpush.msra.mxu0 %v3292
    %4039 = vmatpush.msra.mxu0 %v3289
    %4040 = vmatpush.msra.mxu0 %v3286
    %4041 = vmatpush.msra.mxu0 %v3283
    %4042 = vmatpush.msra.mxu0 %v3280
    %4043 = vmatpush.msra.mxu0 %v3277
    %4044 = vmatpush.msra.mxu0 %v3274
    %4045 = vmatpush.msra.mxu0 %v3271
    %4046 = vmatpush.msra.mxu0 %v3268
    %4047 = vmatpush.msra.mxu0 %v3265
    %4048 = vmatpush.msra.mxu0 %v3262
    %4049 = vmatpush.msra.mxu0 %v3259
    %4050 = vmatpush.msra.mxu0 %v3256
    %4051 = vmatpush.msra.mxu0 %v3253
    %4052 = vmatpush.msra.mxu0 %v3250
    %4053 = vmatpush.msra.mxu0 %v3247
    %4054 = vmatmul.f32.gmra.mxu0 %v4017
    %v4055 = vpop.f32.mrf.mxu0
    %v4056 = vadd.f32 %v3346, %v4055
    %4057 = vdwg.mxu0
    %4058 = vmatpush.msra.mxu0 %v3293
    %4059 = vmatpush.msra.mxu0 %v3290
    %4060 = vmatpush.msra.mxu0 %v3287
    %4061 = vmatpush.msra.mxu0 %v3284
    %4062 = vmatpush.msra.mxu0 %v3281
    %4063 = vmatpush.msra.mxu0 %v3278
    %4064 = vmatpush.msra.mxu0 %v3275
    %4065 = vmatpush.msra.mxu0 %v3272
    %4066 = vmatpush.msra.mxu0 %v3269
    %4067 = vmatpush.msra.mxu0 %v3266
    %4068 = vmatpush.msra.mxu0 %v3263
    %4069 = vmatpush.msra.mxu0 %v3260
    %4070 = vmatpush.msra.mxu0 %v3257
    %4071 = vmatpush.msra.mxu0 %v3254
    %4072 = vmatpush.msra.mxu0 %v3251
    %4073 = vmatpush.msra.mxu0 %v3248
    %4074 = vmatmul.f32.gmra.mxu0 %v4017
    %v4075 = vpop.f32.mrf.mxu0
    %v4076 = vadd.f32 %v3347, %v4075
    %4077 = vdwg.mxu0
    %v4078 = vld [vmem:[#allocation3 + $0x78] sm:$0xff]
    %v4079 = vld [vmem:[#allocation3 + $0x80] sm:$0xff]
    %v4080 = vld [vmem:[#allocation3 + $0x88] sm:$0xff]
    %v4081 = vadd.f32 %v4078, %v4036
    %v4082 = vxor.u32 %v4081, 2147483648
    %v4083 = vmul.f32 %v4082, 1.442695
    %v4084 = vpow.pop %v4083
    %v4085 = vadd.f32 %v4084, 1.0
    %v4086 = vrcp.pop %v4085
    %v4087 = vmul.f32 %v4085, %v4086
    %v4088 = vsub.f32 1.0, %v4087
    %v4089 = vmul.f32 %v4086, %v4088
    %v4090 = vadd.f32 %v4086, %v4089
    %vm4091 = vweird.f32 %v4085
    %vm4092 = vweird.f32 %v4086
    %vm4093 = vmor %vm4091, %vm4092
    %v4094 = vsel %vm4093, %v4086, %v4090
    %v4095 = vand.u32 2147483647, %v4085
    %vm4096 = vcmp.eq.f32.partialorder %v4095, 8.507059e+37
    %v4097 = vand.u32 %v4085, 2147483648
    %v4098 = vor.u32 1.1754944e-38, %v4097
    %v4099 = vsel %vm4096, %v4098, %v4094
    %v4100 = vmul.f32 1.0, %v4099
    %v4101 = vadd.f32 %v4079, %v4056
    %v4102 = vxor.u32 %v4101, 2147483648
    %v4103 = vmul.f32 %v4102, 1.442695
    %v4104 = vpow.pop %v4103
    %v4105 = vadd.f32 %v4104, 1.0
    %v4106 = vrcp.pop %v4105
    %v4107 = vmul.f32 %v4105, %v4106
    %v4108 = vsub.f32 1.0, %v4107
    %v4109 = vmul.f32 %v4106, %v4108
    %v4110 = vadd.f32 %v4106, %v4109
    %vm4111 = vweird.f32 %v4105
    %vm4112 = vweird.f32 %v4106
    %vm4113 = vmor %vm4111, %vm4112
    %v4114 = vsel %vm4113, %v4106, %v4110
    %v4115 = vand.u32 2147483647, %v4105
    %vm4116 = vcmp.eq.f32.partialorder %v4115, 8.507059e+37
    %v4117 = vand.u32 %v4105, 2147483648
    %v4118 = vor.u32 1.1754944e-38, %v4117
    %v4119 = vsel %vm4116, %v4118, %v4114
    %v4120 = vmul.f32 1.0, %v4119
    %v4121 = vmul.f32 %v4100, %v4076
    %v4122 = vadd.f32 %v4080, %v4121
    %v4123 = vtanh.pop %v4122
    %v4124 = vsub.f32 1.0, %v4120
    %v4125 = vmul.f32 %v4124, %v4123
    %v4126 = vmul.f32 %v4120, %v4017
    %v4127 = vadd.f32 %v4125, %v4126
    %4128 = vmatpush.msra.mxu0 %v3291
    %4129 = vmatpush.msra.mxu0 %v3288
    %4130 = vmatpush.msra.mxu0 %v3285
    %4131 = vmatpush.msra.mxu0 %v3282
    %4132 = vmatpush.msra.mxu0 %v3279
    %4133 = vmatpush.msra.mxu0 %v3276
    %4134 = vmatpush.msra.mxu0 %v3273
    %4135 = vmatpush.msra.mxu0 %v3270
    %4136 = vmatpush.msra.mxu0 %v3267
    %4137 = vmatpush.msra.mxu0 %v3264
    %4138 = vmatpush.msra.mxu0 %v3261
    %4139 = vmatpush.msra.mxu0 %v3258
    %4140 = vmatpush.msra.mxu0 %v3255
    %4141 = vmatpush.msra.mxu0 %v3252
    %4142 = vmatpush.msra.mxu0 %v3249
    %4143 = vmatpush.msra.mxu0 %v3246
    %4144 = vmatmul.f32.gmra.mxu0 %v4127
    %v4145 = vpop.f32.mrf.mxu0
    %v4146 = vadd.f32 %v3345, %v4145
    %4147 = vdwg.mxu0
    %4148 = vmatpush.msra.mxu0 %v3292
    %4149 = vmatpush.msra.mxu0 %v3289
    %4150 = vmatpush.msra.mxu0 %v3286
    %4151 = vmatpush.msra.mxu0 %v3283
    %4152 = vmatpush.msra.mxu0 %v3280
    %4153 = vmatpush.msra.mxu0 %v3277
    %4154 = vmatpush.msra.mxu0 %v3274
    %4155 = vmatpush.msra.mxu0 %v3271
    %4156 = vmatpush.msra.mxu0 %v3268
    %4157 = vmatpush.msra.mxu0 %v3265
    %4158 = vmatpush.msra.mxu0 %v3262
    %4159 = vmatpush.msra.mxu0 %v3259
    %4160 = vmatpush.msra.mxu0 %v3256
    %4161 = vmatpush.msra.mxu0 %v3253
    %4162 = vmatpush.msra.mxu0 %v3250
    %4163 = vmatpush.msra.mxu0 %v3247
    %4164 = vmatmul.f32.gmra.mxu0 %v4127
    %v4165 = vpop.f32.mrf.mxu0
    %v4166 = vadd.f32 %v3346, %v4165
    %4167 = vdwg.mxu0
    %4168 = vmatpush.msra.mxu0 %v3293
    %4169 = vmatpush.msra.mxu0 %v3290
    %4170 = vmatpush.msra.mxu0 %v3287
    %4171 = vmatpush.msra.mxu0 %v3284
    %4172 = vmatpush.msra.mxu0 %v3281
    %4173 = vmatpush.msra.mxu0 %v3278
    %4174 = vmatpush.msra.mxu0 %v3275
    %4175 = vmatpush.msra.mxu0 %v3272
    %4176 = vmatpush.msra.mxu0 %v3269
    %4177 = vmatpush.msra.mxu0 %v3266
    %4178 = vmatpush.msra.mxu0 %v3263
    %4179 = vmatpush.msra.mxu0 %v3260
    %4180 = vmatpush.msra.mxu0 %v3257
    %4181 = vmatpush.msra.mxu0 %v3254
    %4182 = vmatpush.msra.mxu0 %v3251
    %4183 = vmatpush.msra.mxu0 %v3248
    %4184 = vmatmul.f32.gmra.mxu0 %v4127
    %v4185 = vpop.f32.mrf.mxu0
    %v4186 = vadd.f32 %v3347, %v4185
    %4187 = vdwg.mxu0
    %v4188 = vld [vmem:[#allocation3 + $0x90] sm:$0xff]
    %v4189 = vld [vmem:[#allocation3 + $0x98] sm:$0xff]
    %v4190 = vld [vmem:[#allocation3 + $0xa0] sm:$0xff]
    %v4191 = vadd.f32 %v4188, %v4146
    %v4192 = vxor.u32 %v4191, 2147483648
    %v4193 = vmul.f32 %v4192, 1.442695
    %v4194 = vpow.pop %v4193
    %v4195 = vadd.f32 %v4194, 1.0
    %v4196 = vrcp.pop %v4195
    %v4197 = vmul.f32 %v4195, %v4196
    %v4198 = vsub.f32 1.0, %v4197
    %v4199 = vmul.f32 %v4196, %v4198
    %v4200 = vadd.f32 %v4196, %v4199
    %vm4201 = vweird.f32 %v4195
    %vm4202 = vweird.f32 %v4196
    %vm4203 = vmor %vm4201, %vm4202
    %v4204 = vsel %vm4203, %v4196, %v4200
    %v4205 = vand.u32 2147483647, %v4195
    %vm4206 = vcmp.eq.f32.partialorder %v4205, 8.507059e+37
    %v4207 = vand.u32 %v4195, 2147483648
    %v4208 = vor.u32 1.1754944e-38, %v4207
    %v4209 = vsel %vm4206, %v4208, %v4204
    %v4210 = vmul.f32 1.0, %v4209
    %v4211 = vadd.f32 %v4189, %v4166
    %v4212 = vxor.u32 %v4211, 2147483648
    %v4213 = vmul.f32 %v4212, 1.442695
    %v4214 = vpow.pop %v4213
    %v4215 = vadd.f32 %v4214, 1.0
    %v4216 = vrcp.pop %v4215
    %v4217 = vmul.f32 %v4215, %v4216
    %v4218 = vsub.f32 1.0, %v4217
    %v4219 = vmul.f32 %v4216, %v4218
    %v4220 = vadd.f32 %v4216, %v4219
    %vm4221 = vweird.f32 %v4215
    %vm4222 = vweird.f32 %v4216
    %vm4223 = vmor %vm4221, %vm4222
    %v4224 = vsel %vm4223, %v4216, %v4220
    %v4225 = vand.u32 2147483647, %v4215
    %vm4226 = vcmp.eq.f32.partialorder %v4225, 8.507059e+37
    %v4227 = vand.u32 %v4215, 2147483648
    %v4228 = vor.u32 1.1754944e-38, %v4227
    %v4229 = vsel %vm4226, %v4228, %v4224
    %v4230 = vmul.f32 1.0, %v4229
    %v4231 = vmul.f32 %v4210, %v4186
    %v4232 = vadd.f32 %v4190, %v4231
    %v4233 = vtanh.pop %v4232
    %v4234 = vsub.f32 1.0, %v4230
    %v4235 = vmul.f32 %v4234, %v4233
    %v4236 = vmul.f32 %v4230, %v4127
    %v4237 = vadd.f32 %v4235, %v4236
    %4238 = vmatpush.msra.mxu0 %v3291
    %4239 = vmatpush.msra.mxu0 %v3288
    %4240 = vmatpush.msra.mxu0 %v3285
    %4241 = vmatpush.msra.mxu0 %v3282
    %4242 = vmatpush.msra.mxu0 %v3279
    %4243 = vmatpush.msra.mxu0 %v3276
    %4244 = vmatpush.msra.mxu0 %v3273
    %4245 = vmatpush.msra.mxu0 %v3270
    %4246 = vmatpush.msra.mxu0 %v3267
    %4247 = vmatpush.msra.mxu0 %v3264
    %4248 = vmatpush.msra.mxu0 %v3261
    %4249 = vmatpush.msra.mxu0 %v3258
    %4250 = vmatpush.msra.mxu0 %v3255
    %4251 = vmatpush.msra.mxu0 %v3252
    %4252 = vmatpush.msra.mxu0 %v3249
    %4253 = vmatpush.msra.mxu0 %v3246
    %4254 = vmatmul.f32.gmra.mxu0 %v4237
    %v4255 = vpop.f32.mrf.mxu0
    %v4256 = vadd.f32 %v3345, %v4255
    %4257 = vdwg.mxu0
    %4258 = vmatpush.msra.mxu0 %v3292
    %4259 = vmatpush.msra.mxu0 %v3289
    %4260 = vmatpush.msra.mxu0 %v3286
    %4261 = vmatpush.msra.mxu0 %v3283
    %4262 = vmatpush.msra.mxu0 %v3280
    %4263 = vmatpush.msra.mxu0 %v3277
    %4264 = vmatpush.msra.mxu0 %v3274
    %4265 = vmatpush.msra.mxu0 %v3271
    %4266 = vmatpush.msra.mxu0 %v3268
    %4267 = vmatpush.msra.mxu0 %v3265
    %4268 = vmatpush.msra.mxu0 %v3262
    %4269 = vmatpush.msra.mxu0 %v3259
    %4270 = vmatpush.msra.mxu0 %v3256
    %4271 = vmatpush.msra.mxu0 %v3253
    %4272 = vmatpush.msra.mxu0 %v3250
    %4273 = vmatpush.msra.mxu0 %v3247
    %4274 = vmatmul.f32.gmra.mxu0 %v4237
    %v4275 = vpop.f32.mrf.mxu0
    %v4276 = vadd.f32 %v3346, %v4275
    %4277 = vdwg.mxu0
    %4278 = vmatpush.msra.mxu0 %v3293
    %4279 = vmatpush.msra.mxu0 %v3290
    %4280 = vmatpush.msra.mxu0 %v3287
    %4281 = vmatpush.msra.mxu0 %v3284
    %4282 = vmatpush.msra.mxu0 %v3281
    %4283 = vmatpush.msra.mxu0 %v3278
    %4284 = vmatpush.msra.mxu0 %v3275
    %4285 = vmatpush.msra.mxu0 %v3272
    %4286 = vmatpush.msra.mxu0 %v3269
    %4287 = vmatpush.msra.mxu0 %v3266
    %4288 = vmatpush.msra.mxu0 %v3263
    %4289 = vmatpush.msra.mxu0 %v3260
    %4290 = vmatpush.msra.mxu0 %v3257
    %4291 = vmatpush.msra.mxu0 %v3254
    %4292 = vmatpush.msra.mxu0 %v3251
    %4293 = vmatpush.msra.mxu0 %v3248
    %4294 = vmatmul.f32.gmra.mxu0 %v4237
    %v4295 = vpop.f32.mrf.mxu0
    %v4296 = vadd.f32 %v3347, %v4295
    %4297 = vdwg.mxu0
    %v4298 = vld [vmem:[#allocation3 + $0xa8] sm:$0xff]
    %v4299 = vld [vmem:[#allocation3 + $0xb0] sm:$0xff]
    %v4300 = vld [vmem:[#allocation3 + $0xb8] sm:$0xff]
    %v4301 = vadd.f32 %v4298, %v4256
    %v4302 = vxor.u32 %v4301, 2147483648
    %v4303 = vmul.f32 %v4302, 1.442695
    %v4304 = vpow.pop %v4303
    %v4305 = vadd.f32 %v4304, 1.0
    %v4306 = vrcp.pop %v4305
    %v4307 = vmul.f32 %v4305, %v4306
    %v4308 = vsub.f32 1.0, %v4307
    %v4309 = vmul.f32 %v4306, %v4308
    %v4310 = vadd.f32 %v4306, %v4309
    %vm4311 = vweird.f32 %v4305
    %vm4312 = vweird.f32 %v4306
    %vm4313 = vmor %vm4311, %vm4312
    %v4314 = vsel %vm4313, %v4306, %v4310
    %v4315 = vand.u32 2147483647, %v4305
    %vm4316 = vcmp.eq.f32.partialorder %v4315, 8.507059e+37
    %v4317 = vand.u32 %v4305, 2147483648
    %v4318 = vor.u32 1.1754944e-38, %v4317
    %v4319 = vsel %vm4316, %v4318, %v4314
    %v4320 = vmul.f32 1.0, %v4319
    %v4321 = vadd.f32 %v4299, %v4276
    %v4322 = vxor.u32 %v4321, 2147483648
    %v4323 = vmul.f32 %v4322, 1.442695
    %v4324 = vpow.pop %v4323
    %v4325 = vadd.f32 %v4324, 1.0
    %v4326 = vrcp.pop %v4325
    %v4327 = vmul.f32 %v4325, %v4326
    %v4328 = vsub.f32 1.0, %v4327
    %v4329 = vmul.f32 %v4326, %v4328
    %v4330 = vadd.f32 %v4326, %v4329
    %vm4331 = vweird.f32 %v4325
    %vm4332 = vweird.f32 %v4326
    %vm4333 = vmor %vm4331, %vm4332
    %v4334 = vsel %vm4333, %v4326, %v4330
    %v4335 = vand.u32 2147483647, %v4325
    %vm4336 = vcmp.eq.f32.partialorder %v4335, 8.507059e+37
    %v4337 = vand.u32 %v4325, 2147483648
    %v4338 = vor.u32 1.1754944e-38, %v4337
    %v4339 = vsel %vm4336, %v4338, %v4334
    %v4340 = vmul.f32 1.0, %v4339
    %v4341 = vmul.f32 %v4320, %v4296
    %v4342 = vadd.f32 %v4300, %v4341
    %v4343 = vtanh.pop %v4342
    %v4344 = vsub.f32 1.0, %v4340
    %v4345 = vmul.f32 %v4344, %v4343
    %v4346 = vmul.f32 %v4340, %v4237
    %v4347 = vadd.f32 %v4345, %v4346
    %v4348 = vld [vmem:[#allocation18] sm:$0xff]
    %v4349 = vld [vmem:[#allocation18 + $0x8] sm:$0xff]
    %v4350 = vld [vmem:[#allocation18 + $0x10] sm:$0xff]
    %v4351 = vld [vmem:[#allocation18 + $0x18] sm:$0xff]
    %v4352 = vld [vmem:[#allocation18 + $0x20] sm:$0xff]
    %v4353 = vld [vmem:[#allocation18 + $0x28] sm:$0xff]
    %v4354 = vld [vmem:[#allocation18 + $0x30] sm:$0xff]
    %v4355 = vld [vmem:[#allocation18 + $0x38] sm:$0xff]
    %v4356 = vld [vmem:[#allocation18 + $0x40] sm:$0xff]
    %v4357 = vld [vmem:[#allocation18 + $0x48] sm:$0xff]
    %v4358 = vld [vmem:[#allocation18 + $0x50] sm:$0xff]
    %v4359 = vld [vmem:[#allocation18 + $0x58] sm:$0xff]
    %v4360 = vld [vmem:[#allocation18 + $0x60] sm:$0xff]
    %v4361 = vld [vmem:[#allocation18 + $0x68] sm:$0xff]
    %v4362 = vld [vmem:[#allocation18 + $0x70] sm:$0xff]
    %v4363 = vld [vmem:[#allocation18 + $0x78] sm:$0xff]
    %v4364 = vld [vmem:[#allocation18 + $0x80] sm:$0xff]
    %v4365 = vld [vmem:[#allocation18 + $0x88] sm:$0xff]
    %v4366 = vld [vmem:[#allocation18 + $0x90] sm:$0xff]
    %v4367 = vld [vmem:[#allocation18 + $0x98] sm:$0xff]
    %v4368 = vld [vmem:[#allocation18 + $0xa0] sm:$0xff]
    %v4369 = vld [vmem:[#allocation18 + $0xa8] sm:$0xff]
    %v4370 = vld [vmem:[#allocation18 + $0xb0] sm:$0xff]
    %v4371 = vld [vmem:[#allocation18 + $0xb8] sm:$0xff]
    %v4372 = vld [vmem:[#allocation18 + $0xc0] sm:$0xff]
    %v4373 = vld [vmem:[#allocation18 + $0xc8] sm:$0xff]
    %v4374 = vld [vmem:[#allocation18 + $0xd0] sm:$0xff]
    %v4375 = vld [vmem:[#allocation18 + $0xd8] sm:$0xff]
    %v4376 = vld [vmem:[#allocation18 + $0xe0] sm:$0xff]
    %v4377 = vld [vmem:[#allocation18 + $0xe8] sm:$0xff]
    %v4378 = vld [vmem:[#allocation18 + $0xf0] sm:$0xff]
    %v4379 = vld [vmem:[#allocation18 + $0xf8] sm:$0xff]
    %4380 = vmatpush.msra.mxu0 %v4379
    %4381 = vmatpush.msra.mxu0 %v4378
    %4382 = vmatpush.msra.mxu0 %v4377
    %4383 = vmatpush.msra.mxu0 %v4376
    %4384 = vmatpush.msra.mxu0 %v4375
    %4385 = vmatpush.msra.mxu0 %v4374
    %4386 = vmatpush.msra.mxu0 %v4373
    %4387 = vmatpush.msra.mxu0 %v4372
    %4388 = vmatpush.msra.mxu0 %v4371
    %4389 = vmatpush.msra.mxu0 %v4370
    %4390 = vmatpush.msra.mxu0 %v4369
    %4391 = vmatpush.msra.mxu0 %v4368
    %4392 = vmatpush.msra.mxu0 %v4367
    %4393 = vmatpush.msra.mxu0 %v4366
    %4394 = vmatpush.msra.mxu0 %v4365
    %4395 = vmatpush.msra.mxu0 %v4364
    %4396 = vmatmul.f32.gmra.mxu0 %v3577
    %v4397 = vpop.f32.mrf.mxu0
    %v4398 = vadd.f32 0.0, %v4397
    %4399 = vdwg.mxu0
    %4400 = vmatpush.msra.mxu0 %v4363
    %4401 = vmatpush.msra.mxu0 %v4362
    %4402 = vmatpush.msra.mxu0 %v4361
    %4403 = vmatpush.msra.mxu0 %v4360
    %4404 = vmatpush.msra.mxu0 %v4359
    %4405 = vmatpush.msra.mxu0 %v4358
    %4406 = vmatpush.msra.mxu0 %v4357
    %4407 = vmatpush.msra.mxu0 %v4356
    %4408 = vmatpush.msra.mxu0 %v4355
    %4409 = vmatpush.msra.mxu0 %v4354
    %4410 = vmatpush.msra.mxu0 %v4353
    %4411 = vmatpush.msra.mxu0 %v4352
    %4412 = vmatpush.msra.mxu0 %v4351
    %4413 = vmatpush.msra.mxu0 %v4350
    %4414 = vmatpush.msra.mxu0 %v4349
    %4415 = vmatpush.msra.mxu0 %v4348
    %4416 = vmatmul.f32.gmra.mxu0 %v4347
    %v4417 = vpop.f32.mrf.mxu0
    %v4418 = vadd.f32 %v4398, %v4417
    %4419 = vdwg.mxu0
    %v4420 = vld [vmem:[%s18] sm:$0x1]
    %v4422 = vperm.slane %v4420, 0
    %v4424 = vadd.f32 %v4418, %v4422
    %4425 = vst [vmem:[%s19] sm:$0xff] %v4424
    // Predicated region
    $region114: #{rnn_forward.1} parent=1 // pred_check
      _
    $region115: #{rnn_forward.1} parent=1 // pred_check_branch
      %4427 = sbr.rel (0) target = $region117
    $region116: #{rnn_forward.1} parent=1 // pred_region
      _
    $region117: #{rnn_forward.1} parent=1 // pred_fallthru
      _
    // Predicated region
    $region118: #{rnn_forward.1} parent=1 // pred_check
      _
    $region119: #{rnn_forward.1} parent=1 // pred_check_branch
      %4429 = sbr.rel (0) target = $region121
    $region120: #{rnn_forward.1} parent=1 // pred_region
      _
    $region121: #{rnn_forward.1} parent=1 // pred_fallthru
      _
    %4430 = vsyncpa [#allocation6], 1
    %4431 = vsyncpa [#allocation8], 1
    %4432 = vsyncpa [#allocation11], 1
    %4433 = vsyncpa [#allocation14], 1
    %4434 = vsyncpa [#allocation17], 1

</llo_original>
